<compile_context>
chip_gen: v7x
topology: tpu7x:2x2x1
jax: 0.10.0
libtpu: 0.0.40
codegen_flags: <defaults>
</compile_context>

<pallas_src>
import jax
import jax.numpy as jnp
from jax.experimental import pallas as pl
from jax.experimental.pallas import tpu as pltpu

HIDDEN = (1024, 512, 256, 128)
BN_EPS = 1e-5


def _round_up(n, m):
    return ((n + m - 1) // m) * m


# --------------------------------------------------------------------------
# Kernel
# --------------------------------------------------------------------------
def ember_mlp_kernel(
    x_ref,
    w1_ref, c1_ref,
    w2_ref, c2_ref,
    w3_ref, c3_ref,
    w4_ref, c4_ref,
    w5_ref, b5_ref,
    out_ref,
):
    def block(h, w_ref, c_ref):
        # Linear + folded BatchNorm1d (eval) ; ReLU ; Dropout = identity (eval).
        z = jnp.dot(h.astype(jnp.bfloat16), w_ref[...],
                    preferred_element_type=jnp.float32)
        return jnp.maximum(z + c_ref[...], 0.0)

    h = x_ref[...]                      # (TB, F_pad) bf16
    h = block(h, w1_ref, c1_ref)        # (TB, 1024) f32
    h = block(h, w2_ref, c2_ref)        # (TB, 512)  f32
    h = block(h, w3_ref, c3_ref)        # (TB, 256)  f32
    h = block(h, w4_ref, c4_ref)        # (TB, 128)  f32

    # Final Linear(128, 1) + Sigmoid as VPU mul + lane reduction
    # (avoids the pathological N=1 MXU matmul / masked stores).
    logits = jnp.sum(h * w5_ref[...], axis=-1, keepdims=True) + b5_ref[...]
    out_ref[...] = jax.nn.sigmoid(logits)


# --------------------------------------------------------------------------
# Parameter construction / BN folding (wrapper-side, trace time)
# --------------------------------------------------------------------------
def init_params(input_features, key):
    """Deterministic synthetic parameters matching the PyTorch module shapes."""
    dims_in = (input_features,) + HIDDEN          # fan-in of each Linear
    dims_out = HIDDEN + (1,)                      # fan-out of each Linear
    params = {}
    keys = jax.random.split(key, 2 * len(dims_in))
    for i, (fi, fo) in enumerate(zip(dims_in, dims_out)):
        bound = 1.0 / jnp.sqrt(jnp.float32(fi))
        # PyTorch weight is (out, in); we store the transpose (in, out).
        w = jax.random.uniform(keys[2 * i], (fi, fo), jnp.float32, -bound, bound)
        b = jax.random.uniform(keys[2 * i + 1], (1, fo), jnp.float32, -bound, bound)
        params[f"w{i + 1}"] = w
        params[f"b{i + 1}"] = b
    # BatchNorm1d parameters / running stats (default PyTorch init).
    for i, n in enumerate(HIDDEN):
        params[f"gamma{i + 1}"] = jnp.ones((1, n), jnp.float32)
        params[f"beta{i + 1}"] = jnp.zeros((1, n), jnp.float32)
        params[f"rmean{i + 1}"] = jnp.zeros((1, n), jnp.float32)
        params[f"rvar{i + 1}"] = jnp.ones((1, n), jnp.float32)
    return params


def _folded_layer(params, i, in_pad=None):
    """Fold eval-mode BN1d of layer i into its Linear; return (bf16 W', f32 c)."""
    w = params[f"w{i}"]                                     # (in, out)
    b = params[f"b{i}"]                                     # (1, out)
    scale = params[f"gamma{i}"] * jax.lax.rsqrt(params[f"rvar{i}"] + BN_EPS)
    shift = params[f"beta{i}"] - params[f"rmean{i}"] * scale
    w_f = w * scale                                         # per-output-column scale
    c = b * scale + shift                                   # folded bias+shift (f32)
    if in_pad is not None and in_pad != w_f.shape[0]:
        w_f = jnp.pad(w_f, ((0, in_pad - w_f.shape[0]), (0, 0)))
    return w_f.astype(jnp.bfloat16), c


# --------------------------------------------------------------------------
# Host wrapper
# --------------------------------------------------------------------------
def ember_mlp_forward(x, params, *, batch_tile=512):
    batch = x.shape[0]
    x2d = x.reshape(batch, -1).astype(jnp.float32)          # x.view(x.size(0), -1)
    feat = x2d.shape[1]

    f_pad = _round_up(feat, 128)                            # lane-align K of layer 1
    tb = min(batch_tile, _round_up(batch, 8))               # batch tile
    b_pad = _round_up(batch, tb)
    x2d = jnp.pad(x2d, ((0, b_pad - batch), (0, f_pad - feat))).astype(jnp.bfloat16)

    w1, c1 = _folded_layer(params, 1, in_pad=f_pad)
    w2, c2 = _folded_layer(params, 2)
    w3, c3 = _folded_layer(params, 3)
    w4, c4 = _folded_layer(params, 4)
    w5 = params["w5"].reshape(1, HIDDEN[-1])                # (1, 128) f32
    b5 = params["b5"].reshape(1, 1)                         # (1, 1)   f32

    weight_args = (w1, c1, w2, c2, w3, c3, w4, c4, w5, b5)
    # Weights/biases: full-array blocks, same block index every grid step ->
    # DMA'd once, resident in VMEM across the batch loop.
    weight_specs = [pl.BlockSpec(a.shape, lambda i: (0, 0)) for a in weight_args]

    out = pl.pallas_call(
        ember_mlp_kernel,
        out_shape=jax.ShapeDtypeStruct((b_pad, 1), jnp.float32),
        grid=(b_pad // tb,),
        in_specs=[pl.BlockSpec((tb, f_pad), lambda i: (i, 0))] + weight_specs,
        out_specs=pl.BlockSpec((tb, 1), lambda i: (i, 0)),
        compiler_params=pltpu.CompilerParams(
            dimension_semantics=("parallel",),      # megacore batch sharding on v7x
            vmem_limit_bytes=48 << 20,              # fits v7x's 64 MiB physical VMEM
        ),
    )(x2d, *weight_args)

    return out[:batch]


# --------------------------------------------------------------------------
# Self-test
# --------------------------------------------------------------------------
def _ref_forward(x, params):
    """Pure-JAX reference with the same padding/folding/bf16 casting."""
    batch = x.shape[0]
    x2d = x.reshape(batch, -1).astype(jnp.float32)
    feat = x2d.shape[1]
    f_pad = _round_up(feat, 128)
    h = jnp.pad(x2d, ((0, 0), (0, f_pad - feat))).astype(jnp.bfloat16)
    for i in range(1, 5):
        w, c = _folded_layer(params, i, in_pad=f_pad if i == 1 else None)
        h = jnp.maximum(
            jnp.dot(h.astype(jnp.bfloat16), w, preferred_element_type=jnp.float32) + c,
            0.0,
        )
    w5 = params["w5"].reshape(1, HIDDEN[-1])
    logits = jnp.sum(h * w5, axis=-1, keepdims=True) + params["b5"].reshape(1, 1)
    return jax.nn.sigmoid(logits)


if __name__ == "__main__":
    BATCH = 16
    INPUT_FEATURES = 300   # small synthetic feature count (real Ember uses 2381);
                           # deliberately not a multiple of 128 to exercise padding.

    key = jax.random.PRNGKey(0)
    k_x, k_p = jax.random.split(key)
    x = jax.random.normal(k_x, (BATCH, INPUT_FEATURES), jnp.float32)
    params = init_params(INPUT_FEATURES, k_p)

    out = ember_mlp_forward(x, params)
    out = jax.block_until_ready(out)

    ref_out = _ref_forward(x, params)
    assert out.shape == (BATCH, 1)
    # bf16 weights/activations with f32 accumulation in both paths; only
    # accumulation-order differences remain.
    assert jnp.allclose(out, ref_out, atol=1e-3, rtol=1e-3)

    print("KERNEL_OK")
</pallas_src>

<mosaic_0001>
module attributes {stable_mosaic.version = 11 : i64} {
  func.func @ember_mlp_kernel(%arg0: i32, %arg1: memref<16x384xbf16, #tpu.memory_space<vmem>>, %arg2: memref<384x1024xbf16, #tpu.memory_space<vmem>>, %arg3: memref<1x1024xf32, #tpu.memory_space<vmem>>, %arg4: memref<1024x512xbf16, #tpu.memory_space<vmem>>, %arg5: memref<1x512xf32, #tpu.memory_space<vmem>>, %arg6: memref<512x256xbf16, #tpu.memory_space<vmem>>, %arg7: memref<1x256xf32, #tpu.memory_space<vmem>>, %arg8: memref<256x128xbf16, #tpu.memory_space<vmem>>, %arg9: memref<1x128xf32, #tpu.memory_space<vmem>>, %arg10: memref<1x128xf32, #tpu.memory_space<vmem>>, %arg11: memref<1x1xf32, #tpu.memory_space<vmem>>, %arg12: memref<16x1xf32, #tpu.memory_space<vmem>>) attributes {dimension_semantics = [#tpu.dimension_semantics<parallel>], iteration_bounds = array<i64: 1>, scalar_prefetch = 0 : i64, scratch_operands = 0 : i64, tpu.core_type = #tpu.core_type<tc>, window_params = [{transform_indices = @transform_0, window_bounds = array<i64: 16, 384>}, {pipeline_mode = #tpu.pipeline_mode<synchronous>, transform_indices = @transform_1, window_bounds = array<i64: 384, 1024>}, {pipeline_mode = #tpu.pipeline_mode<synchronous>, transform_indices = @transform_2, window_bounds = array<i64: 1, 1024>}, {pipeline_mode = #tpu.pipeline_mode<synchronous>, transform_indices = @transform_3, window_bounds = array<i64: 1024, 512>}, {pipeline_mode = #tpu.pipeline_mode<synchronous>, transform_indices = @transform_4, window_bounds = array<i64: 1, 512>}, {pipeline_mode = #tpu.pipeline_mode<synchronous>, transform_indices = @transform_5, window_bounds = array<i64: 512, 256>}, {pipeline_mode = #tpu.pipeline_mode<synchronous>, transform_indices = @transform_6, window_bounds = array<i64: 1, 256>}, {pipeline_mode = #tpu.pipeline_mode<synchronous>, transform_indices = @transform_7, window_bounds = array<i64: 256, 128>}, {pipeline_mode = #tpu.pipeline_mode<synchronous>, transform_indices = @transform_8, window_bounds = array<i64: 1, 128>}, {pipeline_mode = #tpu.pipeline_mode<synchronous>, transform_indices = @transform_9, window_bounds = array<i64: 1, 128>}, {pipeline_mode = #tpu.pipeline_mode<synchronous>, transform_indices = @transform_10, window_bounds = array<i64: 1, 1>}, {transform_indices = @transform_11, window_bounds = array<i64: 16, 1>}]} {
    %c0 = arith.constant 0 : index
    %c0_0 = arith.constant 0 : index
    %0 = vector.load %arg1[%c0, %c0_0] : memref<16x384xbf16, #tpu.memory_space<vmem>>, vector<16x384xbf16>
    %c0_1 = arith.constant 0 : index
    %c0_2 = arith.constant 0 : index
    %1 = vector.load %arg2[%c0_1, %c0_2] : memref<384x1024xbf16, #tpu.memory_space<vmem>>, vector<384x1024xbf16>
    %cst = arith.constant dense<0.000000e+00> : vector<16x1024xf32>
    %2 = tpu.matmul %0, %1, %cst {dimension_numbers = #tpu.dot_dimension_numbers<[1], [0], [0], [1], [0, 0, 1, 1], [], []>} : vector<16x384xbf16>, vector<384x1024xbf16>, vector<16x1024xf32> -> vector<16x1024xf32>
    %c0_3 = arith.constant 0 : index
    %c0_4 = arith.constant 0 : index
    %3 = vector.load %arg3[%c0_3, %c0_4] : memref<1x1024xf32, #tpu.memory_space<vmem>>, vector<1x1024xf32>
    %4 = vector.broadcast %3 : vector<1x1024xf32> to vector<16x1024xf32>
    %5 = arith.addf %2, %4 : vector<16x1024xf32>
    %cst_5 = arith.constant 0.000000e+00 : f32
    %6 = vector.broadcast %cst_5 : f32 to vector<16x1024xf32>
    %7 = arith.maximumf %5, %6 : vector<16x1024xf32>
    %8 = arith.truncf %7 : vector<16x1024xf32> to vector<16x1024xbf16>
    %c0_6 = arith.constant 0 : index
    %c0_7 = arith.constant 0 : index
    %9 = vector.load %arg4[%c0_6, %c0_7] : memref<1024x512xbf16, #tpu.memory_space<vmem>>, vector<1024x512xbf16>
    %cst_8 = arith.constant dense<0.000000e+00> : vector<16x512xf32>
    %10 = tpu.matmul %8, %9, %cst_8 {dimension_numbers = #tpu.dot_dimension_numbers<[1], [0], [0], [1], [0, 0, 1, 1], [], []>} : vector<16x1024xbf16>, vector<1024x512xbf16>, vector<16x512xf32> -> vector<16x512xf32>
    %c0_9 = arith.constant 0 : index
    %c0_10 = arith.constant 0 : index
    %11 = vector.load %arg5[%c0_9, %c0_10] : memref<1x512xf32, #tpu.memory_space<vmem>>, vector<1x512xf32>
    %12 = vector.broadcast %11 : vector<1x512xf32> to vector<16x512xf32>
    %13 = arith.addf %10, %12 : vector<16x512xf32>
    %cst_11 = arith.constant 0.000000e+00 : f32
    %14 = vector.broadcast %cst_11 : f32 to vector<16x512xf32>
    %15 = arith.maximumf %13, %14 : vector<16x512xf32>
    %16 = arith.truncf %15 : vector<16x512xf32> to vector<16x512xbf16>
    %c0_12 = arith.constant 0 : index
    %c0_13 = arith.constant 0 : index
    %17 = vector.load %arg6[%c0_12, %c0_13] : memref<512x256xbf16, #tpu.memory_space<vmem>>, vector<512x256xbf16>
    %cst_14 = arith.constant dense<0.000000e+00> : vector<16x256xf32>
    %18 = tpu.matmul %16, %17, %cst_14 {dimension_numbers = #tpu.dot_dimension_numbers<[1], [0], [0], [1], [0, 0, 1, 1], [], []>} : vector<16x512xbf16>, vector<512x256xbf16>, vector<16x256xf32> -> vector<16x256xf32>
    %c0_15 = arith.constant 0 : index
    %c0_16 = arith.constant 0 : index
    %19 = vector.load %arg7[%c0_15, %c0_16] : memref<1x256xf32, #tpu.memory_space<vmem>>, vector<1x256xf32>
    %20 = vector.broadcast %19 : vector<1x256xf32> to vector<16x256xf32>
    %21 = arith.addf %18, %20 : vector<16x256xf32>
    %cst_17 = arith.constant 0.000000e+00 : f32
    %22 = vector.broadcast %cst_17 : f32 to vector<16x256xf32>
    %23 = arith.maximumf %21, %22 : vector<16x256xf32>
    %24 = arith.truncf %23 : vector<16x256xf32> to vector<16x256xbf16>
    %c0_18 = arith.constant 0 : index
    %c0_19 = arith.constant 0 : index
    %25 = vector.load %arg8[%c0_18, %c0_19] : memref<256x128xbf16, #tpu.memory_space<vmem>>, vector<256x128xbf16>
    %cst_20 = arith.constant dense<0.000000e+00> : vector<16x128xf32>
    %26 = tpu.matmul %24, %25, %cst_20 {dimension_numbers = #tpu.dot_dimension_numbers<[1], [0], [0], [1], [0, 0, 1, 1], [], []>} : vector<16x256xbf16>, vector<256x128xbf16>, vector<16x128xf32> -> vector<16x128xf32>
    %c0_21 = arith.constant 0 : index
    %c0_22 = arith.constant 0 : index
    %27 = vector.load %arg9[%c0_21, %c0_22] : memref<1x128xf32, #tpu.memory_space<vmem>>, vector<1x128xf32>
    %28 = vector.broadcast %27 : vector<1x128xf32> to vector<16x128xf32>
    %29 = arith.addf %26, %28 : vector<16x128xf32>
    %cst_23 = arith.constant 0.000000e+00 : f32
    %30 = vector.broadcast %cst_23 : f32 to vector<16x128xf32>
    %31 = arith.maximumf %29, %30 : vector<16x128xf32>
    %c0_24 = arith.constant 0 : index
    %c0_25 = arith.constant 0 : index
    %32 = vector.load %arg10[%c0_24, %c0_25] : memref<1x128xf32, #tpu.memory_space<vmem>>, vector<1x128xf32>
    %33 = vector.broadcast %32 : vector<1x128xf32> to vector<16x128xf32>
    %34 = arith.mulf %31, %33 : vector<16x128xf32>
    %cst_26 = arith.constant dense<0.000000e+00> : vector<16xf32>
    %35 = vector.multi_reduction <add>, %34, %cst_26 [1] : vector<16x128xf32> to vector<16xf32>
    %36 = vector.shape_cast %35 : vector<16xf32> to vector<16x1xf32>
    %c0_27 = arith.constant 0 : index
    %c0_28 = arith.constant 0 : index
    %37 = vector.load %arg11[%c0_27, %c0_28] : memref<1x1xf32, #tpu.memory_space<vmem>>, vector<1x1xf32>
    %38 = vector.broadcast %37 : vector<1x1xf32> to vector<16x1xf32>
    %39 = arith.addf %36, %38 : vector<16x1xf32>
    %40 = arith.negf %39 : vector<16x1xf32>
    %41 = math.exp %40 : vector<16x1xf32>
    %cst_29 = arith.constant 1.000000e+00 : f32
    %42 = vector.broadcast %cst_29 : f32 to vector<16x1xf32>
    %43 = arith.addf %42, %41 : vector<16x1xf32>
    %44 = arith.divf %42, %43 : vector<16x1xf32>
    %c0_30 = arith.constant 0 : index
    %c0_31 = arith.constant 0 : index
    %45 = vector.load %arg12[%c0_30, %c0_31] : memref<16x1xf32, #tpu.memory_space<vmem>>, vector<16x1xf32>
    tpu.vector_store %arg12[%c0_30, %c0_31], %44 {strides = array<i32>} : memref<16x1xf32, #tpu.memory_space<vmem>>, vector<16x1xf32>,
    return
  }
  func.func @transform_0(%arg0: i32) -> (i32, i32) {
    %c0_i32 = arith.constant 0 : i32
    %c0_i32_0 = arith.constant 0 : i32
    return %arg0, %c0_i32 : i32, i32
  }
  func.func @transform_1(%arg0: i32) -> (i32, i32) {
    %c0_i32 = arith.constant 0 : i32
    %c0_i32_0 = arith.constant 0 : i32
    %c0_i32_1 = arith.constant 0 : i32
    return %c0_i32, %c0_i32_0 : i32, i32
  }
  func.func @transform_2(%arg0: i32) -> (i32, i32) {
    %c0_i32 = arith.constant 0 : i32
    %c0_i32_0 = arith.constant 0 : i32
    %c0_i32_1 = arith.constant 0 : i32
    return %c0_i32, %c0_i32_0 : i32, i32
  }
  func.func @transform_3(%arg0: i32) -> (i32, i32) {
    %c0_i32 = arith.constant 0 : i32
    %c0_i32_0 = arith.constant 0 : i32
    %c0_i32_1 = arith.constant 0 : i32
    return %c0_i32, %c0_i32_0 : i32, i32
  }
  func.func @transform_4(%arg0: i32) -> (i32, i32) {
    %c0_i32 = arith.constant 0 : i32
    %c0_i32_0 = arith.constant 0 : i32
    %c0_i32_1 = arith.constant 0 : i32
    return %c0_i32, %c0_i32_0 : i32, i32
  }
  func.func @transform_5(%arg0: i32) -> (i32, i32) {
    %c0_i32 = arith.constant 0 : i32
    %c0_i32_0 = arith.constant 0 : i32
    %c0_i32_1 = arith.constant 0 : i32
    return %c0_i32, %c0_i32_0 : i32, i32
  }
  func.func @transform_6(%arg0: i32) -> (i32, i32) {
    %c0_i32 = arith.constant 0 : i32
    %c0_i32_0 = arith.constant 0 : i32
    %c0_i32_1 = arith.constant 0 : i32
    return %c0_i32, %c0_i32_0 : i32, i32
  }
  func.func @transform_7(%arg0: i32) -> (i32, i32) {
    %c0_i32 = arith.constant 0 : i32
    %c0_i32_0 = arith.constant 0 : i32
    %c0_i32_1 = arith.constant 0 : i32
    return %c0_i32, %c0_i32_0 : i32, i32
  }
  func.func @transform_8(%arg0: i32) -> (i32, i32) {
    %c0_i32 = arith.constant 0 : i32
    %c0_i32_0 = arith.constant 0 : i32
    %c0_i32_1 = arith.constant 0 : i32
    return %c0_i32, %c0_i32_0 : i32, i32
  }
  func.func @transform_9(%arg0: i32) -> (i32, i32) {
    %c0_i32 = arith.constant 0 : i32
    %c0_i32_0 = arith.constant 0 : i32
    %c0_i32_1 = arith.constant 0 : i32
    return %c0_i32, %c0_i32_0 : i32, i32
  }
  func.func @transform_10(%arg0: i32) -> (i32, i32) {
    %c0_i32 = arith.constant 0 : i32
    %c0_i32_0 = arith.constant 0 : i32
    %c0_i32_1 = arith.constant 0 : i32
    return %c0_i32, %c0_i32_0 : i32, i32
  }
  func.func @transform_11(%arg0: i32) -> (i32, i32) {
    %c0_i32 = arith.constant 0 : i32
    %c0_i32_0 = arith.constant 0 : i32
    return %arg0, %c0_i32 : i32, i32
  }
}

</mosaic_0001>

<llo_original>
// kernel: tpu_custom_call.1
$region0: #{tpu_custom_call.1}
  #allocation0 [shape = 'u32[]', space=smem, size = 0x4, offset = 0x4, fixed_abs, tag = 'smem constant byte address 0x4 - core index']
  #allocation1 [shape = 'u32[144,128]{1,0:T(1,128)}', space=vmem, size = 0x12000, scoped, tag = 'internal scratch']
  #allocation2 [shape = 'f32[1,1]{1,0:T(1,128)S(1)}', space=vmem, size = 0x200, scoped, tag = 'scoped memory for tpu_custom_call.1']
  %s0 = inlined_call_operand.hbm [shape: bf16[16,384], index: 0, kind: input, shape index: {}]
  %s1 = inlined_call_operand.hbm [shape: bf16[384,1024], index: 1, kind: input, shape index: {}]
  %s2 = inlined_call_operand.vmem [shape: f32[1,1024], index: 2, kind: input, shape index: {}]
  %s3 = inlined_call_operand.hbm [shape: bf16[1024,512], index: 3, kind: input, shape index: {}]
  %s4 = inlined_call_operand.vmem [shape: f32[1,512], index: 4, kind: input, shape index: {}]
  %s5 = inlined_call_operand.hbm [shape: bf16[512,256], index: 5, kind: input, shape index: {}]
  %s6 = inlined_call_operand.vmem [shape: f32[1,256], index: 6, kind: input, shape index: {}]
  %s7 = inlined_call_operand.hbm [shape: bf16[256,128], index: 7, kind: input, shape index: {}]
  %s8 = inlined_call_operand.vmem [shape: f32[1,128], index: 8, kind: input, shape index: {}]
  %s9 = inlined_call_operand.vmem [shape: f32[1,128], index: 9, kind: input, shape index: {}]
  %s10 = inlined_call_operand.<no memory space> [shape: f32[1,1], index: 10, kind: input, shape index: {}]
  %s11 = inlined_call_operand.vmem [shape: f32[16,1], index: 11, kind: output, shape index: {}]
  %s12 = sld [smem:[#allocation0]]
  $region74: #{tpu_custom_call.1} parent=0
    _
  %s14 = ssub.s32 1, %s12
  %s15 = scalar_select 0, %s14, %s12
  %v16 = vstv %s10
  %17 = vst [vmem:[#allocation2] sm:$0x1] %v16
  $region1: #{tpu_custom_call.1} parent=0
    #allocation3 [shape = 'u8[12288]{0}', space=vmem, size = 0x3000, scoped, tag = 'input window, operand 0, single buffered']
    #allocation4 [shape = 's32[1]{0}', space=sflag, size = 0x4, scoped, tag = 'scoped memory for tpu_custom_call.1']
    #allocation5 [shape = 'u8[786432]{0}', space=vmem, size = 0xc0000, scoped, tag = 'input window, operand 1, single buffered']
    #allocation6 [shape = 's32[1]{0}', space=sflag, size = 0x4, scoped, tag = 'scoped memory for tpu_custom_call.1']
    #allocation7 [shape = 'u8[1048576]{0}', space=vmem, size = 0x100000, scoped, tag = 'input window, operand 3, single buffered']
    #allocation8 [shape = 'u8[262144]{0}', space=vmem, size = 0x40000, scoped, tag = 'input window, operand 5, single buffered']
    #allocation9 [shape = 's32[1]{0}', space=sflag, size = 0x4, scoped, tag = 'scoped memory for tpu_custom_call.1']
    #allocation10 [shape = 'u8[65536]{0}', space=vmem, size = 0x10000, scoped, tag = 'input window, operand 7, single buffered']
    %18 = vsyncpa [#allocation4], 0
    %19 = vsyncpa [#allocation6], 0
    %20 = vsyncpa [#allocation9], 0
    // Predicated region
    $region2: #{tpu_custom_call.1} parent=1 // pred_check
      _
    $region3: #{tpu_custom_call.1} parent=1 // pred_check_branch
      %22 = sbr.rel (0) target = $region5
    $region4: #{tpu_custom_call.1} parent=1 // pred_region
      %s24 = ssub.s32 384, 384
      %25 = vsyncadd [#allocation4], %s24
      %s26 = sshll.u32 [#allocation3], 4
      %s27 = int_to_ptr.vmem [resolvable:$true] %s26
      %32 = dma.hbm_to_vmem [thread:$0]  %s0, 384, %s27, [#allocation4], 192, 192, 12
    $region5: #{tpu_custom_call.1} parent=1 // pred_fallthru
      _
    // Predicated region
    $region6: #{tpu_custom_call.1} parent=1 // pred_check
      _
    $region7: #{tpu_custom_call.1} parent=1 // pred_check_branch
      %34 = sbr.rel (0) target = $region9
    $region8: #{tpu_custom_call.1} parent=1 // pred_region
      %s36 = ssub.s32 24576, 24576
      %37 = vsyncadd [#allocation6], %s36
      %s38 = sshll.u32 [#allocation5], 4
      %s39 = int_to_ptr.vmem [resolvable:$true] %s38
      %44 = dma.hbm_to_vmem [thread:$0]  %s1, 24576, %s39, [#allocation6], 512, 512, 32
    $region9: #{tpu_custom_call.1} parent=1 // pred_fallthru
      _
    // Predicated region
    $region10: #{tpu_custom_call.1} parent=1 // pred_check
      _
    $region11: #{tpu_custom_call.1} parent=1 // pred_check_branch
      %46 = sbr.rel (0) target = $region13
    $region12: #{tpu_custom_call.1} parent=1 // pred_region
      _
    $region13: #{tpu_custom_call.1} parent=1 // pred_fallthru
      _
    // Predicated region
    $region14: #{tpu_custom_call.1} parent=1 // pred_check
      _
    $region15: #{tpu_custom_call.1} parent=1 // pred_check_branch
      %48 = sbr.rel (0) target = $region17
    $region16: #{tpu_custom_call.1} parent=1 // pred_region
      %s50 = ssub.s32 32768, 32768
      %51 = vsyncadd [#allocation6], %s50
      %s52 = sshll.u32 [#allocation7], 4
      %s53 = int_to_ptr.vmem [resolvable:$true] %s52
      %58 = dma.hbm_to_vmem [thread:$0]  %s3, 32768, %s53, [#allocation6], 256, 256, 16
    $region17: #{tpu_custom_call.1} parent=1 // pred_fallthru
      _
    // Predicated region
    $region18: #{tpu_custom_call.1} parent=1 // pred_check
      _
    $region19: #{tpu_custom_call.1} parent=1 // pred_check_branch
      %60 = sbr.rel (0) target = $region21
    $region20: #{tpu_custom_call.1} parent=1 // pred_region
      _
    $region21: #{tpu_custom_call.1} parent=1 // pred_fallthru
      _
    // Predicated region
    $region22: #{tpu_custom_call.1} parent=1 // pred_check
      _
    $region23: #{tpu_custom_call.1} parent=1 // pred_check_branch
      %62 = sbr.rel (0) target = $region25
    $region24: #{tpu_custom_call.1} parent=1 // pred_region
      %s64 = ssub.s32 8192, 8192
      %65 = vsyncadd [#allocation9], %s64
      %s66 = sshll.u32 [#allocation8], 4
      %s67 = int_to_ptr.vmem [resolvable:$true] %s66
      %72 = dma.hbm_to_vmem [thread:$0]  %s5, 8192, %s67, [#allocation9], 128, 128, 8
    $region25: #{tpu_custom_call.1} parent=1 // pred_fallthru
      _
    // Predicated region
    $region26: #{tpu_custom_call.1} parent=1 // pred_check
      _
    $region27: #{tpu_custom_call.1} parent=1 // pred_check_branch
      %74 = sbr.rel (0) target = $region29
    $region28: #{tpu_custom_call.1} parent=1 // pred_region
      _
    $region29: #{tpu_custom_call.1} parent=1 // pred_fallthru
      _
    // Predicated region
    $region30: #{tpu_custom_call.1} parent=1 // pred_check
      _
    $region31: #{tpu_custom_call.1} parent=1 // pred_check_branch
      %76 = sbr.rel (0) target = $region33
    $region32: #{tpu_custom_call.1} parent=1 // pred_region
      %s78 = ssub.s32 2048, 2048
      %79 = vsyncadd [#allocation9], %s78
      %s80 = sshll.u32 [#allocation10], 4
      %s81 = int_to_ptr.vmem [resolvable:$true] %s80
      %86 = dma.hbm_to_vmem [thread:$0]  %s7, 2048, %s81, [#allocation9], 64, 64, 4
    $region33: #{tpu_custom_call.1} parent=1 // pred_fallthru
      _
    // Predicated region
    $region34: #{tpu_custom_call.1} parent=1 // pred_check
      _
    $region35: #{tpu_custom_call.1} parent=1 // pred_check_branch
      %88 = sbr.rel (0) target = $region37
    $region36: #{tpu_custom_call.1} parent=1 // pred_region
      _
    $region37: #{tpu_custom_call.1} parent=1 // pred_fallthru
      _
    // Predicated region
    $region38: #{tpu_custom_call.1} parent=1 // pred_check
      _
    $region39: #{tpu_custom_call.1} parent=1 // pred_check_branch
      %90 = sbr.rel (0) target = $region41
    $region40: #{tpu_custom_call.1} parent=1 // pred_region
      _
    $region41: #{tpu_custom_call.1} parent=1 // pred_fallthru
      _
    // Predicated region
    $region42: #{tpu_custom_call.1} parent=1 // pred_check
      _
    $region43: #{tpu_custom_call.1} parent=1 // pred_check_branch
      %92 = sbr.rel (0) target = $region45
    $region44: #{tpu_custom_call.1} parent=1 // pred_region
      _
    $region45: #{tpu_custom_call.1} parent=1 // pred_fallthru
      _
    // Predicated region
    $region46: #{tpu_custom_call.1} parent=1 // pred_check
      _
    $region47: #{tpu_custom_call.1} parent=1 // pred_check_branch
      %94 = sbr.rel (0) target = $region49
    $region48: #{tpu_custom_call.1} parent=1 // pred_region
      %95 = dma.done [#allocation4], 384
    $region49: #{tpu_custom_call.1} parent=1 // pred_fallthru
      _
    // Predicated region
    $region50: #{tpu_custom_call.1} parent=1 // pred_check
      _
    $region51: #{tpu_custom_call.1} parent=1 // pred_check_branch
      %97 = sbr.rel (0) target = $region53
    $region52: #{tpu_custom_call.1} parent=1 // pred_region
      %98 = dma.done [#allocation6], 24576
    $region53: #{tpu_custom_call.1} parent=1 // pred_fallthru
      _
    // Predicated region
    $region54: #{tpu_custom_call.1} parent=1 // pred_check
      _
    $region55: #{tpu_custom_call.1} parent=1 // pred_check_branch
      %100 = sbr.rel (0) target = $region57
    $region56: #{tpu_custom_call.1} parent=1 // pred_region
      %101 = dma.done [#allocation6], 32768
    $region57: #{tpu_custom_call.1} parent=1 // pred_fallthru
      _
    // Predicated region
    $region58: #{tpu_custom_call.1} parent=1 // pred_check
      _
    $region59: #{tpu_custom_call.1} parent=1 // pred_check_branch
      %103 = sbr.rel (0) target = $region61
    $region60: #{tpu_custom_call.1} parent=1 // pred_region
      %104 = dma.done [#allocation9], 8192
    $region61: #{tpu_custom_call.1} parent=1 // pred_fallthru
      _
    // Predicated region
    $region62: #{tpu_custom_call.1} parent=1 // pred_check
      _
    $region63: #{tpu_custom_call.1} parent=1 // pred_check_branch
      %106 = sbr.rel (0) target = $region65
    $region64: #{tpu_custom_call.1} parent=1 // pred_region
      %107 = dma.done [#allocation9], 2048
    $region65: #{tpu_custom_call.1} parent=1 // pred_fallthru
      _
    %v109 = vld [vmem:[#allocation3] sm:$0xff]
    %v110 = vld [vmem:[#allocation3 + $0x8] sm:$0xf]
    %v111 = vld [vmem:[#allocation3 + $0xc] sm:$0xff]
    %v112 = vld [vmem:[#allocation3 + $0x14] sm:$0xf]
    %v113 = vld [vmem:[#allocation5] sm:$0xff]
    %v114 = vld [vmem:[#allocation5 + $0x8] sm:$0xff]
    %v115 = vld [vmem:[#allocation5 + $0x10] sm:$0xff]
    %v116 = vld [vmem:[#allocation5 + $0x18] sm:$0xff]
    %v117 = vld [vmem:[#allocation5 + $0x20] sm:$0xff]
    %v118 = vld [vmem:[#allocation5 + $0x28] sm:$0xff]
    %v119 = vld [vmem:[#allocation5 + $0x30] sm:$0xff]
    %v120 = vld [vmem:[#allocation5 + $0x38] sm:$0xff]
    %v121 = vld [vmem:[#allocation5 + $0x40] sm:$0xff]
    %v122 = vld [vmem:[#allocation5 + $0x48] sm:$0xff]
    %v123 = vld [vmem:[#allocation5 + $0x50] sm:$0xff]
    %v124 = vld [vmem:[#allocation5 + $0x58] sm:$0xff]
    %v125 = vld [vmem:[#allocation5 + $0x60] sm:$0xff]
    %v126 = vld [vmem:[#allocation5 + $0x68] sm:$0xff]
    %v127 = vld [vmem:[#allocation5 + $0x70] sm:$0xff]
    %v128 = vld [vmem:[#allocation5 + $0x78] sm:$0xff]
    %v129 = vld [vmem:[#allocation5 + $0x80] sm:$0xff]
    %v130 = vld [vmem:[#allocation5 + $0x88] sm:$0xff]
    %v131 = vld [vmem:[#allocation5 + $0x90] sm:$0xff]
    %v132 = vld [vmem:[#allocation5 + $0x98] sm:$0xff]
    %v133 = vld [vmem:[#allocation5 + $0xa0] sm:$0xff]
    %v134 = vld [vmem:[#allocation5 + $0xa8] sm:$0xff]
    %v135 = vld [vmem:[#allocation5 + $0xb0] sm:$0xff]
    %v136 = vld [vmem:[#allocation5 + $0xb8] sm:$0xff]
    %v137 = vld [vmem:[#allocation5 + $0xc0] sm:$0xff]
    %v138 = vld [vmem:[#allocation5 + $0xc8] sm:$0xff]
    %v139 = vld [vmem:[#allocation5 + $0xd0] sm:$0xff]
    %v140 = vld [vmem:[#allocation5 + $0xd8] sm:$0xff]
    %v141 = vld [vmem:[#allocation5 + $0xe0] sm:$0xff]
    %v142 = vld [vmem:[#allocation5 + $0xe8] sm:$0xff]
    %v143 = vld [vmem:[#allocation5 + $0xf0] sm:$0xff]
    %v144 = vld [vmem:[#allocation5 + $0xf8] sm:$0xff]
    %v145 = vld [vmem:[#allocation5 + $0x100] sm:$0xff]
    %v146 = vld [vmem:[#allocation5 + $0x108] sm:$0xff]
    %v147 = vld [vmem:[#allocation5 + $0x110] sm:$0xff]
    %v148 = vld [vmem:[#allocation5 + $0x118] sm:$0xff]
    %v149 = vld [vmem:[#allocation5 + $0x120] sm:$0xff]
    %v150 = vld [vmem:[#allocation5 + $0x128] sm:$0xff]
    %v151 = vld [vmem:[#allocation5 + $0x130] sm:$0xff]
    %v152 = vld [vmem:[#allocation5 + $0x138] sm:$0xff]
    %v153 = vld [vmem:[#allocation5 + $0x140] sm:$0xff]
    %v154 = vld [vmem:[#allocation5 + $0x148] sm:$0xff]
    %v155 = vld [vmem:[#allocation5 + $0x150] sm:$0xff]
    %v156 = vld [vmem:[#allocation5 + $0x158] sm:$0xff]
    %v157 = vld [vmem:[#allocation5 + $0x160] sm:$0xff]
    %v158 = vld [vmem:[#allocation5 + $0x168] sm:$0xff]
    %v159 = vld [vmem:[#allocation5 + $0x170] sm:$0xff]
    %v160 = vld [vmem:[#allocation5 + $0x178] sm:$0xff]
    %v161 = vld [vmem:[#allocation5 + $0x180] sm:$0xff]
    %v162 = vld [vmem:[#allocation5 + $0x188] sm:$0xff]
    %v163 = vld [vmem:[#allocation5 + $0x190] sm:$0xff]
    %v164 = vld [vmem:[#allocation5 + $0x198] sm:$0xff]
    %v165 = vld [vmem:[#allocation5 + $0x1a0] sm:$0xff]
    %v166 = vld [vmem:[#allocation5 + $0x1a8] sm:$0xff]
    %v167 = vld [vmem:[#allocation5 + $0x1b0] sm:$0xff]
    %v168 = vld [vmem:[#allocation5 + $0x1b8] sm:$0xff]
    %v169 = vld [vmem:[#allocation5 + $0x1c0] sm:$0xff]
    %v170 = vld [vmem:[#allocation5 + $0x1c8] sm:$0xff]
    %v171 = vld [vmem:[#allocation5 + $0x1d0] sm:$0xff]
    %v172 = vld [vmem:[#allocation5 + $0x1d8] sm:$0xff]
    %v173 = vld [vmem:[#allocation5 + $0x1e0] sm:$0xff]
    %v174 = vld [vmem:[#allocation5 + $0x1e8] sm:$0xff]
    %v175 = vld [vmem:[#allocation5 + $0x1f0] sm:$0xff]
    %v176 = vld [vmem:[#allocation5 + $0x1f8] sm:$0xff]
    %v177 = vld [vmem:[#allocation5 + $0x200] sm:$0xff]
    %v178 = vld [vmem:[#allocation5 + $0x208] sm:$0xff]
    %v179 = vld [vmem:[#allocation5 + $0x210] sm:$0xff]
    %v180 = vld [vmem:[#allocation5 + $0x218] sm:$0xff]
    %v181 = vld [vmem:[#allocation5 + $0x220] sm:$0xff]
    %v182 = vld [vmem:[#allocation5 + $0x228] sm:$0xff]
    %v183 = vld [vmem:[#allocation5 + $0x230] sm:$0xff]
    %v184 = vld [vmem:[#allocation5 + $0x238] sm:$0xff]
    %v185 = vld [vmem:[#allocation5 + $0x240] sm:$0xff]
    %v186 = vld [vmem:[#allocation5 + $0x248] sm:$0xff]
    %v187 = vld [vmem:[#allocation5 + $0x250] sm:$0xff]
    %v188 = vld [vmem:[#allocation5 + $0x258] sm:$0xff]
    %v189 = vld [vmem:[#allocation5 + $0x260] sm:$0xff]
    %v190 = vld [vmem:[#allocation5 + $0x268] sm:$0xff]
    %v191 = vld [vmem:[#allocation5 + $0x270] sm:$0xff]
    %v192 = vld [vmem:[#allocation5 + $0x278] sm:$0xff]
    %v193 = vld [vmem:[#allocation5 + $0x280] sm:$0xff]
    %v194 = vld [vmem:[#allocation5 + $0x288] sm:$0xff]
    %v195 = vld [vmem:[#allocation5 + $0x290] sm:$0xff]
    %v196 = vld [vmem:[#allocation5 + $0x298] sm:$0xff]
    %v197 = vld [vmem:[#allocation5 + $0x2a0] sm:$0xff]
    %v198 = vld [vmem:[#allocation5 + $0x2a8] sm:$0xff]
    %v199 = vld [vmem:[#allocation5 + $0x2b0] sm:$0xff]
    %v200 = vld [vmem:[#allocation5 + $0x2b8] sm:$0xff]
    %v201 = vld [vmem:[#allocation5 + $0x2c0] sm:$0xff]
    %v202 = vld [vmem:[#allocation5 + $0x2c8] sm:$0xff]
    %v203 = vld [vmem:[#allocation5 + $0x2d0] sm:$0xff]
    %v204 = vld [vmem:[#allocation5 + $0x2d8] sm:$0xff]
    %v205 = vld [vmem:[#allocation5 + $0x2e0] sm:$0xff]
    %v206 = vld [vmem:[#allocation5 + $0x2e8] sm:$0xff]
    %v207 = vld [vmem:[#allocation5 + $0x2f0] sm:$0xff]
    %v208 = vld [vmem:[#allocation5 + $0x2f8] sm:$0xff]
    %v209 = vld [vmem:[#allocation5 + $0x300] sm:$0xff]
    %v210 = vld [vmem:[#allocation5 + $0x308] sm:$0xff]
    %v211 = vld [vmem:[#allocation5 + $0x310] sm:$0xff]
    %v212 = vld [vmem:[#allocation5 + $0x318] sm:$0xff]
    %v213 = vld [vmem:[#allocation5 + $0x320] sm:$0xff]
    %v214 = vld [vmem:[#allocation5 + $0x328] sm:$0xff]
    %v215 = vld [vmem:[#allocation5 + $0x330] sm:$0xff]
    %v216 = vld [vmem:[#allocation5 + $0x338] sm:$0xff]
    %v217 = vld [vmem:[#allocation5 + $0x340] sm:$0xff]
    %v218 = vld [vmem:[#allocation5 + $0x348] sm:$0xff]
    %v219 = vld [vmem:[#allocation5 + $0x350] sm:$0xff]
    %v220 = vld [vmem:[#allocation5 + $0x358] sm:$0xff]
    %v221 = vld [vmem:[#allocation5 + $0x360] sm:$0xff]
    %v222 = vld [vmem:[#allocation5 + $0x368] sm:$0xff]
    %v223 = vld [vmem:[#allocation5 + $0x370] sm:$0xff]
    %v224 = vld [vmem:[#allocation5 + $0x378] sm:$0xff]
    %v225 = vld [vmem:[#allocation5 + $0x380] sm:$0xff]
    %v226 = vld [vmem:[#allocation5 + $0x388] sm:$0xff]
    %v227 = vld [vmem:[#allocation5 + $0x390] sm:$0xff]
    %v228 = vld [vmem:[#allocation5 + $0x398] sm:$0xff]
    %v229 = vld [vmem:[#allocation5 + $0x3a0] sm:$0xff]
    %v230 = vld [vmem:[#allocation5 + $0x3a8] sm:$0xff]
    %v231 = vld [vmem:[#allocation5 + $0x3b0] sm:$0xff]
    %v232 = vld [vmem:[#allocation5 + $0x3b8] sm:$0xff]
    %v233 = vld [vmem:[#allocation5 + $0x3c0] sm:$0xff]
    %v234 = vld [vmem:[#allocation5 + $0x3c8] sm:$0xff]
    %v235 = vld [vmem:[#allocation5 + $0x3d0] sm:$0xff]
    %v236 = vld [vmem:[#allocation5 + $0x3d8] sm:$0xff]
    %v237 = vld [vmem:[#allocation5 + $0x3e0] sm:$0xff]
    %v238 = vld [vmem:[#allocation5 + $0x3e8] sm:$0xff]
    %v239 = vld [vmem:[#allocation5 + $0x3f0] sm:$0xff]
    %v240 = vld [vmem:[#allocation5 + $0x3f8] sm:$0xff]
    %v241 = vld [vmem:[#allocation5 + $0x400] sm:$0xff]
    %v242 = vld [vmem:[#allocation5 + $0x408] sm:$0xff]
    %v243 = vld [vmem:[#allocation5 + $0x410] sm:$0xff]
    %v244 = vld [vmem:[#allocation5 + $0x418] sm:$0xff]
    %v245 = vld [vmem:[#allocation5 + $0x420] sm:$0xff]
    %v246 = vld [vmem:[#allocation5 + $0x428] sm:$0xff]
    %v247 = vld [vmem:[#allocation5 + $0x430] sm:$0xff]
    %v248 = vld [vmem:[#allocation5 + $0x438] sm:$0xff]
    %v249 = vld [vmem:[#allocation5 + $0x440] sm:$0xff]
    %v250 = vld [vmem:[#allocation5 + $0x448] sm:$0xff]
    %v251 = vld [vmem:[#allocation5 + $0x450] sm:$0xff]
    %v252 = vld [vmem:[#allocation5 + $0x458] sm:$0xff]
    %v253 = vld [vmem:[#allocation5 + $0x460] sm:$0xff]
    %v254 = vld [vmem:[#allocation5 + $0x468] sm:$0xff]
    %v255 = vld [vmem:[#allocation5 + $0x470] sm:$0xff]
    %v256 = vld [vmem:[#allocation5 + $0x478] sm:$0xff]
    %v257 = vld [vmem:[#allocation5 + $0x480] sm:$0xff]
    %v258 = vld [vmem:[#allocation5 + $0x488] sm:$0xff]
    %v259 = vld [vmem:[#allocation5 + $0x490] sm:$0xff]
    %v260 = vld [vmem:[#allocation5 + $0x498] sm:$0xff]
    %v261 = vld [vmem:[#allocation5 + $0x4a0] sm:$0xff]
    %v262 = vld [vmem:[#allocation5 + $0x4a8] sm:$0xff]
    %v263 = vld [vmem:[#allocation5 + $0x4b0] sm:$0xff]
    %v264 = vld [vmem:[#allocation5 + $0x4b8] sm:$0xff]
    %v265 = vld [vmem:[#allocation5 + $0x4c0] sm:$0xff]
    %v266 = vld [vmem:[#allocation5 + $0x4c8] sm:$0xff]
    %v267 = vld [vmem:[#allocation5 + $0x4d0] sm:$0xff]
    %v268 = vld [vmem:[#allocation5 + $0x4d8] sm:$0xff]
    %v269 = vld [vmem:[#allocation5 + $0x4e0] sm:$0xff]
    %v270 = vld [vmem:[#allocation5 + $0x4e8] sm:$0xff]
    %v271 = vld [vmem:[#allocation5 + $0x4f0] sm:$0xff]
    %v272 = vld [vmem:[#allocation5 + $0x4f8] sm:$0xff]
    %v273 = vld [vmem:[#allocation5 + $0x500] sm:$0xff]
    %v274 = vld [vmem:[#allocation5 + $0x508] sm:$0xff]
    %v275 = vld [vmem:[#allocation5 + $0x510] sm:$0xff]
    %v276 = vld [vmem:[#allocation5 + $0x518] sm:$0xff]
    %v277 = vld [vmem:[#allocation5 + $0x520] sm:$0xff]
    %v278 = vld [vmem:[#allocation5 + $0x528] sm:$0xff]
    %v279 = vld [vmem:[#allocation5 + $0x530] sm:$0xff]
    %v280 = vld [vmem:[#allocation5 + $0x538] sm:$0xff]
    %v281 = vld [vmem:[#allocation5 + $0x540] sm:$0xff]
    %v282 = vld [vmem:[#allocation5 + $0x548] sm:$0xff]
    %v283 = vld [vmem:[#allocation5 + $0x550] sm:$0xff]
    %v284 = vld [vmem:[#allocation5 + $0x558] sm:$0xff]
    %v285 = vld [vmem:[#allocation5 + $0x560] sm:$0xff]
    %v286 = vld [vmem:[#allocation5 + $0x568] sm:$0xff]
    %v287 = vld [vmem:[#allocation5 + $0x570] sm:$0xff]
    %v288 = vld [vmem:[#allocation5 + $0x578] sm:$0xff]
    %v289 = vld [vmem:[#allocation5 + $0x580] sm:$0xff]
    %v290 = vld [vmem:[#allocation5 + $0x588] sm:$0xff]
    %v291 = vld [vmem:[#allocation5 + $0x590] sm:$0xff]
    %v292 = vld [vmem:[#allocation5 + $0x598] sm:$0xff]
    %v293 = vld [vmem:[#allocation5 + $0x5a0] sm:$0xff]
    %v294 = vld [vmem:[#allocation5 + $0x5a8] sm:$0xff]
    %v295 = vld [vmem:[#allocation5 + $0x5b0] sm:$0xff]
    %v296 = vld [vmem:[#allocation5 + $0x5b8] sm:$0xff]
    %v297 = vld [vmem:[#allocation5 + $0x5c0] sm:$0xff]
    %v298 = vld [vmem:[#allocation5 + $0x5c8] sm:$0xff]
    %v299 = vld [vmem:[#allocation5 + $0x5d0] sm:$0xff]
    %v300 = vld [vmem:[#allocation5 + $0x5d8] sm:$0xff]
    %v301 = vld [vmem:[#allocation5 + $0x5e0] sm:$0xff]
    %v302 = vld [vmem:[#allocation5 + $0x5e8] sm:$0xff]
    %v303 = vld [vmem:[#allocation5 + $0x5f0] sm:$0xff]
    %v304 = vld [vmem:[#allocation5 + $0x5f8] sm:$0xff]
    %v305 = vld [vmem:[%s2] sm:$0xff]
    %v307 = vlaneseq
    %v308 = vshrl.u32 %v307, 7
    %v309 = vsub.s32 0, %v308
    %v310 = vrot.slane %v305, %v309
    %v311 = vlaneseq
    %v312 = vshrl.u32 %v311, 7
    %v313 = vsub.s32 1, %v312
    %v314 = vrot.slane %v305, %v313
    %v315 = vlaneseq
    %v316 = vshrl.u32 %v315, 7
    %v317 = vsub.s32 2, %v316
    %v318 = vrot.slane %v305, %v317
    %v319 = vlaneseq
    %v320 = vshrl.u32 %v319, 7
    %v321 = vsub.s32 3, %v320
    %v322 = vrot.slane %v305, %v321
    %v323 = vlaneseq
    %v324 = vshrl.u32 %v323, 7
    %v325 = vsub.s32 4, %v324
    %v326 = vrot.slane %v305, %v325
    %v327 = vlaneseq
    %v328 = vshrl.u32 %v327, 7
    %v329 = vsub.s32 5, %v328
    %v330 = vrot.slane %v305, %v329
    %v331 = vlaneseq
    %v332 = vshrl.u32 %v331, 7
    %v333 = vsub.s32 6, %v332
    %v334 = vrot.slane %v305, %v333
    %v335 = vlaneseq
    %v336 = vshrl.u32 %v335, 7
    %v337 = vsub.s32 7, %v336
    %v338 = vrot.slane %v305, %v337
    %v351 = vunpack.c.l.b16 %v109
    %v352 = vunpack.c.h.b16 %v109
    %v353 = vunpack.c.l.b16 %v110
    %v354 = vunpack.c.l.b16 %v111
    %v355 = vunpack.c.h.b16 %v111
    %v356 = vunpack.c.l.b16 %v112
    %v357 = vpack.c.b16 %v354, %v351
    %v358 = vpack.c.b16 %v355, %v352
    %v359 = vpack.c.b16 %v356, %v353
    %v555 = vunpack.c.l.b16 %v113
    %v556 = vunpack.c.h.b16 %v113
    %v557 = vunpack.c.l.b16 %v114
    %v558 = vunpack.c.h.b16 %v114
    %v559 = vunpack.c.l.b16 %v115
    %v560 = vunpack.c.h.b16 %v115
    %v561 = vunpack.c.l.b16 %v116
    %v562 = vunpack.c.h.b16 %v116
    %v563 = vunpack.c.l.b16 %v117
    %v564 = vunpack.c.h.b16 %v117
    %v565 = vunpack.c.l.b16 %v118
    %v566 = vunpack.c.h.b16 %v118
    %v567 = vunpack.c.l.b16 %v119
    %v568 = vunpack.c.h.b16 %v119
    %v569 = vunpack.c.l.b16 %v120
    %v570 = vunpack.c.h.b16 %v120
    %v571 = vunpack.c.l.b16 %v121
    %v572 = vunpack.c.h.b16 %v121
    %v573 = vunpack.c.l.b16 %v122
    %v574 = vunpack.c.h.b16 %v122
    %v575 = vunpack.c.l.b16 %v123
    %v576 = vunpack.c.h.b16 %v123
    %v577 = vunpack.c.l.b16 %v124
    %v578 = vunpack.c.h.b16 %v124
    %v579 = vunpack.c.l.b16 %v125
    %v580 = vunpack.c.h.b16 %v125
    %v581 = vunpack.c.l.b16 %v126
    %v582 = vunpack.c.h.b16 %v126
    %v583 = vunpack.c.l.b16 %v127
    %v584 = vunpack.c.h.b16 %v127
    %v585 = vunpack.c.l.b16 %v128
    %v586 = vunpack.c.h.b16 %v128
    %v587 = vunpack.c.l.b16 %v129
    %v588 = vunpack.c.h.b16 %v129
    %v589 = vunpack.c.l.b16 %v130
    %v590 = vunpack.c.h.b16 %v130
    %v591 = vunpack.c.l.b16 %v131
    %v592 = vunpack.c.h.b16 %v131
    %v593 = vunpack.c.l.b16 %v132
    %v594 = vunpack.c.h.b16 %v132
    %v595 = vunpack.c.l.b16 %v133
    %v596 = vunpack.c.h.b16 %v133
    %v597 = vunpack.c.l.b16 %v134
    %v598 = vunpack.c.h.b16 %v134
    %v599 = vunpack.c.l.b16 %v135
    %v600 = vunpack.c.h.b16 %v135
    %v601 = vunpack.c.l.b16 %v136
    %v602 = vunpack.c.h.b16 %v136
    %v603 = vunpack.c.l.b16 %v137
    %v604 = vunpack.c.h.b16 %v137
    %v605 = vunpack.c.l.b16 %v138
    %v606 = vunpack.c.h.b16 %v138
    %v607 = vunpack.c.l.b16 %v139
    %v608 = vunpack.c.h.b16 %v139
    %v609 = vunpack.c.l.b16 %v140
    %v610 = vunpack.c.h.b16 %v140
    %v611 = vunpack.c.l.b16 %v141
    %v612 = vunpack.c.h.b16 %v141
    %v613 = vunpack.c.l.b16 %v142
    %v614 = vunpack.c.h.b16 %v142
    %v615 = vunpack.c.l.b16 %v143
    %v616 = vunpack.c.h.b16 %v143
    %v617 = vunpack.c.l.b16 %v144
    %v618 = vunpack.c.h.b16 %v144
    %v619 = vunpack.c.l.b16 %v145
    %v620 = vunpack.c.h.b16 %v145
    %v621 = vunpack.c.l.b16 %v146
    %v622 = vunpack.c.h.b16 %v146
    %v623 = vunpack.c.l.b16 %v147
    %v624 = vunpack.c.h.b16 %v147
    %v625 = vunpack.c.l.b16 %v148
    %v626 = vunpack.c.h.b16 %v148
    %v627 = vunpack.c.l.b16 %v149
    %v628 = vunpack.c.h.b16 %v149
    %v629 = vunpack.c.l.b16 %v150
    %v630 = vunpack.c.h.b16 %v150
    %v631 = vunpack.c.l.b16 %v151
    %v632 = vunpack.c.h.b16 %v151
    %v633 = vunpack.c.l.b16 %v152
    %v634 = vunpack.c.h.b16 %v152
    %v635 = vunpack.c.l.b16 %v153
    %v636 = vunpack.c.h.b16 %v153
    %v637 = vunpack.c.l.b16 %v154
    %v638 = vunpack.c.h.b16 %v154
    %v639 = vunpack.c.l.b16 %v155
    %v640 = vunpack.c.h.b16 %v155
    %v641 = vunpack.c.l.b16 %v156
    %v642 = vunpack.c.h.b16 %v156
    %v643 = vunpack.c.l.b16 %v157
    %v644 = vunpack.c.h.b16 %v157
    %v645 = vunpack.c.l.b16 %v158
    %v646 = vunpack.c.h.b16 %v158
    %v647 = vunpack.c.l.b16 %v159
    %v648 = vunpack.c.h.b16 %v159
    %v649 = vunpack.c.l.b16 %v160
    %v650 = vunpack.c.h.b16 %v160
    %v651 = vunpack.c.l.b16 %v161
    %v652 = vunpack.c.h.b16 %v161
    %v653 = vunpack.c.l.b16 %v162
    %v654 = vunpack.c.h.b16 %v162
    %v655 = vunpack.c.l.b16 %v163
    %v656 = vunpack.c.h.b16 %v163
    %v657 = vunpack.c.l.b16 %v164
    %v658 = vunpack.c.h.b16 %v164
    %v659 = vunpack.c.l.b16 %v165
    %v660 = vunpack.c.h.b16 %v165
    %v661 = vunpack.c.l.b16 %v166
    %v662 = vunpack.c.h.b16 %v166
    %v663 = vunpack.c.l.b16 %v167
    %v664 = vunpack.c.h.b16 %v167
    %v665 = vunpack.c.l.b16 %v168
    %v666 = vunpack.c.h.b16 %v168
    %v667 = vunpack.c.l.b16 %v169
    %v668 = vunpack.c.h.b16 %v169
    %v669 = vunpack.c.l.b16 %v170
    %v670 = vunpack.c.h.b16 %v170
    %v671 = vunpack.c.l.b16 %v171
    %v672 = vunpack.c.h.b16 %v171
    %v673 = vunpack.c.l.b16 %v172
    %v674 = vunpack.c.h.b16 %v172
    %v675 = vunpack.c.l.b16 %v173
    %v676 = vunpack.c.h.b16 %v173
    %v677 = vunpack.c.l.b16 %v174
    %v678 = vunpack.c.h.b16 %v174
    %v679 = vunpack.c.l.b16 %v175
    %v680 = vunpack.c.h.b16 %v175
    %v681 = vunpack.c.l.b16 %v176
    %v682 = vunpack.c.h.b16 %v176
    %v683 = vunpack.c.l.b16 %v177
    %v684 = vunpack.c.h.b16 %v177
    %v685 = vunpack.c.l.b16 %v178
    %v686 = vunpack.c.h.b16 %v178
    %v687 = vunpack.c.l.b16 %v179
    %v688 = vunpack.c.h.b16 %v179
    %v689 = vunpack.c.l.b16 %v180
    %v690 = vunpack.c.h.b16 %v180
    %v691 = vunpack.c.l.b16 %v181
    %v692 = vunpack.c.h.b16 %v181
    %v693 = vunpack.c.l.b16 %v182
    %v694 = vunpack.c.h.b16 %v182
    %v695 = vunpack.c.l.b16 %v183
    %v696 = vunpack.c.h.b16 %v183
    %v697 = vunpack.c.l.b16 %v184
    %v698 = vunpack.c.h.b16 %v184
    %v699 = vunpack.c.l.b16 %v185
    %v700 = vunpack.c.h.b16 %v185
    %v701 = vunpack.c.l.b16 %v186
    %v702 = vunpack.c.h.b16 %v186
    %v703 = vunpack.c.l.b16 %v187
    %v704 = vunpack.c.h.b16 %v187
    %v705 = vunpack.c.l.b16 %v188
    %v706 = vunpack.c.h.b16 %v188
    %v707 = vunpack.c.l.b16 %v189
    %v708 = vunpack.c.h.b16 %v189
    %v709 = vunpack.c.l.b16 %v190
    %v710 = vunpack.c.h.b16 %v190
    %v711 = vunpack.c.l.b16 %v191
    %v712 = vunpack.c.h.b16 %v191
    %v713 = vunpack.c.l.b16 %v192
    %v714 = vunpack.c.h.b16 %v192
    %v715 = vunpack.c.l.b16 %v193
    %v716 = vunpack.c.h.b16 %v193
    %v717 = vunpack.c.l.b16 %v194
    %v718 = vunpack.c.h.b16 %v194
    %v719 = vunpack.c.l.b16 %v195
    %v720 = vunpack.c.h.b16 %v195
    %v721 = vunpack.c.l.b16 %v196
    %v722 = vunpack.c.h.b16 %v196
    %v723 = vunpack.c.l.b16 %v197
    %v724 = vunpack.c.h.b16 %v197
    %v725 = vunpack.c.l.b16 %v198
    %v726 = vunpack.c.h.b16 %v198
    %v727 = vunpack.c.l.b16 %v199
    %v728 = vunpack.c.h.b16 %v199
    %v729 = vunpack.c.l.b16 %v200
    %v730 = vunpack.c.h.b16 %v200
    %v731 = vunpack.c.l.b16 %v201
    %v732 = vunpack.c.h.b16 %v201
    %v733 = vunpack.c.l.b16 %v202
    %v734 = vunpack.c.h.b16 %v202
    %v735 = vunpack.c.l.b16 %v203
    %v736 = vunpack.c.h.b16 %v203
    %v737 = vunpack.c.l.b16 %v204
    %v738 = vunpack.c.h.b16 %v204
    %v739 = vunpack.c.l.b16 %v205
    %v740 = vunpack.c.h.b16 %v205
    %v741 = vunpack.c.l.b16 %v206
    %v742 = vunpack.c.h.b16 %v206
    %v743 = vunpack.c.l.b16 %v207
    %v744 = vunpack.c.h.b16 %v207
    %v745 = vunpack.c.l.b16 %v208
    %v746 = vunpack.c.h.b16 %v208
    %v747 = vunpack.c.l.b16 %v209
    %v748 = vunpack.c.h.b16 %v209
    %v749 = vunpack.c.l.b16 %v210
    %v750 = vunpack.c.h.b16 %v210
    %v751 = vunpack.c.l.b16 %v211
    %v752 = vunpack.c.h.b16 %v211
    %v753 = vunpack.c.l.b16 %v212
    %v754 = vunpack.c.h.b16 %v212
    %v755 = vunpack.c.l.b16 %v213
    %v756 = vunpack.c.h.b16 %v213
    %v757 = vunpack.c.l.b16 %v214
    %v758 = vunpack.c.h.b16 %v214
    %v759 = vunpack.c.l.b16 %v215
    %v760 = vunpack.c.h.b16 %v215
    %v761 = vunpack.c.l.b16 %v216
    %v762 = vunpack.c.h.b16 %v216
    %v763 = vunpack.c.l.b16 %v217
    %v764 = vunpack.c.h.b16 %v217
    %v765 = vunpack.c.l.b16 %v218
    %v766 = vunpack.c.h.b16 %v218
    %v767 = vunpack.c.l.b16 %v219
    %v768 = vunpack.c.h.b16 %v219
    %v769 = vunpack.c.l.b16 %v220
    %v770 = vunpack.c.h.b16 %v220
    %v771 = vunpack.c.l.b16 %v221
    %v772 = vunpack.c.h.b16 %v221
    %v773 = vunpack.c.l.b16 %v222
    %v774 = vunpack.c.h.b16 %v222
    %v775 = vunpack.c.l.b16 %v223
    %v776 = vunpack.c.h.b16 %v223
    %v777 = vunpack.c.l.b16 %v224
    %v778 = vunpack.c.h.b16 %v224
    %v779 = vunpack.c.l.b16 %v225
    %v780 = vunpack.c.h.b16 %v225
    %v781 = vunpack.c.l.b16 %v226
    %v782 = vunpack.c.h.b16 %v226
    %v783 = vunpack.c.l.b16 %v227
    %v784 = vunpack.c.h.b16 %v227
    %v785 = vunpack.c.l.b16 %v228
    %v786 = vunpack.c.h.b16 %v228
    %v787 = vunpack.c.l.b16 %v229
    %v788 = vunpack.c.h.b16 %v229
    %v789 = vunpack.c.l.b16 %v230
    %v790 = vunpack.c.h.b16 %v230
    %v791 = vunpack.c.l.b16 %v231
    %v792 = vunpack.c.h.b16 %v231
    %v793 = vunpack.c.l.b16 %v232
    %v794 = vunpack.c.h.b16 %v232
    %v795 = vunpack.c.l.b16 %v233
    %v796 = vunpack.c.h.b16 %v233
    %v797 = vunpack.c.l.b16 %v234
    %v798 = vunpack.c.h.b16 %v234
    %v799 = vunpack.c.l.b16 %v235
    %v800 = vunpack.c.h.b16 %v235
    %v801 = vunpack.c.l.b16 %v236
    %v802 = vunpack.c.h.b16 %v236
    %v803 = vunpack.c.l.b16 %v237
    %v804 = vunpack.c.h.b16 %v237
    %v805 = vunpack.c.l.b16 %v238
    %v806 = vunpack.c.h.b16 %v238
    %v807 = vunpack.c.l.b16 %v239
    %v808 = vunpack.c.h.b16 %v239
    %v809 = vunpack.c.l.b16 %v240
    %v810 = vunpack.c.h.b16 %v240
    %v811 = vunpack.c.l.b16 %v241
    %v812 = vunpack.c.h.b16 %v241
    %v813 = vunpack.c.l.b16 %v242
    %v814 = vunpack.c.h.b16 %v242
    %v815 = vunpack.c.l.b16 %v243
    %v816 = vunpack.c.h.b16 %v243
    %v817 = vunpack.c.l.b16 %v244
    %v818 = vunpack.c.h.b16 %v244
    %v819 = vunpack.c.l.b16 %v245
    %v820 = vunpack.c.h.b16 %v245
    %v821 = vunpack.c.l.b16 %v246
    %v822 = vunpack.c.h.b16 %v246
    %v823 = vunpack.c.l.b16 %v247
    %v824 = vunpack.c.h.b16 %v247
    %v825 = vunpack.c.l.b16 %v248
    %v826 = vunpack.c.h.b16 %v248
    %v827 = vunpack.c.l.b16 %v249
    %v828 = vunpack.c.h.b16 %v249
    %v829 = vunpack.c.l.b16 %v250
    %v830 = vunpack.c.h.b16 %v250
    %v831 = vunpack.c.l.b16 %v251
    %v832 = vunpack.c.h.b16 %v251
    %v833 = vunpack.c.l.b16 %v252
    %v834 = vunpack.c.h.b16 %v252
    %v835 = vunpack.c.l.b16 %v253
    %v836 = vunpack.c.h.b16 %v253
    %v837 = vunpack.c.l.b16 %v254
    %v838 = vunpack.c.h.b16 %v254
    %v839 = vunpack.c.l.b16 %v255
    %v840 = vunpack.c.h.b16 %v255
    %v841 = vunpack.c.l.b16 %v256
    %v842 = vunpack.c.h.b16 %v256
    %v843 = vunpack.c.l.b16 %v257
    %v844 = vunpack.c.h.b16 %v257
    %v845 = vunpack.c.l.b16 %v258
    %v846 = vunpack.c.h.b16 %v258
    %v847 = vunpack.c.l.b16 %v259
    %v848 = vunpack.c.h.b16 %v259
    %v849 = vunpack.c.l.b16 %v260
    %v850 = vunpack.c.h.b16 %v260
    %v851 = vunpack.c.l.b16 %v261
    %v852 = vunpack.c.h.b16 %v261
    %v853 = vunpack.c.l.b16 %v262
    %v854 = vunpack.c.h.b16 %v262
    %v855 = vunpack.c.l.b16 %v263
    %v856 = vunpack.c.h.b16 %v263
    %v857 = vunpack.c.l.b16 %v264
    %v858 = vunpack.c.h.b16 %v264
    %v859 = vunpack.c.l.b16 %v265
    %v860 = vunpack.c.h.b16 %v265
    %v861 = vunpack.c.l.b16 %v266
    %v862 = vunpack.c.h.b16 %v266
    %v863 = vunpack.c.l.b16 %v267
    %v864 = vunpack.c.h.b16 %v267
    %v865 = vunpack.c.l.b16 %v268
    %v866 = vunpack.c.h.b16 %v268
    %v867 = vunpack.c.l.b16 %v269
    %v868 = vunpack.c.h.b16 %v269
    %v869 = vunpack.c.l.b16 %v270
    %v870 = vunpack.c.h.b16 %v270
    %v871 = vunpack.c.l.b16 %v271
    %v872 = vunpack.c.h.b16 %v271
    %v873 = vunpack.c.l.b16 %v272
    %v874 = vunpack.c.h.b16 %v272
    %v875 = vunpack.c.l.b16 %v273
    %v876 = vunpack.c.h.b16 %v273
    %v877 = vunpack.c.l.b16 %v274
    %v878 = vunpack.c.h.b16 %v274
    %v879 = vunpack.c.l.b16 %v275
    %v880 = vunpack.c.h.b16 %v275
    %v881 = vunpack.c.l.b16 %v276
    %v882 = vunpack.c.h.b16 %v276
    %v883 = vunpack.c.l.b16 %v277
    %v884 = vunpack.c.h.b16 %v277
    %v885 = vunpack.c.l.b16 %v278
    %v886 = vunpack.c.h.b16 %v278
    %v887 = vunpack.c.l.b16 %v279
    %v888 = vunpack.c.h.b16 %v279
    %v889 = vunpack.c.l.b16 %v280
    %v890 = vunpack.c.h.b16 %v280
    %v891 = vunpack.c.l.b16 %v281
    %v892 = vunpack.c.h.b16 %v281
    %v893 = vunpack.c.l.b16 %v282
    %v894 = vunpack.c.h.b16 %v282
    %v895 = vunpack.c.l.b16 %v283
    %v896 = vunpack.c.h.b16 %v283
    %v897 = vunpack.c.l.b16 %v284
    %v898 = vunpack.c.h.b16 %v284
    %v899 = vunpack.c.l.b16 %v285
    %v900 = vunpack.c.h.b16 %v285
    %v901 = vunpack.c.l.b16 %v286
    %v902 = vunpack.c.h.b16 %v286
    %v903 = vunpack.c.l.b16 %v287
    %v904 = vunpack.c.h.b16 %v287
    %v905 = vunpack.c.l.b16 %v288
    %v906 = vunpack.c.h.b16 %v288
    %v907 = vunpack.c.l.b16 %v289
    %v908 = vunpack.c.h.b16 %v289
    %v909 = vunpack.c.l.b16 %v290
    %v910 = vunpack.c.h.b16 %v290
    %v911 = vunpack.c.l.b16 %v291
    %v912 = vunpack.c.h.b16 %v291
    %v913 = vunpack.c.l.b16 %v292
    %v914 = vunpack.c.h.b16 %v292
    %v915 = vunpack.c.l.b16 %v293
    %v916 = vunpack.c.h.b16 %v293
    %v917 = vunpack.c.l.b16 %v294
    %v918 = vunpack.c.h.b16 %v294
    %v919 = vunpack.c.l.b16 %v295
    %v920 = vunpack.c.h.b16 %v295
    %v921 = vunpack.c.l.b16 %v296
    %v922 = vunpack.c.h.b16 %v296
    %v923 = vunpack.c.l.b16 %v297
    %v924 = vunpack.c.h.b16 %v297
    %v925 = vunpack.c.l.b16 %v298
    %v926 = vunpack.c.h.b16 %v298
    %v927 = vunpack.c.l.b16 %v299
    %v928 = vunpack.c.h.b16 %v299
    %v929 = vunpack.c.l.b16 %v300
    %v930 = vunpack.c.h.b16 %v300
    %v931 = vunpack.c.l.b16 %v301
    %v932 = vunpack.c.h.b16 %v301
    %v933 = vunpack.c.l.b16 %v302
    %v934 = vunpack.c.h.b16 %v302
    %v935 = vunpack.c.l.b16 %v303
    %v936 = vunpack.c.h.b16 %v303
    %v937 = vunpack.c.l.b16 %v304
    %v938 = vunpack.c.h.b16 %v304
    %v939 = vpack.c.b16 %v563, %v555
    %v940 = vpack.c.b16 %v564, %v556
    %v941 = vpack.c.b16 %v565, %v557
    %v942 = vpack.c.b16 %v566, %v558
    %v943 = vpack.c.b16 %v567, %v559
    %v944 = vpack.c.b16 %v568, %v560
    %v945 = vpack.c.b16 %v569, %v561
    %v946 = vpack.c.b16 %v570, %v562
    %v947 = vpack.c.b16 %v579, %v571
    %v948 = vpack.c.b16 %v580, %v572
    %v949 = vpack.c.b16 %v581, %v573
    %v950 = vpack.c.b16 %v582, %v574
    %v951 = vpack.c.b16 %v583, %v575
    %v952 = vpack.c.b16 %v584, %v576
    %v953 = vpack.c.b16 %v585, %v577
    %v954 = vpack.c.b16 %v586, %v578
    %v955 = vpack.c.b16 %v595, %v587
    %v956 = vpack.c.b16 %v596, %v588
    %v957 = vpack.c.b16 %v597, %v589
    %v958 = vpack.c.b16 %v598, %v590
    %v959 = vpack.c.b16 %v599, %v591
    %v960 = vpack.c.b16 %v600, %v592
    %v961 = vpack.c.b16 %v601, %v593
    %v962 = vpack.c.b16 %v602, %v594
    %v963 = vpack.c.b16 %v611, %v603
    %v964 = vpack.c.b16 %v612, %v604
    %v965 = vpack.c.b16 %v613, %v605
    %v966 = vpack.c.b16 %v614, %v606
    %v967 = vpack.c.b16 %v615, %v607
    %v968 = vpack.c.b16 %v616, %v608
    %v969 = vpack.c.b16 %v617, %v609
    %v970 = vpack.c.b16 %v618, %v610
    %v971 = vpack.c.b16 %v627, %v619
    %v972 = vpack.c.b16 %v628, %v620
    %v973 = vpack.c.b16 %v629, %v621
    %v974 = vpack.c.b16 %v630, %v622
    %v975 = vpack.c.b16 %v631, %v623
    %v976 = vpack.c.b16 %v632, %v624
    %v977 = vpack.c.b16 %v633, %v625
    %v978 = vpack.c.b16 %v634, %v626
    %v979 = vpack.c.b16 %v643, %v635
    %v980 = vpack.c.b16 %v644, %v636
    %v981 = vpack.c.b16 %v645, %v637
    %v982 = vpack.c.b16 %v646, %v638
    %v983 = vpack.c.b16 %v647, %v639
    %v984 = vpack.c.b16 %v648, %v640
    %v985 = vpack.c.b16 %v649, %v641
    %v986 = vpack.c.b16 %v650, %v642
    %v987 = vpack.c.b16 %v659, %v651
    %v988 = vpack.c.b16 %v660, %v652
    %v989 = vpack.c.b16 %v661, %v653
    %v990 = vpack.c.b16 %v662, %v654
    %v991 = vpack.c.b16 %v663, %v655
    %v992 = vpack.c.b16 %v664, %v656
    %v993 = vpack.c.b16 %v665, %v657
    %v994 = vpack.c.b16 %v666, %v658
    %v995 = vpack.c.b16 %v675, %v667
    %v996 = vpack.c.b16 %v676, %v668
    %v997 = vpack.c.b16 %v677, %v669
    %v998 = vpack.c.b16 %v678, %v670
    %v999 = vpack.c.b16 %v679, %v671
    %v1000 = vpack.c.b16 %v680, %v672
    %v1001 = vpack.c.b16 %v681, %v673
    %v1002 = vpack.c.b16 %v682, %v674
    %v1003 = vpack.c.b16 %v691, %v683
    %v1004 = vpack.c.b16 %v692, %v684
    %v1005 = vpack.c.b16 %v693, %v685
    %v1006 = vpack.c.b16 %v694, %v686
    %v1007 = vpack.c.b16 %v695, %v687
    %v1008 = vpack.c.b16 %v696, %v688
    %v1009 = vpack.c.b16 %v697, %v689
    %v1010 = vpack.c.b16 %v698, %v690
    %v1011 = vpack.c.b16 %v707, %v699
    %v1012 = vpack.c.b16 %v708, %v700
    %v1013 = vpack.c.b16 %v709, %v701
    %v1014 = vpack.c.b16 %v710, %v702
    %v1015 = vpack.c.b16 %v711, %v703
    %v1016 = vpack.c.b16 %v712, %v704
    %v1017 = vpack.c.b16 %v713, %v705
    %v1018 = vpack.c.b16 %v714, %v706
    %v1019 = vpack.c.b16 %v723, %v715
    %v1020 = vpack.c.b16 %v724, %v716
    %v1021 = vpack.c.b16 %v725, %v717
    %v1022 = vpack.c.b16 %v726, %v718
    %v1023 = vpack.c.b16 %v727, %v719
    %v1024 = vpack.c.b16 %v728, %v720
    %v1025 = vpack.c.b16 %v729, %v721
    %v1026 = vpack.c.b16 %v730, %v722
    %v1027 = vpack.c.b16 %v739, %v731
    %v1028 = vpack.c.b16 %v740, %v732
    %v1029 = vpack.c.b16 %v741, %v733
    %v1030 = vpack.c.b16 %v742, %v734
    %v1031 = vpack.c.b16 %v743, %v735
    %v1032 = vpack.c.b16 %v744, %v736
    %v1033 = vpack.c.b16 %v745, %v737
    %v1034 = vpack.c.b16 %v746, %v738
    %v1035 = vpack.c.b16 %v755, %v747
    %v1036 = vpack.c.b16 %v756, %v748
    %v1037 = vpack.c.b16 %v757, %v749
    %v1038 = vpack.c.b16 %v758, %v750
    %v1039 = vpack.c.b16 %v759, %v751
    %v1040 = vpack.c.b16 %v760, %v752
    %v1041 = vpack.c.b16 %v761, %v753
    %v1042 = vpack.c.b16 %v762, %v754
    %v1043 = vpack.c.b16 %v771, %v763
    %v1044 = vpack.c.b16 %v772, %v764
    %v1045 = vpack.c.b16 %v773, %v765
    %v1046 = vpack.c.b16 %v774, %v766
    %v1047 = vpack.c.b16 %v775, %v767
    %v1048 = vpack.c.b16 %v776, %v768
    %v1049 = vpack.c.b16 %v777, %v769
    %v1050 = vpack.c.b16 %v778, %v770
    %v1051 = vpack.c.b16 %v787, %v779
    %v1052 = vpack.c.b16 %v788, %v780
    %v1053 = vpack.c.b16 %v789, %v781
    %v1054 = vpack.c.b16 %v790, %v782
    %v1055 = vpack.c.b16 %v791, %v783
    %v1056 = vpack.c.b16 %v792, %v784
    %v1057 = vpack.c.b16 %v793, %v785
    %v1058 = vpack.c.b16 %v794, %v786
    %v1059 = vpack.c.b16 %v803, %v795
    %v1060 = vpack.c.b16 %v804, %v796
    %v1061 = vpack.c.b16 %v805, %v797
    %v1062 = vpack.c.b16 %v806, %v798
    %v1063 = vpack.c.b16 %v807, %v799
    %v1064 = vpack.c.b16 %v808, %v800
    %v1065 = vpack.c.b16 %v809, %v801
    %v1066 = vpack.c.b16 %v810, %v802
    %v1067 = vpack.c.b16 %v819, %v811
    %v1068 = vpack.c.b16 %v820, %v812
    %v1069 = vpack.c.b16 %v821, %v813
    %v1070 = vpack.c.b16 %v822, %v814
    %v1071 = vpack.c.b16 %v823, %v815
    %v1072 = vpack.c.b16 %v824, %v816
    %v1073 = vpack.c.b16 %v825, %v817
    %v1074 = vpack.c.b16 %v826, %v818
    %v1075 = vpack.c.b16 %v835, %v827
    %v1076 = vpack.c.b16 %v836, %v828
    %v1077 = vpack.c.b16 %v837, %v829
    %v1078 = vpack.c.b16 %v838, %v830
    %v1079 = vpack.c.b16 %v839, %v831
    %v1080 = vpack.c.b16 %v840, %v832
    %v1081 = vpack.c.b16 %v841, %v833
    %v1082 = vpack.c.b16 %v842, %v834
    %v1083 = vpack.c.b16 %v851, %v843
    %v1084 = vpack.c.b16 %v852, %v844
    %v1085 = vpack.c.b16 %v853, %v845
    %v1086 = vpack.c.b16 %v854, %v846
    %v1087 = vpack.c.b16 %v855, %v847
    %v1088 = vpack.c.b16 %v856, %v848
    %v1089 = vpack.c.b16 %v857, %v849
    %v1090 = vpack.c.b16 %v858, %v850
    %v1091 = vpack.c.b16 %v867, %v859
    %v1092 = vpack.c.b16 %v868, %v860
    %v1093 = vpack.c.b16 %v869, %v861
    %v1094 = vpack.c.b16 %v870, %v862
    %v1095 = vpack.c.b16 %v871, %v863
    %v1096 = vpack.c.b16 %v872, %v864
    %v1097 = vpack.c.b16 %v873, %v865
    %v1098 = vpack.c.b16 %v874, %v866
    %v1099 = vpack.c.b16 %v883, %v875
    %v1100 = vpack.c.b16 %v884, %v876
    %v1101 = vpack.c.b16 %v885, %v877
    %v1102 = vpack.c.b16 %v886, %v878
    %v1103 = vpack.c.b16 %v887, %v879
    %v1104 = vpack.c.b16 %v888, %v880
    %v1105 = vpack.c.b16 %v889, %v881
    %v1106 = vpack.c.b16 %v890, %v882
    %v1107 = vpack.c.b16 %v899, %v891
    %v1108 = vpack.c.b16 %v900, %v892
    %v1109 = vpack.c.b16 %v901, %v893
    %v1110 = vpack.c.b16 %v902, %v894
    %v1111 = vpack.c.b16 %v903, %v895
    %v1112 = vpack.c.b16 %v904, %v896
    %v1113 = vpack.c.b16 %v905, %v897
    %v1114 = vpack.c.b16 %v906, %v898
    %v1115 = vpack.c.b16 %v915, %v907
    %v1116 = vpack.c.b16 %v916, %v908
    %v1117 = vpack.c.b16 %v917, %v909
    %v1118 = vpack.c.b16 %v918, %v910
    %v1119 = vpack.c.b16 %v919, %v911
    %v1120 = vpack.c.b16 %v920, %v912
    %v1121 = vpack.c.b16 %v921, %v913
    %v1122 = vpack.c.b16 %v922, %v914
    %v1123 = vpack.c.b16 %v931, %v923
    %v1124 = vpack.c.b16 %v932, %v924
    %v1125 = vpack.c.b16 %v933, %v925
    %v1126 = vpack.c.b16 %v934, %v926
    %v1127 = vpack.c.b16 %v935, %v927
    %v1128 = vpack.c.b16 %v936, %v928
    %v1129 = vpack.c.b16 %v937, %v929
    %v1130 = vpack.c.b16 %v938, %v930
    %1323 = vmatprep.subr.bf16.mxu0 %v940
    %1324 = vmatpush1.bf16.msra.mxu0 %v939
    %1325 = vmatprep.subr.bf16.mxu0 %v948
    %1326 = vmatpush1.bf16.msra.mxu0 %v947
    %1327 = vmatprep.subr.bf16.mxu0 %v956
    %1328 = vmatpush1.bf16.msra.mxu0 %v955
    %1329 = vmatprep.subr.bf16.mxu0 %v964
    %1330 = vmatpush1.bf16.msra.mxu0 %v963
    %1331 = vmatprep.subr.bf16.mxu0 %v972
    %1332 = vmatpush1.bf16.msra.mxu0 %v971
    %1333 = vmatprep.subr.bf16.mxu0 %v980
    %1334 = vmatpush1.bf16.msra.mxu0 %v979
    %1335 = vmatprep.subr.bf16.mxu0 %v988
    %1336 = vmatpush1.bf16.msra.mxu0 %v987
    %1337 = vmatprep.subr.bf16.mxu0 %v996
    %1338 = vmatpush1.bf16.msra.mxu0 %v995
    %1339 = vmatprep.subr.bf16.mxu0 %v1004
    %1340 = vmatpush1.bf16.msra.mxu0 %v1003
    %1341 = vmatprep.subr.bf16.mxu0 %v1012
    %1342 = vmatpush1.bf16.msra.mxu0 %v1011
    %1343 = vmatprep.subr.bf16.mxu0 %v1020
    %1344 = vmatpush1.bf16.msra.mxu0 %v1019
    %1345 = vmatprep.subr.bf16.mxu0 %v1028
    %1346 = vmatpush1.bf16.msra.mxu0 %v1027
    %1347 = vmatprep.subr.bf16.mxu0 %v1036
    %1348 = vmatpush1.bf16.msra.mxu0 %v1035
    %1349 = vmatprep.subr.bf16.mxu0 %v1044
    %1350 = vmatpush1.bf16.msra.mxu0 %v1043
    %1351 = vmatprep.subr.bf16.mxu0 %v1052
    %1352 = vmatpush1.bf16.msra.mxu0 %v1051
    %1353 = vmatprep.subr.bf16.mxu0 %v1060
    %1354 = vmatpush1.bf16.msra.mxu0 %v1059
    %1355 = vmatprep.mubr.bf16.mxu0 %v358
    %1356 = vmatmul.mubr.bf16.gmra.mrb[0].mxu0 %v357
    %v1357 = vpop.f32.mrb[0].mxu0
    %v1358 = vadd.f32 %v310, %v1357
    %v1359 = vpop.f32.mrb[0].mxu0
    %v1360 = vadd.f32 %v314, %v1359
    %v1361 = vpop.f32.mrb[0].mxu0
    %v1362 = vadd.f32 %v310, %v1361
    %v1363 = vpop.f32.mrb[0].mxu0
    %v1364 = vadd.f32 %v314, %v1363
    %1365 = vdwg.mxu0
    %1366 = vmatprep.subr.bf16.mxu0 %v1068
    %1367 = vmatpush1.bf16.msra.mxu0 %v1067
    %1368 = vmatprep.subr.bf16.mxu0 %v1076
    %1369 = vmatpush1.bf16.msra.mxu0 %v1075
    %1370 = vmatprep.subr.bf16.mxu0 %v1084
    %1371 = vmatpush1.bf16.msra.mxu0 %v1083
    %1372 = vmatprep.subr.bf16.mxu0 %v1092
    %1373 = vmatpush1.bf16.msra.mxu0 %v1091
    %1374 = vmatprep.subr.bf16.mxu0 %v1100
    %1375 = vmatpush1.bf16.msra.mxu0 %v1099
    %1376 = vmatprep.subr.bf16.mxu0 %v1108
    %1377 = vmatpush1.bf16.msra.mxu0 %v1107
    %1378 = vmatprep.subr.bf16.mxu0 %v1116
    %1379 = vmatpush1.bf16.msra.mxu0 %v1115
    %1380 = vmatprep.subr.bf16.mxu0 %v1124
    %1381 = vmatpush1.bf16.msra.mxu0 %v1123
    %1382 = vmatprep.subr.bf16.mxu0 0
    %1383 = vmatpush1.bf16.msra.mxu0 0
    %1384 = vmatprep.subr.bf16.mxu0 0
    %1385 = vmatpush1.bf16.msra.mxu0 0
    %1386 = vmatprep.subr.bf16.mxu0 0
    %1387 = vmatpush1.bf16.msra.mxu0 0
    %1388 = vmatprep.subr.bf16.mxu0 0
    %1389 = vmatpush1.bf16.msra.mxu0 0
    %1390 = vmatprep.subr.bf16.mxu0 0
    %1391 = vmatpush1.bf16.msra.mxu0 0
    %1392 = vmatprep.subr.bf16.mxu0 0
    %1393 = vmatpush1.bf16.msra.mxu0 0
    %1394 = vmatprep.subr.bf16.mxu0 0
    %1395 = vmatpush1.bf16.msra.mxu0 0
    %1396 = vmatprep.subr.bf16.mxu0 0
    %1397 = vmatpush1.bf16.msra.mxu0 0
    %1398 = vmatprep.mubr.bf16.mxu0 0
    %1399 = vmatmul.mubr.bf16.gmra.mrb[0].mxu0 %v359
    %v1400 = vpop.f32.mrb[0].mxu0
    %v1401 = vadd.f32 %v1358, %v1400
    %v1402 = vpop.f32.mrb[0].mxu0
    %v1403 = vadd.f32 %v1360, %v1402
    %v1404 = vpop.f32.mrb[0].mxu0
    %v1405 = vadd.f32 %v1362, %v1404
    %v1406 = vpop.f32.mrb[0].mxu0
    %v1407 = vadd.f32 %v1364, %v1406
    %1408 = vdwg.mxu0
    %1409 = vmatprep.subr.bf16.mxu0 %v942
    %1410 = vmatpush1.bf16.msra.mxu0 %v941
    %1411 = vmatprep.subr.bf16.mxu0 %v950
    %1412 = vmatpush1.bf16.msra.mxu0 %v949
    %1413 = vmatprep.subr.bf16.mxu0 %v958
    %1414 = vmatpush1.bf16.msra.mxu0 %v957
    %1415 = vmatprep.subr.bf16.mxu0 %v966
    %1416 = vmatpush1.bf16.msra.mxu0 %v965
    %1417 = vmatprep.subr.bf16.mxu0 %v974
    %1418 = vmatpush1.bf16.msra.mxu0 %v973
    %1419 = vmatprep.subr.bf16.mxu0 %v982
    %1420 = vmatpush1.bf16.msra.mxu0 %v981
    %1421 = vmatprep.subr.bf16.mxu0 %v990
    %1422 = vmatpush1.bf16.msra.mxu0 %v989
    %1423 = vmatprep.subr.bf16.mxu0 %v998
    %1424 = vmatpush1.bf16.msra.mxu0 %v997
    %1425 = vmatprep.subr.bf16.mxu0 %v1006
    %1426 = vmatpush1.bf16.msra.mxu0 %v1005
    %1427 = vmatprep.subr.bf16.mxu0 %v1014
    %1428 = vmatpush1.bf16.msra.mxu0 %v1013
    %1429 = vmatprep.subr.bf16.mxu0 %v1022
    %1430 = vmatpush1.bf16.msra.mxu0 %v1021
    %1431 = vmatprep.subr.bf16.mxu0 %v1030
    %1432 = vmatpush1.bf16.msra.mxu0 %v1029
    %1433 = vmatprep.subr.bf16.mxu0 %v1038
    %1434 = vmatpush1.bf16.msra.mxu0 %v1037
    %1435 = vmatprep.subr.bf16.mxu0 %v1046
    %1436 = vmatpush1.bf16.msra.mxu0 %v1045
    %1437 = vmatprep.subr.bf16.mxu0 %v1054
    %1438 = vmatpush1.bf16.msra.mxu0 %v1053
    %1439 = vmatprep.subr.bf16.mxu0 %v1062
    %1440 = vmatpush1.bf16.msra.mxu0 %v1061
    %1441 = vmatprep.mubr.bf16.mxu0 %v358
    %1442 = vmatmul.mubr.bf16.gmra.mrb[0].mxu0 %v357
    %v1443 = vpop.f32.mrb[0].mxu0
    %v1444 = vadd.f32 %v318, %v1443
    %v1445 = vpop.f32.mrb[0].mxu0
    %v1446 = vadd.f32 %v322, %v1445
    %v1447 = vpop.f32.mrb[0].mxu0
    %v1448 = vadd.f32 %v318, %v1447
    %v1449 = vpop.f32.mrb[0].mxu0
    %v1450 = vadd.f32 %v322, %v1449
    %1451 = vdwg.mxu0
    %1452 = vmatprep.subr.bf16.mxu0 %v1070
    %1453 = vmatpush1.bf16.msra.mxu0 %v1069
    %1454 = vmatprep.subr.bf16.mxu0 %v1078
    %1455 = vmatpush1.bf16.msra.mxu0 %v1077
    %1456 = vmatprep.subr.bf16.mxu0 %v1086
    %1457 = vmatpush1.bf16.msra.mxu0 %v1085
    %1458 = vmatprep.subr.bf16.mxu0 %v1094
    %1459 = vmatpush1.bf16.msra.mxu0 %v1093
    %1460 = vmatprep.subr.bf16.mxu0 %v1102
    %1461 = vmatpush1.bf16.msra.mxu0 %v1101
    %1462 = vmatprep.subr.bf16.mxu0 %v1110
    %1463 = vmatpush1.bf16.msra.mxu0 %v1109
    %1464 = vmatprep.subr.bf16.mxu0 %v1118
    %1465 = vmatpush1.bf16.msra.mxu0 %v1117
    %1466 = vmatprep.subr.bf16.mxu0 %v1126
    %1467 = vmatpush1.bf16.msra.mxu0 %v1125
    %1468 = vmatprep.subr.bf16.mxu0 0
    %1469 = vmatpush1.bf16.msra.mxu0 0
    %1470 = vmatprep.subr.bf16.mxu0 0
    %1471 = vmatpush1.bf16.msra.mxu0 0
    %1472 = vmatprep.subr.bf16.mxu0 0
    %1473 = vmatpush1.bf16.msra.mxu0 0
    %1474 = vmatprep.subr.bf16.mxu0 0
    %1475 = vmatpush1.bf16.msra.mxu0 0
    %1476 = vmatprep.subr.bf16.mxu0 0
    %1477 = vmatpush1.bf16.msra.mxu0 0
    %1478 = vmatprep.subr.bf16.mxu0 0
    %1479 = vmatpush1.bf16.msra.mxu0 0
    %1480 = vmatprep.subr.bf16.mxu0 0
    %1481 = vmatpush1.bf16.msra.mxu0 0
    %1482 = vmatprep.subr.bf16.mxu0 0
    %1483 = vmatpush1.bf16.msra.mxu0 0
    %1484 = vmatprep.mubr.bf16.mxu0 0
    %1485 = vmatmul.mubr.bf16.gmra.mrb[0].mxu0 %v359
    %v1486 = vpop.f32.mrb[0].mxu0
    %v1487 = vadd.f32 %v1444, %v1486
    %v1488 = vpop.f32.mrb[0].mxu0
    %v1489 = vadd.f32 %v1446, %v1488
    %v1490 = vpop.f32.mrb[0].mxu0
    %v1491 = vadd.f32 %v1448, %v1490
    %v1492 = vpop.f32.mrb[0].mxu0
    %v1493 = vadd.f32 %v1450, %v1492
    %1494 = vdwg.mxu0
    %1495 = vmatprep.subr.bf16.mxu0 %v944
    %1496 = vmatpush1.bf16.msra.mxu0 %v943
    %1497 = vmatprep.subr.bf16.mxu0 %v952
    %1498 = vmatpush1.bf16.msra.mxu0 %v951
    %1499 = vmatprep.subr.bf16.mxu0 %v960
    %1500 = vmatpush1.bf16.msra.mxu0 %v959
    %1501 = vmatprep.subr.bf16.mxu0 %v968
    %1502 = vmatpush1.bf16.msra.mxu0 %v967
    %1503 = vmatprep.subr.bf16.mxu0 %v976
    %1504 = vmatpush1.bf16.msra.mxu0 %v975
    %1505 = vmatprep.subr.bf16.mxu0 %v984
    %1506 = vmatpush1.bf16.msra.mxu0 %v983
    %1507 = vmatprep.subr.bf16.mxu0 %v992
    %1508 = vmatpush1.bf16.msra.mxu0 %v991
    %1509 = vmatprep.subr.bf16.mxu0 %v1000
    %1510 = vmatpush1.bf16.msra.mxu0 %v999
    %1511 = vmatprep.subr.bf16.mxu0 %v1008
    %1512 = vmatpush1.bf16.msra.mxu0 %v1007
    %1513 = vmatprep.subr.bf16.mxu0 %v1016
    %1514 = vmatpush1.bf16.msra.mxu0 %v1015
    %1515 = vmatprep.subr.bf16.mxu0 %v1024
    %1516 = vmatpush1.bf16.msra.mxu0 %v1023
    %1517 = vmatprep.subr.bf16.mxu0 %v1032
    %1518 = vmatpush1.bf16.msra.mxu0 %v1031
    %1519 = vmatprep.subr.bf16.mxu0 %v1040
    %1520 = vmatpush1.bf16.msra.mxu0 %v1039
    %1521 = vmatprep.subr.bf16.mxu0 %v1048
    %1522 = vmatpush1.bf16.msra.mxu0 %v1047
    %1523 = vmatprep.subr.bf16.mxu0 %v1056
    %1524 = vmatpush1.bf16.msra.mxu0 %v1055
    %1525 = vmatprep.subr.bf16.mxu0 %v1064
    %1526 = vmatpush1.bf16.msra.mxu0 %v1063
    %1527 = vmatprep.mubr.bf16.mxu0 %v358
    %1528 = vmatmul.mubr.bf16.gmra.mrb[0].mxu0 %v357
    %v1529 = vpop.f32.mrb[0].mxu0
    %v1530 = vadd.f32 %v326, %v1529
    %v1531 = vpop.f32.mrb[0].mxu0
    %v1532 = vadd.f32 %v330, %v1531
    %v1533 = vpop.f32.mrb[0].mxu0
    %v1534 = vadd.f32 %v326, %v1533
    %v1535 = vpop.f32.mrb[0].mxu0
    %v1536 = vadd.f32 %v330, %v1535
    %1537 = vdwg.mxu0
    %1538 = vmatprep.subr.bf16.mxu0 %v1072
    %1539 = vmatpush1.bf16.msra.mxu0 %v1071
    %1540 = vmatprep.subr.bf16.mxu0 %v1080
    %1541 = vmatpush1.bf16.msra.mxu0 %v1079
    %1542 = vmatprep.subr.bf16.mxu0 %v1088
    %1543 = vmatpush1.bf16.msra.mxu0 %v1087
    %1544 = vmatprep.subr.bf16.mxu0 %v1096
    %1545 = vmatpush1.bf16.msra.mxu0 %v1095
    %1546 = vmatprep.subr.bf16.mxu0 %v1104
    %1547 = vmatpush1.bf16.msra.mxu0 %v1103
    %1548 = vmatprep.subr.bf16.mxu0 %v1112
    %1549 = vmatpush1.bf16.msra.mxu0 %v1111
    %1550 = vmatprep.subr.bf16.mxu0 %v1120
    %1551 = vmatpush1.bf16.msra.mxu0 %v1119
    %1552 = vmatprep.subr.bf16.mxu0 %v1128
    %1553 = vmatpush1.bf16.msra.mxu0 %v1127
    %1554 = vmatprep.subr.bf16.mxu0 0
    %1555 = vmatpush1.bf16.msra.mxu0 0
    %1556 = vmatprep.subr.bf16.mxu0 0
    %1557 = vmatpush1.bf16.msra.mxu0 0
    %1558 = vmatprep.subr.bf16.mxu0 0
    %1559 = vmatpush1.bf16.msra.mxu0 0
    %1560 = vmatprep.subr.bf16.mxu0 0
    %1561 = vmatpush1.bf16.msra.mxu0 0
    %1562 = vmatprep.subr.bf16.mxu0 0
    %1563 = vmatpush1.bf16.msra.mxu0 0
    %1564 = vmatprep.subr.bf16.mxu0 0
    %1565 = vmatpush1.bf16.msra.mxu0 0
    %1566 = vmatprep.subr.bf16.mxu0 0
    %1567 = vmatpush1.bf16.msra.mxu0 0
    %1568 = vmatprep.subr.bf16.mxu0 0
    %1569 = vmatpush1.bf16.msra.mxu0 0
    %1570 = vmatprep.mubr.bf16.mxu0 0
    %1571 = vmatmul.mubr.bf16.gmra.mrb[0].mxu0 %v359
    %v1572 = vpop.f32.mrb[0].mxu0
    %v1573 = vadd.f32 %v1530, %v1572
    %v1574 = vpop.f32.mrb[0].mxu0
    %v1575 = vadd.f32 %v1532, %v1574
    %v1576 = vpop.f32.mrb[0].mxu0
    %v1577 = vadd.f32 %v1534, %v1576
    %v1578 = vpop.f32.mrb[0].mxu0
    %v1579 = vadd.f32 %v1536, %v1578
    %1580 = vdwg.mxu0
    %1581 = vmatprep.subr.bf16.mxu0 %v946
    %1582 = vmatpush1.bf16.msra.mxu0 %v945
    %1583 = vmatprep.subr.bf16.mxu0 %v954
    %1584 = vmatpush1.bf16.msra.mxu0 %v953
    %1585 = vmatprep.subr.bf16.mxu0 %v962
    %1586 = vmatpush1.bf16.msra.mxu0 %v961
    %1587 = vmatprep.subr.bf16.mxu0 %v970
    %1588 = vmatpush1.bf16.msra.mxu0 %v969
    %1589 = vmatprep.subr.bf16.mxu0 %v978
    %1590 = vmatpush1.bf16.msra.mxu0 %v977
    %1591 = vmatprep.subr.bf16.mxu0 %v986
    %1592 = vmatpush1.bf16.msra.mxu0 %v985
    %1593 = vmatprep.subr.bf16.mxu0 %v994
    %1594 = vmatpush1.bf16.msra.mxu0 %v993
    %1595 = vmatprep.subr.bf16.mxu0 %v1002
    %1596 = vmatpush1.bf16.msra.mxu0 %v1001
    %1597 = vmatprep.subr.bf16.mxu0 %v1010
    %1598 = vmatpush1.bf16.msra.mxu0 %v1009
    %1599 = vmatprep.subr.bf16.mxu0 %v1018
    %1600 = vmatpush1.bf16.msra.mxu0 %v1017
    %1601 = vmatprep.subr.bf16.mxu0 %v1026
    %1602 = vmatpush1.bf16.msra.mxu0 %v1025
    %1603 = vmatprep.subr.bf16.mxu0 %v1034
    %1604 = vmatpush1.bf16.msra.mxu0 %v1033
    %1605 = vmatprep.subr.bf16.mxu0 %v1042
    %1606 = vmatpush1.bf16.msra.mxu0 %v1041
    %1607 = vmatprep.subr.bf16.mxu0 %v1050
    %1608 = vmatpush1.bf16.msra.mxu0 %v1049
    %1609 = vmatprep.subr.bf16.mxu0 %v1058
    %1610 = vmatpush1.bf16.msra.mxu0 %v1057
    %1611 = vmatprep.subr.bf16.mxu0 %v1066
    %1612 = vmatpush1.bf16.msra.mxu0 %v1065
    %1613 = vmatprep.mubr.bf16.mxu0 %v358
    %1614 = vmatmul.mubr.bf16.gmra.mrb[0].mxu0 %v357
    %v1615 = vpop.f32.mrb[0].mxu0
    %v1616 = vadd.f32 %v334, %v1615
    %v1617 = vpop.f32.mrb[0].mxu0
    %v1618 = vadd.f32 %v338, %v1617
    %v1619 = vpop.f32.mrb[0].mxu0
    %v1620 = vadd.f32 %v334, %v1619
    %v1621 = vpop.f32.mrb[0].mxu0
    %v1622 = vadd.f32 %v338, %v1621
    %1623 = vdwg.mxu0
    %1624 = vmatprep.subr.bf16.mxu0 %v1074
    %1625 = vmatpush1.bf16.msra.mxu0 %v1073
    %1626 = vmatprep.subr.bf16.mxu0 %v1082
    %1627 = vmatpush1.bf16.msra.mxu0 %v1081
    %1628 = vmatprep.subr.bf16.mxu0 %v1090
    %1629 = vmatpush1.bf16.msra.mxu0 %v1089
    %1630 = vmatprep.subr.bf16.mxu0 %v1098
    %1631 = vmatpush1.bf16.msra.mxu0 %v1097
    %1632 = vmatprep.subr.bf16.mxu0 %v1106
    %1633 = vmatpush1.bf16.msra.mxu0 %v1105
    %1634 = vmatprep.subr.bf16.mxu0 %v1114
    %1635 = vmatpush1.bf16.msra.mxu0 %v1113
    %1636 = vmatprep.subr.bf16.mxu0 %v1122
    %1637 = vmatpush1.bf16.msra.mxu0 %v1121
    %1638 = vmatprep.subr.bf16.mxu0 %v1130
    %1639 = vmatpush1.bf16.msra.mxu0 %v1129
    %1640 = vmatprep.subr.bf16.mxu0 0
    %1641 = vmatpush1.bf16.msra.mxu0 0
    %1642 = vmatprep.subr.bf16.mxu0 0
    %1643 = vmatpush1.bf16.msra.mxu0 0
    %1644 = vmatprep.subr.bf16.mxu0 0
    %1645 = vmatpush1.bf16.msra.mxu0 0
    %1646 = vmatprep.subr.bf16.mxu0 0
    %1647 = vmatpush1.bf16.msra.mxu0 0
    %1648 = vmatprep.subr.bf16.mxu0 0
    %1649 = vmatpush1.bf16.msra.mxu0 0
    %1650 = vmatprep.subr.bf16.mxu0 0
    %1651 = vmatpush1.bf16.msra.mxu0 0
    %1652 = vmatprep.subr.bf16.mxu0 0
    %1653 = vmatpush1.bf16.msra.mxu0 0
    %1654 = vmatprep.subr.bf16.mxu0 0
    %1655 = vmatpush1.bf16.msra.mxu0 0
    %1656 = vmatprep.mubr.bf16.mxu0 0
    %1657 = vmatmul.mubr.bf16.gmra.mrb[0].mxu0 %v359
    %v1658 = vpop.f32.mrb[0].mxu0
    %v1659 = vadd.f32 %v1616, %v1658
    %v1660 = vpop.f32.mrb[0].mxu0
    %v1661 = vadd.f32 %v1618, %v1660
    %v1662 = vpop.f32.mrb[0].mxu0
    %v1663 = vadd.f32 %v1620, %v1662
    %v1664 = vpop.f32.mrb[0].mxu0
    %v1665 = vadd.f32 %v1622, %v1664
    %1666 = vdwg.mxu0
    %v1667 = vmax.f32 %v1401, 0.0
    %v1668 = vmax.f32 %v1403, 0.0
    %v1669 = vmax.f32 %v1487, 0.0
    %v1670 = vmax.f32 %v1489, 0.0
    %v1671 = vmax.f32 %v1573, 0.0
    %v1672 = vmax.f32 %v1575, 0.0
    %v1673 = vmax.f32 %v1659, 0.0
    %v1674 = vmax.f32 %v1661, 0.0
    %v1675 = vmax.f32 %v1405, 0.0
    %v1676 = vmax.f32 %v1407, 0.0
    %v1677 = vmax.f32 %v1491, 0.0
    %v1678 = vmax.f32 %v1493, 0.0
    %v1679 = vmax.f32 %v1577, 0.0
    %v1680 = vmax.f32 %v1579, 0.0
    %v1681 = vmax.f32 %v1663, 0.0
    %v1682 = vmax.f32 %v1665, 0.0
    %v1683 = vpack.c.bf16 %v1675, %v1667
    %v1684 = vpack.c.bf16 %v1676, %v1668
    %v1685 = vpack.c.bf16 %v1677, %v1669
    %v1686 = vpack.c.bf16 %v1678, %v1670
    %v1687 = vpack.c.bf16 %v1679, %v1671
    %v1688 = vpack.c.bf16 %v1680, %v1672
    %v1689 = vpack.c.bf16 %v1681, %v1673
    %v1690 = vpack.c.bf16 %v1682, %v1674
    %v1691 = vld [vmem:[#allocation7] sm:$0xff]
    %v1692 = vld [vmem:[#allocation7 + $0x8] sm:$0xff]
    %v1693 = vld [vmem:[#allocation7 + $0x10] sm:$0xff]
    %v1694 = vld [vmem:[#allocation7 + $0x18] sm:$0xff]
    %v1695 = vld [vmem:[#allocation7 + $0x20] sm:$0xff]
    %v1696 = vld [vmem:[#allocation7 + $0x28] sm:$0xff]
    %v1697 = vld [vmem:[#allocation7 + $0x30] sm:$0xff]
    %v1698 = vld [vmem:[#allocation7 + $0x38] sm:$0xff]
    %v1699 = vld [vmem:[#allocation7 + $0x40] sm:$0xff]
    %v1700 = vld [vmem:[#allocation7 + $0x48] sm:$0xff]
    %v1701 = vld [vmem:[#allocation7 + $0x50] sm:$0xff]
    %v1702 = vld [vmem:[#allocation7 + $0x58] sm:$0xff]
    %v1703 = vld [vmem:[#allocation7 + $0x60] sm:$0xff]
    %v1704 = vld [vmem:[#allocation7 + $0x68] sm:$0xff]
    %v1705 = vld [vmem:[#allocation7 + $0x70] sm:$0xff]
    %v1706 = vld [vmem:[#allocation7 + $0x78] sm:$0xff]
    %v1707 = vld [vmem:[#allocation7 + $0x80] sm:$0xff]
    %v1708 = vld [vmem:[#allocation7 + $0x88] sm:$0xff]
    %v1709 = vld [vmem:[#allocation7 + $0x90] sm:$0xff]
    %v1710 = vld [vmem:[#allocation7 + $0x98] sm:$0xff]
    %v1711 = vld [vmem:[#allocation7 + $0xa0] sm:$0xff]
    %v1712 = vld [vmem:[#allocation7 + $0xa8] sm:$0xff]
    %v1713 = vld [vmem:[#allocation7 + $0xb0] sm:$0xff]
    %v1714 = vld [vmem:[#allocation7 + $0xb8] sm:$0xff]
    %v1715 = vld [vmem:[#allocation7 + $0xc0] sm:$0xff]
    %v1716 = vld [vmem:[#allocation7 + $0xc8] sm:$0xff]
    %v1717 = vld [vmem:[#allocation7 + $0xd0] sm:$0xff]
    %v1718 = vld [vmem:[#allocation7 + $0xd8] sm:$0xff]
    %v1719 = vld [vmem:[#allocation7 + $0xe0] sm:$0xff]
    %v1720 = vld [vmem:[#allocation7 + $0xe8] sm:$0xff]
    %v1721 = vld [vmem:[#allocation7 + $0xf0] sm:$0xff]
    %v1722 = vld [vmem:[#allocation7 + $0xf8] sm:$0xff]
    %v1723 = vld [vmem:[#allocation7 + $0x100] sm:$0xff]
    %v1724 = vld [vmem:[#allocation7 + $0x108] sm:$0xff]
    %v1725 = vld [vmem:[#allocation7 + $0x110] sm:$0xff]
    %v1726 = vld [vmem:[#allocation7 + $0x118] sm:$0xff]
    %v1727 = vld [vmem:[#allocation7 + $0x120] sm:$0xff]
    %v1728 = vld [vmem:[#allocation7 + $0x128] sm:$0xff]
    %v1729 = vld [vmem:[#allocation7 + $0x130] sm:$0xff]
    %v1730 = vld [vmem:[#allocation7 + $0x138] sm:$0xff]
    %v1731 = vld [vmem:[#allocation7 + $0x140] sm:$0xff]
    %v1732 = vld [vmem:[#allocation7 + $0x148] sm:$0xff]
    %v1733 = vld [vmem:[#allocation7 + $0x150] sm:$0xff]
    %v1734 = vld [vmem:[#allocation7 + $0x158] sm:$0xff]
    %v1735 = vld [vmem:[#allocation7 + $0x160] sm:$0xff]
    %v1736 = vld [vmem:[#allocation7 + $0x168] sm:$0xff]
    %v1737 = vld [vmem:[#allocation7 + $0x170] sm:$0xff]
    %v1738 = vld [vmem:[#allocation7 + $0x178] sm:$0xff]
    %v1739 = vld [vmem:[#allocation7 + $0x180] sm:$0xff]
    %v1740 = vld [vmem:[#allocation7 + $0x188] sm:$0xff]
    %v1741 = vld [vmem:[#allocation7 + $0x190] sm:$0xff]
    %v1742 = vld [vmem:[#allocation7 + $0x198] sm:$0xff]
    %v1743 = vld [vmem:[#allocation7 + $0x1a0] sm:$0xff]
    %v1744 = vld [vmem:[#allocation7 + $0x1a8] sm:$0xff]
    %v1745 = vld [vmem:[#allocation7 + $0x1b0] sm:$0xff]
    %v1746 = vld [vmem:[#allocation7 + $0x1b8] sm:$0xff]
    %v1747 = vld [vmem:[#allocation7 + $0x1c0] sm:$0xff]
    %v1748 = vld [vmem:[#allocation7 + $0x1c8] sm:$0xff]
    %v1749 = vld [vmem:[#allocation7 + $0x1d0] sm:$0xff]
    %v1750 = vld [vmem:[#allocation7 + $0x1d8] sm:$0xff]
    %v1751 = vld [vmem:[#allocation7 + $0x1e0] sm:$0xff]
    %v1752 = vld [vmem:[#allocation7 + $0x1e8] sm:$0xff]
    %v1753 = vld [vmem:[#allocation7 + $0x1f0] sm:$0xff]
    %v1754 = vld [vmem:[#allocation7 + $0x1f8] sm:$0xff]
    %v1755 = vld [vmem:[#allocation7 + $0x200] sm:$0xff]
    %v1756 = vld [vmem:[#allocation7 + $0x208] sm:$0xff]
    %v1757 = vld [vmem:[#allocation7 + $0x210] sm:$0xff]
    %v1758 = vld [vmem:[#allocation7 + $0x218] sm:$0xff]
    %v1759 = vld [vmem:[#allocation7 + $0x220] sm:$0xff]
    %v1760 = vld [vmem:[#allocation7 + $0x228] sm:$0xff]
    %v1761 = vld [vmem:[#allocation7 + $0x230] sm:$0xff]
    %v1762 = vld [vmem:[#allocation7 + $0x238] sm:$0xff]
    %v1763 = vld [vmem:[#allocation7 + $0x240] sm:$0xff]
    %v1764 = vld [vmem:[#allocation7 + $0x248] sm:$0xff]
    %v1765 = vld [vmem:[#allocation7 + $0x250] sm:$0xff]
    %v1766 = vld [vmem:[#allocation7 + $0x258] sm:$0xff]
    %v1767 = vld [vmem:[#allocation7 + $0x260] sm:$0xff]
    %v1768 = vld [vmem:[#allocation7 + $0x268] sm:$0xff]
    %v1769 = vld [vmem:[#allocation7 + $0x270] sm:$0xff]
    %v1770 = vld [vmem:[#allocation7 + $0x278] sm:$0xff]
    %v1771 = vld [vmem:[#allocation7 + $0x280] sm:$0xff]
    %v1772 = vld [vmem:[#allocation7 + $0x288] sm:$0xff]
    %v1773 = vld [vmem:[#allocation7 + $0x290] sm:$0xff]
    %v1774 = vld [vmem:[#allocation7 + $0x298] sm:$0xff]
    %v1775 = vld [vmem:[#allocation7 + $0x2a0] sm:$0xff]
    %v1776 = vld [vmem:[#allocation7 + $0x2a8] sm:$0xff]
    %v1777 = vld [vmem:[#allocation7 + $0x2b0] sm:$0xff]
    %v1778 = vld [vmem:[#allocation7 + $0x2b8] sm:$0xff]
    %v1779 = vld [vmem:[#allocation7 + $0x2c0] sm:$0xff]
    %v1780 = vld [vmem:[#allocation7 + $0x2c8] sm:$0xff]
    %v1781 = vld [vmem:[#allocation7 + $0x2d0] sm:$0xff]
    %v1782 = vld [vmem:[#allocation7 + $0x2d8] sm:$0xff]
    %v1783 = vld [vmem:[#allocation7 + $0x2e0] sm:$0xff]
    %v1784 = vld [vmem:[#allocation7 + $0x2e8] sm:$0xff]
    %v1785 = vld [vmem:[#allocation7 + $0x2f0] sm:$0xff]
    %v1786 = vld [vmem:[#allocation7 + $0x2f8] sm:$0xff]
    %v1787 = vld [vmem:[#allocation7 + $0x300] sm:$0xff]
    %v1788 = vld [vmem:[#allocation7 + $0x308] sm:$0xff]
    %v1789 = vld [vmem:[#allocation7 + $0x310] sm:$0xff]
    %v1790 = vld [vmem:[#allocation7 + $0x318] sm:$0xff]
    %v1791 = vld [vmem:[#allocation7 + $0x320] sm:$0xff]
    %v1792 = vld [vmem:[#allocation7 + $0x328] sm:$0xff]
    %v1793 = vld [vmem:[#allocation7 + $0x330] sm:$0xff]
    %v1794 = vld [vmem:[#allocation7 + $0x338] sm:$0xff]
    %v1795 = vld [vmem:[#allocation7 + $0x340] sm:$0xff]
    %v1796 = vld [vmem:[#allocation7 + $0x348] sm:$0xff]
    %v1797 = vld [vmem:[#allocation7 + $0x350] sm:$0xff]
    %v1798 = vld [vmem:[#allocation7 + $0x358] sm:$0xff]
    %v1799 = vld [vmem:[#allocation7 + $0x360] sm:$0xff]
    %v1800 = vld [vmem:[#allocation7 + $0x368] sm:$0xff]
    %v1801 = vld [vmem:[#allocation7 + $0x370] sm:$0xff]
    %v1802 = vld [vmem:[#allocation7 + $0x378] sm:$0xff]
    %v1803 = vld [vmem:[#allocation7 + $0x380] sm:$0xff]
    %v1804 = vld [vmem:[#allocation7 + $0x388] sm:$0xff]
    %v1805 = vld [vmem:[#allocation7 + $0x390] sm:$0xff]
    %v1806 = vld [vmem:[#allocation7 + $0x398] sm:$0xff]
    %v1807 = vld [vmem:[#allocation7 + $0x3a0] sm:$0xff]
    %v1808 = vld [vmem:[#allocation7 + $0x3a8] sm:$0xff]
    %v1809 = vld [vmem:[#allocation7 + $0x3b0] sm:$0xff]
    %v1810 = vld [vmem:[#allocation7 + $0x3b8] sm:$0xff]
    %v1811 = vld [vmem:[#allocation7 + $0x3c0] sm:$0xff]
    %v1812 = vld [vmem:[#allocation7 + $0x3c8] sm:$0xff]
    %v1813 = vld [vmem:[#allocation7 + $0x3d0] sm:$0xff]
    %v1814 = vld [vmem:[#allocation7 + $0x3d8] sm:$0xff]
    %v1815 = vld [vmem:[#allocation7 + $0x3e0] sm:$0xff]
    %v1816 = vld [vmem:[#allocation7 + $0x3e8] sm:$0xff]
    %v1817 = vld [vmem:[#allocation7 + $0x3f0] sm:$0xff]
    %v1818 = vld [vmem:[#allocation7 + $0x3f8] sm:$0xff]
    %v1819 = vld [vmem:[#allocation7 + $0x400] sm:$0xff]
    %v1820 = vld [vmem:[#allocation7 + $0x408] sm:$0xff]
    %v1821 = vld [vmem:[#allocation7 + $0x410] sm:$0xff]
    %v1822 = vld [vmem:[#allocation7 + $0x418] sm:$0xff]
    %v1823 = vld [vmem:[#allocation7 + $0x420] sm:$0xff]
    %v1824 = vld [vmem:[#allocation7 + $0x428] sm:$0xff]
    %v1825 = vld [vmem:[#allocation7 + $0x430] sm:$0xff]
    %v1826 = vld [vmem:[#allocation7 + $0x438] sm:$0xff]
    %v1827 = vld [vmem:[#allocation7 + $0x440] sm:$0xff]
    %v1828 = vld [vmem:[#allocation7 + $0x448] sm:$0xff]
    %v1829 = vld [vmem:[#allocation7 + $0x450] sm:$0xff]
    %v1830 = vld [vmem:[#allocation7 + $0x458] sm:$0xff]
    %v1831 = vld [vmem:[#allocation7 + $0x460] sm:$0xff]
    %v1832 = vld [vmem:[#allocation7 + $0x468] sm:$0xff]
    %v1833 = vld [vmem:[#allocation7 + $0x470] sm:$0xff]
    %v1834 = vld [vmem:[#allocation7 + $0x478] sm:$0xff]
    %v1835 = vld [vmem:[#allocation7 + $0x480] sm:$0xff]
    %v1836 = vld [vmem:[#allocation7 + $0x488] sm:$0xff]
    %v1837 = vld [vmem:[#allocation7 + $0x490] sm:$0xff]
    %v1838 = vld [vmem:[#allocation7 + $0x498] sm:$0xff]
    %v1839 = vld [vmem:[#allocation7 + $0x4a0] sm:$0xff]
    %v1840 = vld [vmem:[#allocation7 + $0x4a8] sm:$0xff]
    %v1841 = vld [vmem:[#allocation7 + $0x4b0] sm:$0xff]
    %v1842 = vld [vmem:[#allocation7 + $0x4b8] sm:$0xff]
    %v1843 = vld [vmem:[#allocation7 + $0x4c0] sm:$0xff]
    %v1844 = vld [vmem:[#allocation7 + $0x4c8] sm:$0xff]
    %v1845 = vld [vmem:[#allocation7 + $0x4d0] sm:$0xff]
    %v1846 = vld [vmem:[#allocation7 + $0x4d8] sm:$0xff]
    %v1847 = vld [vmem:[#allocation7 + $0x4e0] sm:$0xff]
    %v1848 = vld [vmem:[#allocation7 + $0x4e8] sm:$0xff]
    %v1849 = vld [vmem:[#allocation7 + $0x4f0] sm:$0xff]
    %v1850 = vld [vmem:[#allocation7 + $0x4f8] sm:$0xff]
    %v1851 = vld [vmem:[#allocation7 + $0x500] sm:$0xff]
    %v1852 = vld [vmem:[#allocation7 + $0x508] sm:$0xff]
    %v1853 = vld [vmem:[#allocation7 + $0x510] sm:$0xff]
    %v1854 = vld [vmem:[#allocation7 + $0x518] sm:$0xff]
    %v1855 = vld [vmem:[#allocation7 + $0x520] sm:$0xff]
    %v1856 = vld [vmem:[#allocation7 + $0x528] sm:$0xff]
    %v1857 = vld [vmem:[#allocation7 + $0x530] sm:$0xff]
    %v1858 = vld [vmem:[#allocation7 + $0x538] sm:$0xff]
    %v1859 = vld [vmem:[#allocation7 + $0x540] sm:$0xff]
    %v1860 = vld [vmem:[#allocation7 + $0x548] sm:$0xff]
    %v1861 = vld [vmem:[#allocation7 + $0x550] sm:$0xff]
    %v1862 = vld [vmem:[#allocation7 + $0x558] sm:$0xff]
    %v1863 = vld [vmem:[#allocation7 + $0x560] sm:$0xff]
    %v1864 = vld [vmem:[#allocation7 + $0x568] sm:$0xff]
    %v1865 = vld [vmem:[#allocation7 + $0x570] sm:$0xff]
    %v1866 = vld [vmem:[#allocation7 + $0x578] sm:$0xff]
    %v1867 = vld [vmem:[#allocation7 + $0x580] sm:$0xff]
    %v1868 = vld [vmem:[#allocation7 + $0x588] sm:$0xff]
    %v1869 = vld [vmem:[#allocation7 + $0x590] sm:$0xff]
    %v1870 = vld [vmem:[#allocation7 + $0x598] sm:$0xff]
    %v1871 = vld [vmem:[#allocation7 + $0x5a0] sm:$0xff]
    %v1872 = vld [vmem:[#allocation7 + $0x5a8] sm:$0xff]
    %v1873 = vld [vmem:[#allocation7 + $0x5b0] sm:$0xff]
    %v1874 = vld [vmem:[#allocation7 + $0x5b8] sm:$0xff]
    %v1875 = vld [vmem:[#allocation7 + $0x5c0] sm:$0xff]
    %v1876 = vld [vmem:[#allocation7 + $0x5c8] sm:$0xff]
    %v1877 = vld [vmem:[#allocation7 + $0x5d0] sm:$0xff]
    %v1878 = vld [vmem:[#allocation7 + $0x5d8] sm:$0xff]
    %v1879 = vld [vmem:[#allocation7 + $0x5e0] sm:$0xff]
    %v1880 = vld [vmem:[#allocation7 + $0x5e8] sm:$0xff]
    %v1881 = vld [vmem:[#allocation7 + $0x5f0] sm:$0xff]
    %v1882 = vld [vmem:[#allocation7 + $0x5f8] sm:$0xff]
    %v1883 = vld [vmem:[#allocation7 + $0x600] sm:$0xff]
    %v1884 = vld [vmem:[#allocation7 + $0x608] sm:$0xff]
    %v1885 = vld [vmem:[#allocation7 + $0x610] sm:$0xff]
    %v1886 = vld [vmem:[#allocation7 + $0x618] sm:$0xff]
    %v1887 = vld [vmem:[#allocation7 + $0x620] sm:$0xff]
    %v1888 = vld [vmem:[#allocation7 + $0x628] sm:$0xff]
    %v1889 = vld [vmem:[#allocation7 + $0x630] sm:$0xff]
    %v1890 = vld [vmem:[#allocation7 + $0x638] sm:$0xff]
    %v1891 = vld [vmem:[#allocation7 + $0x640] sm:$0xff]
    %v1892 = vld [vmem:[#allocation7 + $0x648] sm:$0xff]
    %v1893 = vld [vmem:[#allocation7 + $0x650] sm:$0xff]
    %v1894 = vld [vmem:[#allocation7 + $0x658] sm:$0xff]
    %v1895 = vld [vmem:[#allocation7 + $0x660] sm:$0xff]
    %v1896 = vld [vmem:[#allocation7 + $0x668] sm:$0xff]
    %v1897 = vld [vmem:[#allocation7 + $0x670] sm:$0xff]
    %v1898 = vld [vmem:[#allocation7 + $0x678] sm:$0xff]
    %v1899 = vld [vmem:[#allocation7 + $0x680] sm:$0xff]
    %v1900 = vld [vmem:[#allocation7 + $0x688] sm:$0xff]
    %v1901 = vld [vmem:[#allocation7 + $0x690] sm:$0xff]
    %v1902 = vld [vmem:[#allocation7 + $0x698] sm:$0xff]
    %v1903 = vld [vmem:[#allocation7 + $0x6a0] sm:$0xff]
    %v1904 = vld [vmem:[#allocation7 + $0x6a8] sm:$0xff]
    %v1905 = vld [vmem:[#allocation7 + $0x6b0] sm:$0xff]
    %v1906 = vld [vmem:[#allocation7 + $0x6b8] sm:$0xff]
    %v1907 = vld [vmem:[#allocation7 + $0x6c0] sm:$0xff]
    %v1908 = vld [vmem:[#allocation7 + $0x6c8] sm:$0xff]
    %v1909 = vld [vmem:[#allocation7 + $0x6d0] sm:$0xff]
    %v1910 = vld [vmem:[#allocation7 + $0x6d8] sm:$0xff]
    %v1911 = vld [vmem:[#allocation7 + $0x6e0] sm:$0xff]
    %v1912 = vld [vmem:[#allocation7 + $0x6e8] sm:$0xff]
    %v1913 = vld [vmem:[#allocation7 + $0x6f0] sm:$0xff]
    %v1914 = vld [vmem:[#allocation7 + $0x6f8] sm:$0xff]
    %v1915 = vld [vmem:[#allocation7 + $0x700] sm:$0xff]
    %v1916 = vld [vmem:[#allocation7 + $0x708] sm:$0xff]
    %v1917 = vld [vmem:[#allocation7 + $0x710] sm:$0xff]
    %v1918 = vld [vmem:[#allocation7 + $0x718] sm:$0xff]
    %v1919 = vld [vmem:[#allocation7 + $0x720] sm:$0xff]
    %v1920 = vld [vmem:[#allocation7 + $0x728] sm:$0xff]
    %v1921 = vld [vmem:[#allocation7 + $0x730] sm:$0xff]
    %v1922 = vld [vmem:[#allocation7 + $0x738] sm:$0xff]
    %v1923 = vld [vmem:[#allocation7 + $0x740] sm:$0xff]
    %v1924 = vld [vmem:[#allocation7 + $0x748] sm:$0xff]
    %v1925 = vld [vmem:[#allocation7 + $0x750] sm:$0xff]
    %v1926 = vld [vmem:[#allocation7 + $0x758] sm:$0xff]
    %v1927 = vld [vmem:[#allocation7 + $0x760] sm:$0xff]
    %v1928 = vld [vmem:[#allocation7 + $0x768] sm:$0xff]
    %v1929 = vld [vmem:[#allocation7 + $0x770] sm:$0xff]
    %v1930 = vld [vmem:[#allocation7 + $0x778] sm:$0xff]
    %v1931 = vld [vmem:[#allocation7 + $0x780] sm:$0xff]
    %v1932 = vld [vmem:[#allocation7 + $0x788] sm:$0xff]
    %v1933 = vld [vmem:[#allocation7 + $0x790] sm:$0xff]
    %v1934 = vld [vmem:[#allocation7 + $0x798] sm:$0xff]
    %v1935 = vld [vmem:[#allocation7 + $0x7a0] sm:$0xff]
    %v1936 = vld [vmem:[#allocation7 + $0x7a8] sm:$0xff]
    %v1937 = vld [vmem:[#allocation7 + $0x7b0] sm:$0xff]
    %v1938 = vld [vmem:[#allocation7 + $0x7b8] sm:$0xff]
    %v1939 = vld [vmem:[#allocation7 + $0x7c0] sm:$0xff]
    %v1940 = vld [vmem:[#allocation7 + $0x7c8] sm:$0xff]
    %v1941 = vld [vmem:[#allocation7 + $0x7d0] sm:$0xff]
    %v1942 = vld [vmem:[#allocation7 + $0x7d8] sm:$0xff]
    %v1943 = vld [vmem:[#allocation7 + $0x7e0] sm:$0xff]
    %v1944 = vld [vmem:[#allocation7 + $0x7e8] sm:$0xff]
    %v1945 = vld [vmem:[#allocation7 + $0x7f0] sm:$0xff]
    %v1946 = vld [vmem:[#allocation7 + $0x7f8] sm:$0xff]
    %v1947 = vld [vmem:[%s4] sm:$0xf]
    %v1949 = vlaneseq
    %v1950 = vshrl.u32 %v1949, 7
    %v1951 = vsub.s32 0, %v1950
    %v1952 = vrot.slane %v1947, %v1951
    %v1953 = vlaneseq
    %v1954 = vshrl.u32 %v1953, 7
    %v1955 = vsub.s32 1, %v1954
    %v1956 = vrot.slane %v1947, %v1955
    %v1957 = vlaneseq
    %v1958 = vshrl.u32 %v1957, 7
    %v1959 = vsub.s32 2, %v1958
    %v1960 = vrot.slane %v1947, %v1959
    %v1961 = vlaneseq
    %v1962 = vshrl.u32 %v1961, 7
    %v1963 = vsub.s32 3, %v1962
    %v1964 = vrot.slane %v1947, %v1963
    %v2225 = vunpack.c.l.b16 %v1691
    %v2226 = vunpack.c.h.b16 %v1691
    %v2227 = vunpack.c.l.b16 %v1692
    %v2228 = vunpack.c.h.b16 %v1692
    %v2229 = vunpack.c.l.b16 %v1693
    %v2230 = vunpack.c.h.b16 %v1693
    %v2231 = vunpack.c.l.b16 %v1694
    %v2232 = vunpack.c.h.b16 %v1694
    %v2233 = vunpack.c.l.b16 %v1695
    %v2234 = vunpack.c.h.b16 %v1695
    %v2235 = vunpack.c.l.b16 %v1696
    %v2236 = vunpack.c.h.b16 %v1696
    %v2237 = vunpack.c.l.b16 %v1697
    %v2238 = vunpack.c.h.b16 %v1697
    %v2239 = vunpack.c.l.b16 %v1698
    %v2240 = vunpack.c.h.b16 %v1698
    %v2241 = vunpack.c.l.b16 %v1699
    %v2242 = vunpack.c.h.b16 %v1699
    %v2243 = vunpack.c.l.b16 %v1700
    %v2244 = vunpack.c.h.b16 %v1700
    %v2245 = vunpack.c.l.b16 %v1701
    %v2246 = vunpack.c.h.b16 %v1701
    %v2247 = vunpack.c.l.b16 %v1702
    %v2248 = vunpack.c.h.b16 %v1702
    %v2249 = vunpack.c.l.b16 %v1703
    %v2250 = vunpack.c.h.b16 %v1703
    %v2251 = vunpack.c.l.b16 %v1704
    %v2252 = vunpack.c.h.b16 %v1704
    %v2253 = vunpack.c.l.b16 %v1705
    %v2254 = vunpack.c.h.b16 %v1705
    %v2255 = vunpack.c.l.b16 %v1706
    %v2256 = vunpack.c.h.b16 %v1706
    %v2257 = vunpack.c.l.b16 %v1707
    %v2258 = vunpack.c.h.b16 %v1707
    %v2259 = vunpack.c.l.b16 %v1708
    %v2260 = vunpack.c.h.b16 %v1708
    %v2261 = vunpack.c.l.b16 %v1709
    %v2262 = vunpack.c.h.b16 %v1709
    %v2263 = vunpack.c.l.b16 %v1710
    %v2264 = vunpack.c.h.b16 %v1710
    %v2265 = vunpack.c.l.b16 %v1711
    %v2266 = vunpack.c.h.b16 %v1711
    %v2267 = vunpack.c.l.b16 %v1712
    %v2268 = vunpack.c.h.b16 %v1712
    %v2269 = vunpack.c.l.b16 %v1713
    %v2270 = vunpack.c.h.b16 %v1713
    %v2271 = vunpack.c.l.b16 %v1714
    %v2272 = vunpack.c.h.b16 %v1714
    %v2273 = vunpack.c.l.b16 %v1715
    %v2274 = vunpack.c.h.b16 %v1715
    %v2275 = vunpack.c.l.b16 %v1716
    %v2276 = vunpack.c.h.b16 %v1716
    %v2277 = vunpack.c.l.b16 %v1717
    %v2278 = vunpack.c.h.b16 %v1717
    %v2279 = vunpack.c.l.b16 %v1718
    %v2280 = vunpack.c.h.b16 %v1718
    %v2281 = vunpack.c.l.b16 %v1719
    %v2282 = vunpack.c.h.b16 %v1719
    %v2283 = vunpack.c.l.b16 %v1720
    %v2284 = vunpack.c.h.b16 %v1720
    %v2285 = vunpack.c.l.b16 %v1721
    %v2286 = vunpack.c.h.b16 %v1721
    %v2287 = vunpack.c.l.b16 %v1722
    %v2288 = vunpack.c.h.b16 %v1722
    %v2289 = vunpack.c.l.b16 %v1723
    %v2290 = vunpack.c.h.b16 %v1723
    %v2291 = vunpack.c.l.b16 %v1724
    %v2292 = vunpack.c.h.b16 %v1724
    %v2293 = vunpack.c.l.b16 %v1725
    %v2294 = vunpack.c.h.b16 %v1725
    %v2295 = vunpack.c.l.b16 %v1726
    %v2296 = vunpack.c.h.b16 %v1726
    %v2297 = vunpack.c.l.b16 %v1727
    %v2298 = vunpack.c.h.b16 %v1727
    %v2299 = vunpack.c.l.b16 %v1728
    %v2300 = vunpack.c.h.b16 %v1728
    %v2301 = vunpack.c.l.b16 %v1729
    %v2302 = vunpack.c.h.b16 %v1729
    %v2303 = vunpack.c.l.b16 %v1730
    %v2304 = vunpack.c.h.b16 %v1730
    %v2305 = vunpack.c.l.b16 %v1731
    %v2306 = vunpack.c.h.b16 %v1731
    %v2307 = vunpack.c.l.b16 %v1732
    %v2308 = vunpack.c.h.b16 %v1732
    %v2309 = vunpack.c.l.b16 %v1733
    %v2310 = vunpack.c.h.b16 %v1733
    %v2311 = vunpack.c.l.b16 %v1734
    %v2312 = vunpack.c.h.b16 %v1734
    %v2313 = vunpack.c.l.b16 %v1735
    %v2314 = vunpack.c.h.b16 %v1735
    %v2315 = vunpack.c.l.b16 %v1736
    %v2316 = vunpack.c.h.b16 %v1736
    %v2317 = vunpack.c.l.b16 %v1737
    %v2318 = vunpack.c.h.b16 %v1737
    %v2319 = vunpack.c.l.b16 %v1738
    %v2320 = vunpack.c.h.b16 %v1738
    %v2321 = vunpack.c.l.b16 %v1739
    %v2322 = vunpack.c.h.b16 %v1739
    %v2323 = vunpack.c.l.b16 %v1740
    %v2324 = vunpack.c.h.b16 %v1740
    %v2325 = vunpack.c.l.b16 %v1741
    %v2326 = vunpack.c.h.b16 %v1741
    %v2327 = vunpack.c.l.b16 %v1742
    %v2328 = vunpack.c.h.b16 %v1742
    %v2329 = vunpack.c.l.b16 %v1743
    %v2330 = vunpack.c.h.b16 %v1743
    %v2331 = vunpack.c.l.b16 %v1744
    %v2332 = vunpack.c.h.b16 %v1744
    %v2333 = vunpack.c.l.b16 %v1745
    %v2334 = vunpack.c.h.b16 %v1745
    %v2335 = vunpack.c.l.b16 %v1746
    %v2336 = vunpack.c.h.b16 %v1746
    %v2337 = vunpack.c.l.b16 %v1747
    %v2338 = vunpack.c.h.b16 %v1747
    %v2339 = vunpack.c.l.b16 %v1748
    %v2340 = vunpack.c.h.b16 %v1748
    %v2341 = vunpack.c.l.b16 %v1749
    %v2342 = vunpack.c.h.b16 %v1749
    %v2343 = vunpack.c.l.b16 %v1750
    %v2344 = vunpack.c.h.b16 %v1750
    %v2345 = vunpack.c.l.b16 %v1751
    %v2346 = vunpack.c.h.b16 %v1751
    %v2347 = vunpack.c.l.b16 %v1752
    %v2348 = vunpack.c.h.b16 %v1752
    %v2349 = vunpack.c.l.b16 %v1753
    %v2350 = vunpack.c.h.b16 %v1753
    %v2351 = vunpack.c.l.b16 %v1754
    %v2352 = vunpack.c.h.b16 %v1754
    %v2353 = vunpack.c.l.b16 %v1755
    %v2354 = vunpack.c.h.b16 %v1755
    %v2355 = vunpack.c.l.b16 %v1756
    %v2356 = vunpack.c.h.b16 %v1756
    %v2357 = vunpack.c.l.b16 %v1757
    %v2358 = vunpack.c.h.b16 %v1757
    %v2359 = vunpack.c.l.b16 %v1758
    %v2360 = vunpack.c.h.b16 %v1758
    %v2361 = vunpack.c.l.b16 %v1759
    %v2362 = vunpack.c.h.b16 %v1759
    %v2363 = vunpack.c.l.b16 %v1760
    %v2364 = vunpack.c.h.b16 %v1760
    %v2365 = vunpack.c.l.b16 %v1761
    %v2366 = vunpack.c.h.b16 %v1761
    %v2367 = vunpack.c.l.b16 %v1762
    %v2368 = vunpack.c.h.b16 %v1762
    %v2369 = vunpack.c.l.b16 %v1763
    %v2370 = vunpack.c.h.b16 %v1763
    %v2371 = vunpack.c.l.b16 %v1764
    %v2372 = vunpack.c.h.b16 %v1764
    %v2373 = vunpack.c.l.b16 %v1765
    %v2374 = vunpack.c.h.b16 %v1765
    %v2375 = vunpack.c.l.b16 %v1766
    %v2376 = vunpack.c.h.b16 %v1766
    %v2377 = vunpack.c.l.b16 %v1767
    %v2378 = vunpack.c.h.b16 %v1767
    %v2379 = vunpack.c.l.b16 %v1768
    %v2380 = vunpack.c.h.b16 %v1768
    %v2381 = vunpack.c.l.b16 %v1769
    %v2382 = vunpack.c.h.b16 %v1769
    %v2383 = vunpack.c.l.b16 %v1770
    %v2384 = vunpack.c.h.b16 %v1770
    %v2385 = vunpack.c.l.b16 %v1771
    %v2386 = vunpack.c.h.b16 %v1771
    %v2387 = vunpack.c.l.b16 %v1772
    %v2388 = vunpack.c.h.b16 %v1772
    %v2389 = vunpack.c.l.b16 %v1773
    %v2390 = vunpack.c.h.b16 %v1773
    %v2391 = vunpack.c.l.b16 %v1774
    %v2392 = vunpack.c.h.b16 %v1774
    %v2393 = vunpack.c.l.b16 %v1775
    %v2394 = vunpack.c.h.b16 %v1775
    %v2395 = vunpack.c.l.b16 %v1776
    %v2396 = vunpack.c.h.b16 %v1776
    %v2397 = vunpack.c.l.b16 %v1777
    %v2398 = vunpack.c.h.b16 %v1777
    %v2399 = vunpack.c.l.b16 %v1778
    %v2400 = vunpack.c.h.b16 %v1778
    %v2401 = vunpack.c.l.b16 %v1779
    %v2402 = vunpack.c.h.b16 %v1779
    %v2403 = vunpack.c.l.b16 %v1780
    %v2404 = vunpack.c.h.b16 %v1780
    %v2405 = vunpack.c.l.b16 %v1781
    %v2406 = vunpack.c.h.b16 %v1781
    %v2407 = vunpack.c.l.b16 %v1782
    %v2408 = vunpack.c.h.b16 %v1782
    %v2409 = vunpack.c.l.b16 %v1783
    %v2410 = vunpack.c.h.b16 %v1783
    %v2411 = vunpack.c.l.b16 %v1784
    %v2412 = vunpack.c.h.b16 %v1784
    %v2413 = vunpack.c.l.b16 %v1785
    %v2414 = vunpack.c.h.b16 %v1785
    %v2415 = vunpack.c.l.b16 %v1786
    %v2416 = vunpack.c.h.b16 %v1786
    %v2417 = vunpack.c.l.b16 %v1787
    %v2418 = vunpack.c.h.b16 %v1787
    %v2419 = vunpack.c.l.b16 %v1788
    %v2420 = vunpack.c.h.b16 %v1788
    %v2421 = vunpack.c.l.b16 %v1789
    %v2422 = vunpack.c.h.b16 %v1789
    %v2423 = vunpack.c.l.b16 %v1790
    %v2424 = vunpack.c.h.b16 %v1790
    %v2425 = vunpack.c.l.b16 %v1791
    %v2426 = vunpack.c.h.b16 %v1791
    %v2427 = vunpack.c.l.b16 %v1792
    %v2428 = vunpack.c.h.b16 %v1792
    %v2429 = vunpack.c.l.b16 %v1793
    %v2430 = vunpack.c.h.b16 %v1793
    %v2431 = vunpack.c.l.b16 %v1794
    %v2432 = vunpack.c.h.b16 %v1794
    %v2433 = vunpack.c.l.b16 %v1795
    %v2434 = vunpack.c.h.b16 %v1795
    %v2435 = vunpack.c.l.b16 %v1796
    %v2436 = vunpack.c.h.b16 %v1796
    %v2437 = vunpack.c.l.b16 %v1797
    %v2438 = vunpack.c.h.b16 %v1797
    %v2439 = vunpack.c.l.b16 %v1798
    %v2440 = vunpack.c.h.b16 %v1798
    %v2441 = vunpack.c.l.b16 %v1799
    %v2442 = vunpack.c.h.b16 %v1799
    %v2443 = vunpack.c.l.b16 %v1800
    %v2444 = vunpack.c.h.b16 %v1800
    %v2445 = vunpack.c.l.b16 %v1801
    %v2446 = vunpack.c.h.b16 %v1801
    %v2447 = vunpack.c.l.b16 %v1802
    %v2448 = vunpack.c.h.b16 %v1802
    %v2449 = vunpack.c.l.b16 %v1803
    %v2450 = vunpack.c.h.b16 %v1803
    %v2451 = vunpack.c.l.b16 %v1804
    %v2452 = vunpack.c.h.b16 %v1804
    %v2453 = vunpack.c.l.b16 %v1805
    %v2454 = vunpack.c.h.b16 %v1805
    %v2455 = vunpack.c.l.b16 %v1806
    %v2456 = vunpack.c.h.b16 %v1806
    %v2457 = vunpack.c.l.b16 %v1807
    %v2458 = vunpack.c.h.b16 %v1807
    %v2459 = vunpack.c.l.b16 %v1808
    %v2460 = vunpack.c.h.b16 %v1808
    %v2461 = vunpack.c.l.b16 %v1809
    %v2462 = vunpack.c.h.b16 %v1809
    %v2463 = vunpack.c.l.b16 %v1810
    %v2464 = vunpack.c.h.b16 %v1810
    %v2465 = vunpack.c.l.b16 %v1811
    %v2466 = vunpack.c.h.b16 %v1811
    %v2467 = vunpack.c.l.b16 %v1812
    %v2468 = vunpack.c.h.b16 %v1812
    %v2469 = vunpack.c.l.b16 %v1813
    %v2470 = vunpack.c.h.b16 %v1813
    %v2471 = vunpack.c.l.b16 %v1814
    %v2472 = vunpack.c.h.b16 %v1814
    %v2473 = vunpack.c.l.b16 %v1815
    %v2474 = vunpack.c.h.b16 %v1815
    %v2475 = vunpack.c.l.b16 %v1816
    %v2476 = vunpack.c.h.b16 %v1816
    %v2477 = vunpack.c.l.b16 %v1817
    %v2478 = vunpack.c.h.b16 %v1817
    %v2479 = vunpack.c.l.b16 %v1818
    %v2480 = vunpack.c.h.b16 %v1818
    %v2481 = vunpack.c.l.b16 %v1819
    %v2482 = vunpack.c.h.b16 %v1819
    %v2483 = vunpack.c.l.b16 %v1820
    %v2484 = vunpack.c.h.b16 %v1820
    %v2485 = vunpack.c.l.b16 %v1821
    %v2486 = vunpack.c.h.b16 %v1821
    %v2487 = vunpack.c.l.b16 %v1822
    %v2488 = vunpack.c.h.b16 %v1822
    %v2489 = vunpack.c.l.b16 %v1823
    %v2490 = vunpack.c.h.b16 %v1823
    %v2491 = vunpack.c.l.b16 %v1824
    %v2492 = vunpack.c.h.b16 %v1824
    %v2493 = vunpack.c.l.b16 %v1825
    %v2494 = vunpack.c.h.b16 %v1825
    %v2495 = vunpack.c.l.b16 %v1826
    %v2496 = vunpack.c.h.b16 %v1826
    %v2497 = vunpack.c.l.b16 %v1827
    %v2498 = vunpack.c.h.b16 %v1827
    %v2499 = vunpack.c.l.b16 %v1828
    %v2500 = vunpack.c.h.b16 %v1828
    %v2501 = vunpack.c.l.b16 %v1829
    %v2502 = vunpack.c.h.b16 %v1829
    %v2503 = vunpack.c.l.b16 %v1830
    %v2504 = vunpack.c.h.b16 %v1830
    %v2505 = vunpack.c.l.b16 %v1831
    %v2506 = vunpack.c.h.b16 %v1831
    %v2507 = vunpack.c.l.b16 %v1832
    %v2508 = vunpack.c.h.b16 %v1832
    %v2509 = vunpack.c.l.b16 %v1833
    %v2510 = vunpack.c.h.b16 %v1833
    %v2511 = vunpack.c.l.b16 %v1834
    %v2512 = vunpack.c.h.b16 %v1834
    %v2513 = vunpack.c.l.b16 %v1835
    %v2514 = vunpack.c.h.b16 %v1835
    %v2515 = vunpack.c.l.b16 %v1836
    %v2516 = vunpack.c.h.b16 %v1836
    %v2517 = vunpack.c.l.b16 %v1837
    %v2518 = vunpack.c.h.b16 %v1837
    %v2519 = vunpack.c.l.b16 %v1838
    %v2520 = vunpack.c.h.b16 %v1838
    %v2521 = vunpack.c.l.b16 %v1839
    %v2522 = vunpack.c.h.b16 %v1839
    %v2523 = vunpack.c.l.b16 %v1840
    %v2524 = vunpack.c.h.b16 %v1840
    %v2525 = vunpack.c.l.b16 %v1841
    %v2526 = vunpack.c.h.b16 %v1841
    %v2527 = vunpack.c.l.b16 %v1842
    %v2528 = vunpack.c.h.b16 %v1842
    %v2529 = vunpack.c.l.b16 %v1843
    %v2530 = vunpack.c.h.b16 %v1843
    %v2531 = vunpack.c.l.b16 %v1844
    %v2532 = vunpack.c.h.b16 %v1844
    %v2533 = vunpack.c.l.b16 %v1845
    %v2534 = vunpack.c.h.b16 %v1845
    %v2535 = vunpack.c.l.b16 %v1846
    %v2536 = vunpack.c.h.b16 %v1846
    %v2537 = vunpack.c.l.b16 %v1847
    %v2538 = vunpack.c.h.b16 %v1847
    %v2539 = vunpack.c.l.b16 %v1848
    %v2540 = vunpack.c.h.b16 %v1848
    %v2541 = vunpack.c.l.b16 %v1849
    %v2542 = vunpack.c.h.b16 %v1849
    %v2543 = vunpack.c.l.b16 %v1850
    %v2544 = vunpack.c.h.b16 %v1850
    %v2545 = vunpack.c.l.b16 %v1851
    %v2546 = vunpack.c.h.b16 %v1851
    %v2547 = vunpack.c.l.b16 %v1852
    %v2548 = vunpack.c.h.b16 %v1852
    %v2549 = vunpack.c.l.b16 %v1853
    %v2550 = vunpack.c.h.b16 %v1853
    %v2551 = vunpack.c.l.b16 %v1854
    %v2552 = vunpack.c.h.b16 %v1854
    %v2553 = vunpack.c.l.b16 %v1855
    %v2554 = vunpack.c.h.b16 %v1855
    %v2555 = vunpack.c.l.b16 %v1856
    %v2556 = vunpack.c.h.b16 %v1856
    %v2557 = vunpack.c.l.b16 %v1857
    %v2558 = vunpack.c.h.b16 %v1857
    %v2559 = vunpack.c.l.b16 %v1858
    %v2560 = vunpack.c.h.b16 %v1858
    %v2561 = vunpack.c.l.b16 %v1859
    %v2562 = vunpack.c.h.b16 %v1859
    %v2563 = vunpack.c.l.b16 %v1860
    %v2564 = vunpack.c.h.b16 %v1860
    %v2565 = vunpack.c.l.b16 %v1861
    %v2566 = vunpack.c.h.b16 %v1861
    %v2567 = vunpack.c.l.b16 %v1862
    %v2568 = vunpack.c.h.b16 %v1862
    %v2569 = vunpack.c.l.b16 %v1863
    %v2570 = vunpack.c.h.b16 %v1863
    %v2571 = vunpack.c.l.b16 %v1864
    %v2572 = vunpack.c.h.b16 %v1864
    %v2573 = vunpack.c.l.b16 %v1865
    %v2574 = vunpack.c.h.b16 %v1865
    %v2575 = vunpack.c.l.b16 %v1866
    %v2576 = vunpack.c.h.b16 %v1866
    %v2577 = vunpack.c.l.b16 %v1867
    %v2578 = vunpack.c.h.b16 %v1867
    %v2579 = vunpack.c.l.b16 %v1868
    %v2580 = vunpack.c.h.b16 %v1868
    %v2581 = vunpack.c.l.b16 %v1869
    %v2582 = vunpack.c.h.b16 %v1869
    %v2583 = vunpack.c.l.b16 %v1870
    %v2584 = vunpack.c.h.b16 %v1870
    %v2585 = vunpack.c.l.b16 %v1871
    %v2586 = vunpack.c.h.b16 %v1871
    %v2587 = vunpack.c.l.b16 %v1872
    %v2588 = vunpack.c.h.b16 %v1872
    %v2589 = vunpack.c.l.b16 %v1873
    %v2590 = vunpack.c.h.b16 %v1873
    %v2591 = vunpack.c.l.b16 %v1874
    %v2592 = vunpack.c.h.b16 %v1874
    %v2593 = vunpack.c.l.b16 %v1875
    %v2594 = vunpack.c.h.b16 %v1875
    %v2595 = vunpack.c.l.b16 %v1876
    %v2596 = vunpack.c.h.b16 %v1876
    %v2597 = vunpack.c.l.b16 %v1877
    %v2598 = vunpack.c.h.b16 %v1877
    %v2599 = vunpack.c.l.b16 %v1878
    %v2600 = vunpack.c.h.b16 %v1878
    %v2601 = vunpack.c.l.b16 %v1879
    %v2602 = vunpack.c.h.b16 %v1879
    %v2603 = vunpack.c.l.b16 %v1880
    %v2604 = vunpack.c.h.b16 %v1880
    %v2605 = vunpack.c.l.b16 %v1881
    %v2606 = vunpack.c.h.b16 %v1881
    %v2607 = vunpack.c.l.b16 %v1882
    %v2608 = vunpack.c.h.b16 %v1882
    %v2609 = vunpack.c.l.b16 %v1883
    %v2610 = vunpack.c.h.b16 %v1883
    %v2611 = vunpack.c.l.b16 %v1884
    %v2612 = vunpack.c.h.b16 %v1884
    %v2613 = vunpack.c.l.b16 %v1885
    %v2614 = vunpack.c.h.b16 %v1885
    %v2615 = vunpack.c.l.b16 %v1886
    %v2616 = vunpack.c.h.b16 %v1886
    %v2617 = vunpack.c.l.b16 %v1887
    %v2618 = vunpack.c.h.b16 %v1887
    %v2619 = vunpack.c.l.b16 %v1888
    %v2620 = vunpack.c.h.b16 %v1888
    %v2621 = vunpack.c.l.b16 %v1889
    %v2622 = vunpack.c.h.b16 %v1889
    %v2623 = vunpack.c.l.b16 %v1890
    %v2624 = vunpack.c.h.b16 %v1890
    %v2625 = vunpack.c.l.b16 %v1891
    %v2626 = vunpack.c.h.b16 %v1891
    %v2627 = vunpack.c.l.b16 %v1892
    %v2628 = vunpack.c.h.b16 %v1892
    %v2629 = vunpack.c.l.b16 %v1893
    %v2630 = vunpack.c.h.b16 %v1893
    %v2631 = vunpack.c.l.b16 %v1894
    %v2632 = vunpack.c.h.b16 %v1894
    %v2633 = vunpack.c.l.b16 %v1895
    %v2634 = vunpack.c.h.b16 %v1895
    %v2635 = vunpack.c.l.b16 %v1896
    %v2636 = vunpack.c.h.b16 %v1896
    %v2637 = vunpack.c.l.b16 %v1897
    %v2638 = vunpack.c.h.b16 %v1897
    %v2639 = vunpack.c.l.b16 %v1898
    %v2640 = vunpack.c.h.b16 %v1898
    %v2641 = vunpack.c.l.b16 %v1899
    %v2642 = vunpack.c.h.b16 %v1899
    %v2643 = vunpack.c.l.b16 %v1900
    %v2644 = vunpack.c.h.b16 %v1900
    %v2645 = vunpack.c.l.b16 %v1901
    %v2646 = vunpack.c.h.b16 %v1901
    %v2647 = vunpack.c.l.b16 %v1902
    %v2648 = vunpack.c.h.b16 %v1902
    %v2649 = vunpack.c.l.b16 %v1903
    %v2650 = vunpack.c.h.b16 %v1903
    %v2651 = vunpack.c.l.b16 %v1904
    %v2652 = vunpack.c.h.b16 %v1904
    %v2653 = vunpack.c.l.b16 %v1905
    %v2654 = vunpack.c.h.b16 %v1905
    %v2655 = vunpack.c.l.b16 %v1906
    %v2656 = vunpack.c.h.b16 %v1906
    %v2657 = vunpack.c.l.b16 %v1907
    %v2658 = vunpack.c.h.b16 %v1907
    %v2659 = vunpack.c.l.b16 %v1908
    %v2660 = vunpack.c.h.b16 %v1908
    %v2661 = vunpack.c.l.b16 %v1909
    %v2662 = vunpack.c.h.b16 %v1909
    %v2663 = vunpack.c.l.b16 %v1910
    %v2664 = vunpack.c.h.b16 %v1910
    %v2665 = vunpack.c.l.b16 %v1911
    %v2666 = vunpack.c.h.b16 %v1911
    %v2667 = vunpack.c.l.b16 %v1912
    %v2668 = vunpack.c.h.b16 %v1912
    %v2669 = vunpack.c.l.b16 %v1913
    %v2670 = vunpack.c.h.b16 %v1913
    %v2671 = vunpack.c.l.b16 %v1914
    %v2672 = vunpack.c.h.b16 %v1914
    %v2673 = vunpack.c.l.b16 %v1915
    %v2674 = vunpack.c.h.b16 %v1915
    %v2675 = vunpack.c.l.b16 %v1916
    %v2676 = vunpack.c.h.b16 %v1916
    %v2677 = vunpack.c.l.b16 %v1917
    %v2678 = vunpack.c.h.b16 %v1917
    %v2679 = vunpack.c.l.b16 %v1918
    %v2680 = vunpack.c.h.b16 %v1918
    %v2681 = vunpack.c.l.b16 %v1919
    %v2682 = vunpack.c.h.b16 %v1919
    %v2683 = vunpack.c.l.b16 %v1920
    %v2684 = vunpack.c.h.b16 %v1920
    %v2685 = vunpack.c.l.b16 %v1921
    %v2686 = vunpack.c.h.b16 %v1921
    %v2687 = vunpack.c.l.b16 %v1922
    %v2688 = vunpack.c.h.b16 %v1922
    %v2689 = vunpack.c.l.b16 %v1923
    %v2690 = vunpack.c.h.b16 %v1923
    %v2691 = vunpack.c.l.b16 %v1924
    %v2692 = vunpack.c.h.b16 %v1924
    %v2693 = vunpack.c.l.b16 %v1925
    %v2694 = vunpack.c.h.b16 %v1925
    %v2695 = vunpack.c.l.b16 %v1926
    %v2696 = vunpack.c.h.b16 %v1926
    %v2697 = vunpack.c.l.b16 %v1927
    %v2698 = vunpack.c.h.b16 %v1927
    %v2699 = vunpack.c.l.b16 %v1928
    %v2700 = vunpack.c.h.b16 %v1928
    %v2701 = vunpack.c.l.b16 %v1929
    %v2702 = vunpack.c.h.b16 %v1929
    %v2703 = vunpack.c.l.b16 %v1930
    %v2704 = vunpack.c.h.b16 %v1930
    %v2705 = vunpack.c.l.b16 %v1931
    %v2706 = vunpack.c.h.b16 %v1931
    %v2707 = vunpack.c.l.b16 %v1932
    %v2708 = vunpack.c.h.b16 %v1932
    %v2709 = vunpack.c.l.b16 %v1933
    %v2710 = vunpack.c.h.b16 %v1933
    %v2711 = vunpack.c.l.b16 %v1934
    %v2712 = vunpack.c.h.b16 %v1934
    %v2713 = vunpack.c.l.b16 %v1935
    %v2714 = vunpack.c.h.b16 %v1935
    %v2715 = vunpack.c.l.b16 %v1936
    %v2716 = vunpack.c.h.b16 %v1936
    %v2717 = vunpack.c.l.b16 %v1937
    %v2718 = vunpack.c.h.b16 %v1937
    %v2719 = vunpack.c.l.b16 %v1938
    %v2720 = vunpack.c.h.b16 %v1938
    %v2721 = vunpack.c.l.b16 %v1939
    %v2722 = vunpack.c.h.b16 %v1939
    %v2723 = vunpack.c.l.b16 %v1940
    %v2724 = vunpack.c.h.b16 %v1940
    %v2725 = vunpack.c.l.b16 %v1941
    %v2726 = vunpack.c.h.b16 %v1941
    %v2727 = vunpack.c.l.b16 %v1942
    %v2728 = vunpack.c.h.b16 %v1942
    %v2729 = vunpack.c.l.b16 %v1943
    %v2730 = vunpack.c.h.b16 %v1943
    %v2731 = vunpack.c.l.b16 %v1944
    %v2732 = vunpack.c.h.b16 %v1944
    %v2733 = vunpack.c.l.b16 %v1945
    %v2734 = vunpack.c.h.b16 %v1945
    %v2735 = vunpack.c.l.b16 %v1946
    %v2736 = vunpack.c.h.b16 %v1946
    %v2737 = vpack.c.b16 %v2229, %v2225
    %v2738 = vpack.c.b16 %v2230, %v2226
    %v2739 = vpack.c.b16 %v2231, %v2227
    %v2740 = vpack.c.b16 %v2232, %v2228
    %v2741 = vpack.c.b16 %v2237, %v2233
    %v2742 = vpack.c.b16 %v2238, %v2234
    %v2743 = vpack.c.b16 %v2239, %v2235
    %v2744 = vpack.c.b16 %v2240, %v2236
    %v2745 = vpack.c.b16 %v2245, %v2241
    %v2746 = vpack.c.b16 %v2246, %v2242
    %v2747 = vpack.c.b16 %v2247, %v2243
    %v2748 = vpack.c.b16 %v2248, %v2244
    %v2749 = vpack.c.b16 %v2253, %v2249
    %v2750 = vpack.c.b16 %v2254, %v2250
    %v2751 = vpack.c.b16 %v2255, %v2251
    %v2752 = vpack.c.b16 %v2256, %v2252
    %v2753 = vpack.c.b16 %v2261, %v2257
    %v2754 = vpack.c.b16 %v2262, %v2258
    %v2755 = vpack.c.b16 %v2263, %v2259
    %v2756 = vpack.c.b16 %v2264, %v2260
    %v2757 = vpack.c.b16 %v2269, %v2265
    %v2758 = vpack.c.b16 %v2270, %v2266
    %v2759 = vpack.c.b16 %v2271, %v2267
    %v2760 = vpack.c.b16 %v2272, %v2268
    %v2761 = vpack.c.b16 %v2277, %v2273
    %v2762 = vpack.c.b16 %v2278, %v2274
    %v2763 = vpack.c.b16 %v2279, %v2275
    %v2764 = vpack.c.b16 %v2280, %v2276
    %v2765 = vpack.c.b16 %v2285, %v2281
    %v2766 = vpack.c.b16 %v2286, %v2282
    %v2767 = vpack.c.b16 %v2287, %v2283
    %v2768 = vpack.c.b16 %v2288, %v2284
    %v2769 = vpack.c.b16 %v2293, %v2289
    %v2770 = vpack.c.b16 %v2294, %v2290
    %v2771 = vpack.c.b16 %v2295, %v2291
    %v2772 = vpack.c.b16 %v2296, %v2292
    %v2773 = vpack.c.b16 %v2301, %v2297
    %v2774 = vpack.c.b16 %v2302, %v2298
    %v2775 = vpack.c.b16 %v2303, %v2299
    %v2776 = vpack.c.b16 %v2304, %v2300
    %v2777 = vpack.c.b16 %v2309, %v2305
    %v2778 = vpack.c.b16 %v2310, %v2306
    %v2779 = vpack.c.b16 %v2311, %v2307
    %v2780 = vpack.c.b16 %v2312, %v2308
    %v2781 = vpack.c.b16 %v2317, %v2313
    %v2782 = vpack.c.b16 %v2318, %v2314
    %v2783 = vpack.c.b16 %v2319, %v2315
    %v2784 = vpack.c.b16 %v2320, %v2316
    %v2785 = vpack.c.b16 %v2325, %v2321
    %v2786 = vpack.c.b16 %v2326, %v2322
    %v2787 = vpack.c.b16 %v2327, %v2323
    %v2788 = vpack.c.b16 %v2328, %v2324
    %v2789 = vpack.c.b16 %v2333, %v2329
    %v2790 = vpack.c.b16 %v2334, %v2330
    %v2791 = vpack.c.b16 %v2335, %v2331
    %v2792 = vpack.c.b16 %v2336, %v2332
    %v2793 = vpack.c.b16 %v2341, %v2337
    %v2794 = vpack.c.b16 %v2342, %v2338
    %v2795 = vpack.c.b16 %v2343, %v2339
    %v2796 = vpack.c.b16 %v2344, %v2340
    %v2797 = vpack.c.b16 %v2349, %v2345
    %v2798 = vpack.c.b16 %v2350, %v2346
    %v2799 = vpack.c.b16 %v2351, %v2347
    %v2800 = vpack.c.b16 %v2352, %v2348
    %v2801 = vpack.c.b16 %v2357, %v2353
    %v2802 = vpack.c.b16 %v2358, %v2354
    %v2803 = vpack.c.b16 %v2359, %v2355
    %v2804 = vpack.c.b16 %v2360, %v2356
    %v2805 = vpack.c.b16 %v2365, %v2361
    %v2806 = vpack.c.b16 %v2366, %v2362
    %v2807 = vpack.c.b16 %v2367, %v2363
    %v2808 = vpack.c.b16 %v2368, %v2364
    %v2809 = vpack.c.b16 %v2373, %v2369
    %v2810 = vpack.c.b16 %v2374, %v2370
    %v2811 = vpack.c.b16 %v2375, %v2371
    %v2812 = vpack.c.b16 %v2376, %v2372
    %v2813 = vpack.c.b16 %v2381, %v2377
    %v2814 = vpack.c.b16 %v2382, %v2378
    %v2815 = vpack.c.b16 %v2383, %v2379
    %v2816 = vpack.c.b16 %v2384, %v2380
    %v2817 = vpack.c.b16 %v2389, %v2385
    %v2818 = vpack.c.b16 %v2390, %v2386
    %v2819 = vpack.c.b16 %v2391, %v2387
    %v2820 = vpack.c.b16 %v2392, %v2388
    %v2821 = vpack.c.b16 %v2397, %v2393
    %v2822 = vpack.c.b16 %v2398, %v2394
    %v2823 = vpack.c.b16 %v2399, %v2395
    %v2824 = vpack.c.b16 %v2400, %v2396
    %v2825 = vpack.c.b16 %v2405, %v2401
    %v2826 = vpack.c.b16 %v2406, %v2402
    %v2827 = vpack.c.b16 %v2407, %v2403
    %v2828 = vpack.c.b16 %v2408, %v2404
    %v2829 = vpack.c.b16 %v2413, %v2409
    %v2830 = vpack.c.b16 %v2414, %v2410
    %v2831 = vpack.c.b16 %v2415, %v2411
    %v2832 = vpack.c.b16 %v2416, %v2412
    %v2833 = vpack.c.b16 %v2421, %v2417
    %v2834 = vpack.c.b16 %v2422, %v2418
    %v2835 = vpack.c.b16 %v2423, %v2419
    %v2836 = vpack.c.b16 %v2424, %v2420
    %v2837 = vpack.c.b16 %v2429, %v2425
    %v2838 = vpack.c.b16 %v2430, %v2426
    %v2839 = vpack.c.b16 %v2431, %v2427
    %v2840 = vpack.c.b16 %v2432, %v2428
    %v2841 = vpack.c.b16 %v2437, %v2433
    %v2842 = vpack.c.b16 %v2438, %v2434
    %v2843 = vpack.c.b16 %v2439, %v2435
    %v2844 = vpack.c.b16 %v2440, %v2436
    %v2845 = vpack.c.b16 %v2445, %v2441
    %v2846 = vpack.c.b16 %v2446, %v2442
    %v2847 = vpack.c.b16 %v2447, %v2443
    %v2848 = vpack.c.b16 %v2448, %v2444
    %v2849 = vpack.c.b16 %v2453, %v2449
    %v2850 = vpack.c.b16 %v2454, %v2450
    %v2851 = vpack.c.b16 %v2455, %v2451
    %v2852 = vpack.c.b16 %v2456, %v2452
    %v2853 = vpack.c.b16 %v2461, %v2457
    %v2854 = vpack.c.b16 %v2462, %v2458
    %v2855 = vpack.c.b16 %v2463, %v2459
    %v2856 = vpack.c.b16 %v2464, %v2460
    %v2857 = vpack.c.b16 %v2469, %v2465
    %v2858 = vpack.c.b16 %v2470, %v2466
    %v2859 = vpack.c.b16 %v2471, %v2467
    %v2860 = vpack.c.b16 %v2472, %v2468
    %v2861 = vpack.c.b16 %v2477, %v2473
    %v2862 = vpack.c.b16 %v2478, %v2474
    %v2863 = vpack.c.b16 %v2479, %v2475
    %v2864 = vpack.c.b16 %v2480, %v2476
    %v2865 = vpack.c.b16 %v2485, %v2481
    %v2866 = vpack.c.b16 %v2486, %v2482
    %v2867 = vpack.c.b16 %v2487, %v2483
    %v2868 = vpack.c.b16 %v2488, %v2484
    %v2869 = vpack.c.b16 %v2493, %v2489
    %v2870 = vpack.c.b16 %v2494, %v2490
    %v2871 = vpack.c.b16 %v2495, %v2491
    %v2872 = vpack.c.b16 %v2496, %v2492
    %v2873 = vpack.c.b16 %v2501, %v2497
    %v2874 = vpack.c.b16 %v2502, %v2498
    %v2875 = vpack.c.b16 %v2503, %v2499
    %v2876 = vpack.c.b16 %v2504, %v2500
    %v2877 = vpack.c.b16 %v2509, %v2505
    %v2878 = vpack.c.b16 %v2510, %v2506
    %v2879 = vpack.c.b16 %v2511, %v2507
    %v2880 = vpack.c.b16 %v2512, %v2508
    %v2881 = vpack.c.b16 %v2517, %v2513
    %v2882 = vpack.c.b16 %v2518, %v2514
    %v2883 = vpack.c.b16 %v2519, %v2515
    %v2884 = vpack.c.b16 %v2520, %v2516
    %v2885 = vpack.c.b16 %v2525, %v2521
    %v2886 = vpack.c.b16 %v2526, %v2522
    %v2887 = vpack.c.b16 %v2527, %v2523
    %v2888 = vpack.c.b16 %v2528, %v2524
    %v2889 = vpack.c.b16 %v2533, %v2529
    %v2890 = vpack.c.b16 %v2534, %v2530
    %v2891 = vpack.c.b16 %v2535, %v2531
    %v2892 = vpack.c.b16 %v2536, %v2532
    %v2893 = vpack.c.b16 %v2541, %v2537
    %v2894 = vpack.c.b16 %v2542, %v2538
    %v2895 = vpack.c.b16 %v2543, %v2539
    %v2896 = vpack.c.b16 %v2544, %v2540
    %v2897 = vpack.c.b16 %v2549, %v2545
    %v2898 = vpack.c.b16 %v2550, %v2546
    %v2899 = vpack.c.b16 %v2551, %v2547
    %v2900 = vpack.c.b16 %v2552, %v2548
    %v2901 = vpack.c.b16 %v2557, %v2553
    %v2902 = vpack.c.b16 %v2558, %v2554
    %v2903 = vpack.c.b16 %v2559, %v2555
    %v2904 = vpack.c.b16 %v2560, %v2556
    %v2905 = vpack.c.b16 %v2565, %v2561
    %v2906 = vpack.c.b16 %v2566, %v2562
    %v2907 = vpack.c.b16 %v2567, %v2563
    %v2908 = vpack.c.b16 %v2568, %v2564
    %v2909 = vpack.c.b16 %v2573, %v2569
    %v2910 = vpack.c.b16 %v2574, %v2570
    %v2911 = vpack.c.b16 %v2575, %v2571
    %v2912 = vpack.c.b16 %v2576, %v2572
    %v2913 = vpack.c.b16 %v2581, %v2577
    %v2914 = vpack.c.b16 %v2582, %v2578
    %v2915 = vpack.c.b16 %v2583, %v2579
    %v2916 = vpack.c.b16 %v2584, %v2580
    %v2917 = vpack.c.b16 %v2589, %v2585
    %v2918 = vpack.c.b16 %v2590, %v2586
    %v2919 = vpack.c.b16 %v2591, %v2587
    %v2920 = vpack.c.b16 %v2592, %v2588
    %v2921 = vpack.c.b16 %v2597, %v2593
    %v2922 = vpack.c.b16 %v2598, %v2594
    %v2923 = vpack.c.b16 %v2599, %v2595
    %v2924 = vpack.c.b16 %v2600, %v2596
    %v2925 = vpack.c.b16 %v2605, %v2601
    %v2926 = vpack.c.b16 %v2606, %v2602
    %v2927 = vpack.c.b16 %v2607, %v2603
    %v2928 = vpack.c.b16 %v2608, %v2604
    %v2929 = vpack.c.b16 %v2613, %v2609
    %v2930 = vpack.c.b16 %v2614, %v2610
    %v2931 = vpack.c.b16 %v2615, %v2611
    %v2932 = vpack.c.b16 %v2616, %v2612
    %v2933 = vpack.c.b16 %v2621, %v2617
    %v2934 = vpack.c.b16 %v2622, %v2618
    %v2935 = vpack.c.b16 %v2623, %v2619
    %v2936 = vpack.c.b16 %v2624, %v2620
    %v2937 = vpack.c.b16 %v2629, %v2625
    %v2938 = vpack.c.b16 %v2630, %v2626
    %v2939 = vpack.c.b16 %v2631, %v2627
    %v2940 = vpack.c.b16 %v2632, %v2628
    %v2941 = vpack.c.b16 %v2637, %v2633
    %v2942 = vpack.c.b16 %v2638, %v2634
    %v2943 = vpack.c.b16 %v2639, %v2635
    %v2944 = vpack.c.b16 %v2640, %v2636
    %v2945 = vpack.c.b16 %v2645, %v2641
    %v2946 = vpack.c.b16 %v2646, %v2642
    %v2947 = vpack.c.b16 %v2647, %v2643
    %v2948 = vpack.c.b16 %v2648, %v2644
    %v2949 = vpack.c.b16 %v2653, %v2649
    %v2950 = vpack.c.b16 %v2654, %v2650
    %v2951 = vpack.c.b16 %v2655, %v2651
    %v2952 = vpack.c.b16 %v2656, %v2652
    %v2953 = vpack.c.b16 %v2661, %v2657
    %v2954 = vpack.c.b16 %v2662, %v2658
    %v2955 = vpack.c.b16 %v2663, %v2659
    %v2956 = vpack.c.b16 %v2664, %v2660
    %v2957 = vpack.c.b16 %v2669, %v2665
    %v2958 = vpack.c.b16 %v2670, %v2666
    %v2959 = vpack.c.b16 %v2671, %v2667
    %v2960 = vpack.c.b16 %v2672, %v2668
    %v2961 = vpack.c.b16 %v2677, %v2673
    %v2962 = vpack.c.b16 %v2678, %v2674
    %v2963 = vpack.c.b16 %v2679, %v2675
    %v2964 = vpack.c.b16 %v2680, %v2676
    %v2965 = vpack.c.b16 %v2685, %v2681
    %v2966 = vpack.c.b16 %v2686, %v2682
    %v2967 = vpack.c.b16 %v2687, %v2683
    %v2968 = vpack.c.b16 %v2688, %v2684
    %v2969 = vpack.c.b16 %v2693, %v2689
    %v2970 = vpack.c.b16 %v2694, %v2690
    %v2971 = vpack.c.b16 %v2695, %v2691
    %v2972 = vpack.c.b16 %v2696, %v2692
    %v2973 = vpack.c.b16 %v2701, %v2697
    %v2974 = vpack.c.b16 %v2702, %v2698
    %v2975 = vpack.c.b16 %v2703, %v2699
    %v2976 = vpack.c.b16 %v2704, %v2700
    %v2977 = vpack.c.b16 %v2709, %v2705
    %v2978 = vpack.c.b16 %v2710, %v2706
    %v2979 = vpack.c.b16 %v2711, %v2707
    %v2980 = vpack.c.b16 %v2712, %v2708
    %v2981 = vpack.c.b16 %v2717, %v2713
    %v2982 = vpack.c.b16 %v2718, %v2714
    %v2983 = vpack.c.b16 %v2719, %v2715
    %v2984 = vpack.c.b16 %v2720, %v2716
    %v2985 = vpack.c.b16 %v2725, %v2721
    %v2986 = vpack.c.b16 %v2726, %v2722
    %v2987 = vpack.c.b16 %v2727, %v2723
    %v2988 = vpack.c.b16 %v2728, %v2724
    %v2989 = vpack.c.b16 %v2733, %v2729
    %v2990 = vpack.c.b16 %v2734, %v2730
    %v2991 = vpack.c.b16 %v2735, %v2731
    %v2992 = vpack.c.b16 %v2736, %v2732
    %3249 = vmatprep.subr.bf16.mxu0 %v2738
    %3250 = vmatpush1.bf16.msra.mxu0 %v2737
    %3251 = vmatprep.subr.bf16.mxu0 %v2742
    %3252 = vmatpush1.bf16.msra.mxu0 %v2741
    %3253 = vmatprep.subr.bf16.mxu0 %v2746
    %3254 = vmatpush1.bf16.msra.mxu0 %v2745
    %3255 = vmatprep.subr.bf16.mxu0 %v2750
    %3256 = vmatpush1.bf16.msra.mxu0 %v2749
    %3257 = vmatprep.subr.bf16.mxu0 %v2754
    %3258 = vmatpush1.bf16.msra.mxu0 %v2753
    %3259 = vmatprep.subr.bf16.mxu0 %v2758
    %3260 = vmatpush1.bf16.msra.mxu0 %v2757
    %3261 = vmatprep.subr.bf16.mxu0 %v2762
    %3262 = vmatpush1.bf16.msra.mxu0 %v2761
    %3263 = vmatprep.subr.bf16.mxu0 %v2766
    %3264 = vmatpush1.bf16.msra.mxu0 %v2765
    %3265 = vmatprep.subr.bf16.mxu0 %v2770
    %3266 = vmatpush1.bf16.msra.mxu0 %v2769
    %3267 = vmatprep.subr.bf16.mxu0 %v2774
    %3268 = vmatpush1.bf16.msra.mxu0 %v2773
    %3269 = vmatprep.subr.bf16.mxu0 %v2778
    %3270 = vmatpush1.bf16.msra.mxu0 %v2777
    %3271 = vmatprep.subr.bf16.mxu0 %v2782
    %3272 = vmatpush1.bf16.msra.mxu0 %v2781
    %3273 = vmatprep.subr.bf16.mxu0 %v2786
    %3274 = vmatpush1.bf16.msra.mxu0 %v2785
    %3275 = vmatprep.subr.bf16.mxu0 %v2790
    %3276 = vmatpush1.bf16.msra.mxu0 %v2789
    %3277 = vmatprep.subr.bf16.mxu0 %v2794
    %3278 = vmatpush1.bf16.msra.mxu0 %v2793
    %3279 = vmatprep.subr.bf16.mxu0 %v2798
    %3280 = vmatpush1.bf16.msra.mxu0 %v2797
    %3281 = vmatprep.mubr.bf16.mxu0 %v1684
    %3282 = vmatmul.mubr.bf16.gmra.mrb[0].mxu0 %v1683
    %v3283 = vpop.f32.mrb[0].mxu0
    %v3284 = vadd.f32 %v1952, %v3283
    %v3285 = vpop.f32.mrb[0].mxu0
    %v3286 = vadd.f32 %v1956, %v3285
    %v3287 = vpop.f32.mrb[0].mxu0
    %v3288 = vadd.f32 %v1952, %v3287
    %v3289 = vpop.f32.mrb[0].mxu0
    %v3290 = vadd.f32 %v1956, %v3289
    %3291 = vdwg.mxu0
    %3292 = vmatprep.subr.bf16.mxu0 %v2802
    %3293 = vmatpush1.bf16.msra.mxu0 %v2801
    %3294 = vmatprep.subr.bf16.mxu0 %v2806
    %3295 = vmatpush1.bf16.msra.mxu0 %v2805
    %3296 = vmatprep.subr.bf16.mxu0 %v2810
    %3297 = vmatpush1.bf16.msra.mxu0 %v2809
    %3298 = vmatprep.subr.bf16.mxu0 %v2814
    %3299 = vmatpush1.bf16.msra.mxu0 %v2813
    %3300 = vmatprep.subr.bf16.mxu0 %v2818
    %3301 = vmatpush1.bf16.msra.mxu0 %v2817
    %3302 = vmatprep.subr.bf16.mxu0 %v2822
    %3303 = vmatpush1.bf16.msra.mxu0 %v2821
    %3304 = vmatprep.subr.bf16.mxu0 %v2826
    %3305 = vmatpush1.bf16.msra.mxu0 %v2825
    %3306 = vmatprep.subr.bf16.mxu0 %v2830
    %3307 = vmatpush1.bf16.msra.mxu0 %v2829
    %3308 = vmatprep.subr.bf16.mxu0 %v2834
    %3309 = vmatpush1.bf16.msra.mxu0 %v2833
    %3310 = vmatprep.subr.bf16.mxu0 %v2838
    %3311 = vmatpush1.bf16.msra.mxu0 %v2837
    %3312 = vmatprep.subr.bf16.mxu0 %v2842
    %3313 = vmatpush1.bf16.msra.mxu0 %v2841
    %3314 = vmatprep.subr.bf16.mxu0 %v2846
    %3315 = vmatpush1.bf16.msra.mxu0 %v2845
    %3316 = vmatprep.subr.bf16.mxu0 %v2850
    %3317 = vmatpush1.bf16.msra.mxu0 %v2849
    %3318 = vmatprep.subr.bf16.mxu0 %v2854
    %3319 = vmatpush1.bf16.msra.mxu0 %v2853
    %3320 = vmatprep.subr.bf16.mxu0 %v2858
    %3321 = vmatpush1.bf16.msra.mxu0 %v2857
    %3322 = vmatprep.subr.bf16.mxu0 %v2862
    %3323 = vmatpush1.bf16.msra.mxu0 %v2861
    %3324 = vmatprep.mubr.bf16.mxu0 %v1686
    %3325 = vmatmul.mubr.bf16.gmra.mrb[0].mxu0 %v1685
    %v3326 = vpop.f32.mrb[0].mxu0
    %v3327 = vadd.f32 %v3284, %v3326
    %v3328 = vpop.f32.mrb[0].mxu0
    %v3329 = vadd.f32 %v3286, %v3328
    %v3330 = vpop.f32.mrb[0].mxu0
    %v3331 = vadd.f32 %v3288, %v3330
    %v3332 = vpop.f32.mrb[0].mxu0
    %v3333 = vadd.f32 %v3290, %v3332
    %3334 = vdwg.mxu0
    %3335 = vmatprep.subr.bf16.mxu0 %v2866
    %3336 = vmatpush1.bf16.msra.mxu0 %v2865
    %3337 = vmatprep.subr.bf16.mxu0 %v2870
    %3338 = vmatpush1.bf16.msra.mxu0 %v2869
    %3339 = vmatprep.subr.bf16.mxu0 %v2874
    %3340 = vmatpush1.bf16.msra.mxu0 %v2873
    %3341 = vmatprep.subr.bf16.mxu0 %v2878
    %3342 = vmatpush1.bf16.msra.mxu0 %v2877
    %3343 = vmatprep.subr.bf16.mxu0 %v2882
    %3344 = vmatpush1.bf16.msra.mxu0 %v2881
    %3345 = vmatprep.subr.bf16.mxu0 %v2886
    %3346 = vmatpush1.bf16.msra.mxu0 %v2885
    %3347 = vmatprep.subr.bf16.mxu0 %v2890
    %3348 = vmatpush1.bf16.msra.mxu0 %v2889
    %3349 = vmatprep.subr.bf16.mxu0 %v2894
    %3350 = vmatpush1.bf16.msra.mxu0 %v2893
    %3351 = vmatprep.subr.bf16.mxu0 %v2898
    %3352 = vmatpush1.bf16.msra.mxu0 %v2897
    %3353 = vmatprep.subr.bf16.mxu0 %v2902
    %3354 = vmatpush1.bf16.msra.mxu0 %v2901
    %3355 = vmatprep.subr.bf16.mxu0 %v2906
    %3356 = vmatpush1.bf16.msra.mxu0 %v2905
    %3357 = vmatprep.subr.bf16.mxu0 %v2910
    %3358 = vmatpush1.bf16.msra.mxu0 %v2909
    %3359 = vmatprep.subr.bf16.mxu0 %v2914
    %3360 = vmatpush1.bf16.msra.mxu0 %v2913
    %3361 = vmatprep.subr.bf16.mxu0 %v2918
    %3362 = vmatpush1.bf16.msra.mxu0 %v2917
    %3363 = vmatprep.subr.bf16.mxu0 %v2922
    %3364 = vmatpush1.bf16.msra.mxu0 %v2921
    %3365 = vmatprep.subr.bf16.mxu0 %v2926
    %3366 = vmatpush1.bf16.msra.mxu0 %v2925
    %3367 = vmatprep.mubr.bf16.mxu0 %v1688
    %3368 = vmatmul.mubr.bf16.gmra.mrb[0].mxu0 %v1687
    %v3369 = vpop.f32.mrb[0].mxu0
    %v3370 = vadd.f32 %v3327, %v3369
    %v3371 = vpop.f32.mrb[0].mxu0
    %v3372 = vadd.f32 %v3329, %v3371
    %v3373 = vpop.f32.mrb[0].mxu0
    %v3374 = vadd.f32 %v3331, %v3373
    %v3375 = vpop.f32.mrb[0].mxu0
    %v3376 = vadd.f32 %v3333, %v3375
    %3377 = vdwg.mxu0
    %3378 = vmatprep.subr.bf16.mxu0 %v2930
    %3379 = vmatpush1.bf16.msra.mxu0 %v2929
    %3380 = vmatprep.subr.bf16.mxu0 %v2934
    %3381 = vmatpush1.bf16.msra.mxu0 %v2933
    %3382 = vmatprep.subr.bf16.mxu0 %v2938
    %3383 = vmatpush1.bf16.msra.mxu0 %v2937
    %3384 = vmatprep.subr.bf16.mxu0 %v2942
    %3385 = vmatpush1.bf16.msra.mxu0 %v2941
    %3386 = vmatprep.subr.bf16.mxu0 %v2946
    %3387 = vmatpush1.bf16.msra.mxu0 %v2945
    %3388 = vmatprep.subr.bf16.mxu0 %v2950
    %3389 = vmatpush1.bf16.msra.mxu0 %v2949
    %3390 = vmatprep.subr.bf16.mxu0 %v2954
    %3391 = vmatpush1.bf16.msra.mxu0 %v2953
    %3392 = vmatprep.subr.bf16.mxu0 %v2958
    %3393 = vmatpush1.bf16.msra.mxu0 %v2957
    %3394 = vmatprep.subr.bf16.mxu0 %v2962
    %3395 = vmatpush1.bf16.msra.mxu0 %v2961
    %3396 = vmatprep.subr.bf16.mxu0 %v2966
    %3397 = vmatpush1.bf16.msra.mxu0 %v2965
    %3398 = vmatprep.subr.bf16.mxu0 %v2970
    %3399 = vmatpush1.bf16.msra.mxu0 %v2969
    %3400 = vmatprep.subr.bf16.mxu0 %v2974
    %3401 = vmatpush1.bf16.msra.mxu0 %v2973
    %3402 = vmatprep.subr.bf16.mxu0 %v2978
    %3403 = vmatpush1.bf16.msra.mxu0 %v2977
    %3404 = vmatprep.subr.bf16.mxu0 %v2982
    %3405 = vmatpush1.bf16.msra.mxu0 %v2981
    %3406 = vmatprep.subr.bf16.mxu0 %v2986
    %3407 = vmatpush1.bf16.msra.mxu0 %v2985
    %3408 = vmatprep.subr.bf16.mxu0 %v2990
    %3409 = vmatpush1.bf16.msra.mxu0 %v2989
    %3410 = vmatprep.mubr.bf16.mxu0 %v1690
    %3411 = vmatmul.mubr.bf16.gmra.mrb[0].mxu0 %v1689
    %v3412 = vpop.f32.mrb[0].mxu0
    %v3413 = vadd.f32 %v3370, %v3412
    %v3414 = vpop.f32.mrb[0].mxu0
    %v3415 = vadd.f32 %v3372, %v3414
    %v3416 = vpop.f32.mrb[0].mxu0
    %v3417 = vadd.f32 %v3374, %v3416
    %v3418 = vpop.f32.mrb[0].mxu0
    %v3419 = vadd.f32 %v3376, %v3418
    %3420 = vdwg.mxu0
    %3421 = vmatprep.subr.bf16.mxu0 %v2740
    %3422 = vmatpush1.bf16.msra.mxu0 %v2739
    %3423 = vmatprep.subr.bf16.mxu0 %v2744
    %3424 = vmatpush1.bf16.msra.mxu0 %v2743
    %3425 = vmatprep.subr.bf16.mxu0 %v2748
    %3426 = vmatpush1.bf16.msra.mxu0 %v2747
    %3427 = vmatprep.subr.bf16.mxu0 %v2752
    %3428 = vmatpush1.bf16.msra.mxu0 %v2751
    %3429 = vmatprep.subr.bf16.mxu0 %v2756
    %3430 = vmatpush1.bf16.msra.mxu0 %v2755
    %3431 = vmatprep.subr.bf16.mxu0 %v2760
    %3432 = vmatpush1.bf16.msra.mxu0 %v2759
    %3433 = vmatprep.subr.bf16.mxu0 %v2764
    %3434 = vmatpush1.bf16.msra.mxu0 %v2763
    %3435 = vmatprep.subr.bf16.mxu0 %v2768
    %3436 = vmatpush1.bf16.msra.mxu0 %v2767
    %3437 = vmatprep.subr.bf16.mxu0 %v2772
    %3438 = vmatpush1.bf16.msra.mxu0 %v2771
    %3439 = vmatprep.subr.bf16.mxu0 %v2776
    %3440 = vmatpush1.bf16.msra.mxu0 %v2775
    %3441 = vmatprep.subr.bf16.mxu0 %v2780
    %3442 = vmatpush1.bf16.msra.mxu0 %v2779
    %3443 = vmatprep.subr.bf16.mxu0 %v2784
    %3444 = vmatpush1.bf16.msra.mxu0 %v2783
    %3445 = vmatprep.subr.bf16.mxu0 %v2788
    %3446 = vmatpush1.bf16.msra.mxu0 %v2787
    %3447 = vmatprep.subr.bf16.mxu0 %v2792
    %3448 = vmatpush1.bf16.msra.mxu0 %v2791
    %3449 = vmatprep.subr.bf16.mxu0 %v2796
    %3450 = vmatpush1.bf16.msra.mxu0 %v2795
    %3451 = vmatprep.subr.bf16.mxu0 %v2800
    %3452 = vmatpush1.bf16.msra.mxu0 %v2799
    %3453 = vmatprep.mubr.bf16.mxu0 %v1684
    %3454 = vmatmul.mubr.bf16.gmra.mrb[0].mxu0 %v1683
    %v3455 = vpop.f32.mrb[0].mxu0
    %v3456 = vadd.f32 %v1960, %v3455
    %v3457 = vpop.f32.mrb[0].mxu0
    %v3458 = vadd.f32 %v1964, %v3457
    %v3459 = vpop.f32.mrb[0].mxu0
    %v3460 = vadd.f32 %v1960, %v3459
    %v3461 = vpop.f32.mrb[0].mxu0
    %v3462 = vadd.f32 %v1964, %v3461
    %3463 = vdwg.mxu0
    %3464 = vmatprep.subr.bf16.mxu0 %v2804
    %3465 = vmatpush1.bf16.msra.mxu0 %v2803
    %3466 = vmatprep.subr.bf16.mxu0 %v2808
    %3467 = vmatpush1.bf16.msra.mxu0 %v2807
    %3468 = vmatprep.subr.bf16.mxu0 %v2812
    %3469 = vmatpush1.bf16.msra.mxu0 %v2811
    %3470 = vmatprep.subr.bf16.mxu0 %v2816
    %3471 = vmatpush1.bf16.msra.mxu0 %v2815
    %3472 = vmatprep.subr.bf16.mxu0 %v2820
    %3473 = vmatpush1.bf16.msra.mxu0 %v2819
    %3474 = vmatprep.subr.bf16.mxu0 %v2824
    %3475 = vmatpush1.bf16.msra.mxu0 %v2823
    %3476 = vmatprep.subr.bf16.mxu0 %v2828
    %3477 = vmatpush1.bf16.msra.mxu0 %v2827
    %3478 = vmatprep.subr.bf16.mxu0 %v2832
    %3479 = vmatpush1.bf16.msra.mxu0 %v2831
    %3480 = vmatprep.subr.bf16.mxu0 %v2836
    %3481 = vmatpush1.bf16.msra.mxu0 %v2835
    %3482 = vmatprep.subr.bf16.mxu0 %v2840
    %3483 = vmatpush1.bf16.msra.mxu0 %v2839
    %3484 = vmatprep.subr.bf16.mxu0 %v2844
    %3485 = vmatpush1.bf16.msra.mxu0 %v2843
    %3486 = vmatprep.subr.bf16.mxu0 %v2848
    %3487 = vmatpush1.bf16.msra.mxu0 %v2847
    %3488 = vmatprep.subr.bf16.mxu0 %v2852
    %3489 = vmatpush1.bf16.msra.mxu0 %v2851
    %3490 = vmatprep.subr.bf16.mxu0 %v2856
    %3491 = vmatpush1.bf16.msra.mxu0 %v2855
    %3492 = vmatprep.subr.bf16.mxu0 %v2860
    %3493 = vmatpush1.bf16.msra.mxu0 %v2859
    %3494 = vmatprep.subr.bf16.mxu0 %v2864
    %3495 = vmatpush1.bf16.msra.mxu0 %v2863
    %3496 = vmatprep.mubr.bf16.mxu0 %v1686
    %3497 = vmatmul.mubr.bf16.gmra.mrb[0].mxu0 %v1685
    %v3498 = vpop.f32.mrb[0].mxu0
    %v3499 = vadd.f32 %v3456, %v3498
    %v3500 = vpop.f32.mrb[0].mxu0
    %v3501 = vadd.f32 %v3458, %v3500
    %v3502 = vpop.f32.mrb[0].mxu0
    %v3503 = vadd.f32 %v3460, %v3502
    %v3504 = vpop.f32.mrb[0].mxu0
    %v3505 = vadd.f32 %v3462, %v3504
    %3506 = vdwg.mxu0
    %3507 = vmatprep.subr.bf16.mxu0 %v2868
    %3508 = vmatpush1.bf16.msra.mxu0 %v2867
    %3509 = vmatprep.subr.bf16.mxu0 %v2872
    %3510 = vmatpush1.bf16.msra.mxu0 %v2871
    %3511 = vmatprep.subr.bf16.mxu0 %v2876
    %3512 = vmatpush1.bf16.msra.mxu0 %v2875
    %3513 = vmatprep.subr.bf16.mxu0 %v2880
    %3514 = vmatpush1.bf16.msra.mxu0 %v2879
    %3515 = vmatprep.subr.bf16.mxu0 %v2884
    %3516 = vmatpush1.bf16.msra.mxu0 %v2883
    %3517 = vmatprep.subr.bf16.mxu0 %v2888
    %3518 = vmatpush1.bf16.msra.mxu0 %v2887
    %3519 = vmatprep.subr.bf16.mxu0 %v2892
    %3520 = vmatpush1.bf16.msra.mxu0 %v2891
    %3521 = vmatprep.subr.bf16.mxu0 %v2896
    %3522 = vmatpush1.bf16.msra.mxu0 %v2895
    %3523 = vmatprep.subr.bf16.mxu0 %v2900
    %3524 = vmatpush1.bf16.msra.mxu0 %v2899
    %3525 = vmatprep.subr.bf16.mxu0 %v2904
    %3526 = vmatpush1.bf16.msra.mxu0 %v2903
    %3527 = vmatprep.subr.bf16.mxu0 %v2908
    %3528 = vmatpush1.bf16.msra.mxu0 %v2907
    %3529 = vmatprep.subr.bf16.mxu0 %v2912
    %3530 = vmatpush1.bf16.msra.mxu0 %v2911
    %3531 = vmatprep.subr.bf16.mxu0 %v2916
    %3532 = vmatpush1.bf16.msra.mxu0 %v2915
    %3533 = vmatprep.subr.bf16.mxu0 %v2920
    %3534 = vmatpush1.bf16.msra.mxu0 %v2919
    %3535 = vmatprep.subr.bf16.mxu0 %v2924
    %3536 = vmatpush1.bf16.msra.mxu0 %v2923
    %3537 = vmatprep.subr.bf16.mxu0 %v2928
    %3538 = vmatpush1.bf16.msra.mxu0 %v2927
    %3539 = vmatprep.mubr.bf16.mxu0 %v1688
    %3540 = vmatmul.mubr.bf16.gmra.mrb[0].mxu0 %v1687
    %v3541 = vpop.f32.mrb[0].mxu0
    %v3542 = vadd.f32 %v3499, %v3541
    %v3543 = vpop.f32.mrb[0].mxu0
    %v3544 = vadd.f32 %v3501, %v3543
    %v3545 = vpop.f32.mrb[0].mxu0
    %v3546 = vadd.f32 %v3503, %v3545
    %v3547 = vpop.f32.mrb[0].mxu0
    %v3548 = vadd.f32 %v3505, %v3547
    %3549 = vdwg.mxu0
    %3550 = vmatprep.subr.bf16.mxu0 %v2932
    %3551 = vmatpush1.bf16.msra.mxu0 %v2931
    %3552 = vmatprep.subr.bf16.mxu0 %v2936
    %3553 = vmatpush1.bf16.msra.mxu0 %v2935
    %3554 = vmatprep.subr.bf16.mxu0 %v2940
    %3555 = vmatpush1.bf16.msra.mxu0 %v2939
    %3556 = vmatprep.subr.bf16.mxu0 %v2944
    %3557 = vmatpush1.bf16.msra.mxu0 %v2943
    %3558 = vmatprep.subr.bf16.mxu0 %v2948
    %3559 = vmatpush1.bf16.msra.mxu0 %v2947
    %3560 = vmatprep.subr.bf16.mxu0 %v2952
    %3561 = vmatpush1.bf16.msra.mxu0 %v2951
    %3562 = vmatprep.subr.bf16.mxu0 %v2956
    %3563 = vmatpush1.bf16.msra.mxu0 %v2955
    %3564 = vmatprep.subr.bf16.mxu0 %v2960
    %3565 = vmatpush1.bf16.msra.mxu0 %v2959
    %3566 = vmatprep.subr.bf16.mxu0 %v2964
    %3567 = vmatpush1.bf16.msra.mxu0 %v2963
    %3568 = vmatprep.subr.bf16.mxu0 %v2968
    %3569 = vmatpush1.bf16.msra.mxu0 %v2967
    %3570 = vmatprep.subr.bf16.mxu0 %v2972
    %3571 = vmatpush1.bf16.msra.mxu0 %v2971
    %3572 = vmatprep.subr.bf16.mxu0 %v2976
    %3573 = vmatpush1.bf16.msra.mxu0 %v2975
    %3574 = vmatprep.subr.bf16.mxu0 %v2980
    %3575 = vmatpush1.bf16.msra.mxu0 %v2979
    %3576 = vmatprep.subr.bf16.mxu0 %v2984
    %3577 = vmatpush1.bf16.msra.mxu0 %v2983
    %3578 = vmatprep.subr.bf16.mxu0 %v2988
    %3579 = vmatpush1.bf16.msra.mxu0 %v2987
    %3580 = vmatprep.subr.bf16.mxu0 %v2992
    %3581 = vmatpush1.bf16.msra.mxu0 %v2991
    %3582 = vmatprep.mubr.bf16.mxu0 %v1690
    %3583 = vmatmul.mubr.bf16.gmra.mrb[0].mxu0 %v1689
    %v3584 = vpop.f32.mrb[0].mxu0
    %v3585 = vadd.f32 %v3542, %v3584
    %v3586 = vpop.f32.mrb[0].mxu0
    %v3587 = vadd.f32 %v3544, %v3586
    %v3588 = vpop.f32.mrb[0].mxu0
    %v3589 = vadd.f32 %v3546, %v3588
    %v3590 = vpop.f32.mrb[0].mxu0
    %v3591 = vadd.f32 %v3548, %v3590
    %3592 = vdwg.mxu0
    %v3593 = vmax.f32 %v3413, 0.0
    %v3594 = vmax.f32 %v3415, 0.0
    %v3595 = vmax.f32 %v3585, 0.0
    %v3596 = vmax.f32 %v3587, 0.0
    %v3597 = vmax.f32 %v3417, 0.0
    %v3598 = vmax.f32 %v3419, 0.0
    %v3599 = vmax.f32 %v3589, 0.0
    %v3600 = vmax.f32 %v3591, 0.0
    %v3601 = vpack.c.bf16 %v3597, %v3593
    %v3602 = vpack.c.bf16 %v3598, %v3594
    %v3603 = vpack.c.bf16 %v3599, %v3595
    %v3604 = vpack.c.bf16 %v3600, %v3596
    %v3605 = vld [vmem:[#allocation8] sm:$0xff]
    %v3606 = vld [vmem:[#allocation8 + $0x8] sm:$0xff]
    %v3607 = vld [vmem:[#allocation8 + $0x10] sm:$0xff]
    %v3608 = vld [vmem:[#allocation8 + $0x18] sm:$0xff]
    %v3609 = vld [vmem:[#allocation8 + $0x20] sm:$0xff]
    %v3610 = vld [vmem:[#allocation8 + $0x28] sm:$0xff]
    %v3611 = vld [vmem:[#allocation8 + $0x30] sm:$0xff]
    %v3612 = vld [vmem:[#allocation8 + $0x38] sm:$0xff]
    %v3613 = vld [vmem:[#allocation8 + $0x40] sm:$0xff]
    %v3614 = vld [vmem:[#allocation8 + $0x48] sm:$0xff]
    %v3615 = vld [vmem:[#allocation8 + $0x50] sm:$0xff]
    %v3616 = vld [vmem:[#allocation8 + $0x58] sm:$0xff]
    %v3617 = vld [vmem:[#allocation8 + $0x60] sm:$0xff]
    %v3618 = vld [vmem:[#allocation8 + $0x68] sm:$0xff]
    %v3619 = vld [vmem:[#allocation8 + $0x70] sm:$0xff]
    %v3620 = vld [vmem:[#allocation8 + $0x78] sm:$0xff]
    %v3621 = vld [vmem:[#allocation8 + $0x80] sm:$0xff]
    %v3622 = vld [vmem:[#allocation8 + $0x88] sm:$0xff]
    %v3623 = vld [vmem:[#allocation8 + $0x90] sm:$0xff]
    %v3624 = vld [vmem:[#allocation8 + $0x98] sm:$0xff]
    %v3625 = vld [vmem:[#allocation8 + $0xa0] sm:$0xff]
    %v3626 = vld [vmem:[#allocation8 + $0xa8] sm:$0xff]
    %v3627 = vld [vmem:[#allocation8 + $0xb0] sm:$0xff]
    %v3628 = vld [vmem:[#allocation8 + $0xb8] sm:$0xff]
    %v3629 = vld [vmem:[#allocation8 + $0xc0] sm:$0xff]
    %v3630 = vld [vmem:[#allocation8 + $0xc8] sm:$0xff]
    %v3631 = vld [vmem:[#allocation8 + $0xd0] sm:$0xff]
    %v3632 = vld [vmem:[#allocation8 + $0xd8] sm:$0xff]
    %v3633 = vld [vmem:[#allocation8 + $0xe0] sm:$0xff]
    %v3634 = vld [vmem:[#allocation8 + $0xe8] sm:$0xff]
    %v3635 = vld [vmem:[#allocation8 + $0xf0] sm:$0xff]
    %v3636 = vld [vmem:[#allocation8 + $0xf8] sm:$0xff]
    %v3637 = vld [vmem:[#allocation8 + $0x100] sm:$0xff]
    %v3638 = vld [vmem:[#allocation8 + $0x108] sm:$0xff]
    %v3639 = vld [vmem:[#allocation8 + $0x110] sm:$0xff]
    %v3640 = vld [vmem:[#allocation8 + $0x118] sm:$0xff]
    %v3641 = vld [vmem:[#allocation8 + $0x120] sm:$0xff]
    %v3642 = vld [vmem:[#allocation8 + $0x128] sm:$0xff]
    %v3643 = vld [vmem:[#allocation8 + $0x130] sm:$0xff]
    %v3644 = vld [vmem:[#allocation8 + $0x138] sm:$0xff]
    %v3645 = vld [vmem:[#allocation8 + $0x140] sm:$0xff]
    %v3646 = vld [vmem:[#allocation8 + $0x148] sm:$0xff]
    %v3647 = vld [vmem:[#allocation8 + $0x150] sm:$0xff]
    %v3648 = vld [vmem:[#allocation8 + $0x158] sm:$0xff]
    %v3649 = vld [vmem:[#allocation8 + $0x160] sm:$0xff]
    %v3650 = vld [vmem:[#allocation8 + $0x168] sm:$0xff]
    %v3651 = vld [vmem:[#allocation8 + $0x170] sm:$0xff]
    %v3652 = vld [vmem:[#allocation8 + $0x178] sm:$0xff]
    %v3653 = vld [vmem:[#allocation8 + $0x180] sm:$0xff]
    %v3654 = vld [vmem:[#allocation8 + $0x188] sm:$0xff]
    %v3655 = vld [vmem:[#allocation8 + $0x190] sm:$0xff]
    %v3656 = vld [vmem:[#allocation8 + $0x198] sm:$0xff]
    %v3657 = vld [vmem:[#allocation8 + $0x1a0] sm:$0xff]
    %v3658 = vld [vmem:[#allocation8 + $0x1a8] sm:$0xff]
    %v3659 = vld [vmem:[#allocation8 + $0x1b0] sm:$0xff]
    %v3660 = vld [vmem:[#allocation8 + $0x1b8] sm:$0xff]
    %v3661 = vld [vmem:[#allocation8 + $0x1c0] sm:$0xff]
    %v3662 = vld [vmem:[#allocation8 + $0x1c8] sm:$0xff]
    %v3663 = vld [vmem:[#allocation8 + $0x1d0] sm:$0xff]
    %v3664 = vld [vmem:[#allocation8 + $0x1d8] sm:$0xff]
    %v3665 = vld [vmem:[#allocation8 + $0x1e0] sm:$0xff]
    %v3666 = vld [vmem:[#allocation8 + $0x1e8] sm:$0xff]
    %v3667 = vld [vmem:[#allocation8 + $0x1f0] sm:$0xff]
    %v3668 = vld [vmem:[#allocation8 + $0x1f8] sm:$0xff]
    %v3669 = vld [vmem:[%s6] sm:$0x3]
    %v3671 = vlaneseq
    %v3672 = vshrl.u32 %v3671, 7
    %v3673 = vsub.s32 0, %v3672
    %v3674 = vrot.slane %v3669, %v3673
    %v3675 = vlaneseq
    %v3676 = vshrl.u32 %v3675, 7
    %v3677 = vsub.s32 1, %v3676
    %v3678 = vrot.slane %v3669, %v3677
    %v3745 = vunpack.c.l.b16 %v3605
    %v3746 = vunpack.c.h.b16 %v3605
    %v3747 = vunpack.c.l.b16 %v3606
    %v3748 = vunpack.c.h.b16 %v3606
    %v3749 = vunpack.c.l.b16 %v3607
    %v3750 = vunpack.c.h.b16 %v3607
    %v3751 = vunpack.c.l.b16 %v3608
    %v3752 = vunpack.c.h.b16 %v3608
    %v3753 = vunpack.c.l.b16 %v3609
    %v3754 = vunpack.c.h.b16 %v3609
    %v3755 = vunpack.c.l.b16 %v3610
    %v3756 = vunpack.c.h.b16 %v3610
    %v3757 = vunpack.c.l.b16 %v3611
    %v3758 = vunpack.c.h.b16 %v3611
    %v3759 = vunpack.c.l.b16 %v3612
    %v3760 = vunpack.c.h.b16 %v3612
    %v3761 = vunpack.c.l.b16 %v3613
    %v3762 = vunpack.c.h.b16 %v3613
    %v3763 = vunpack.c.l.b16 %v3614
    %v3764 = vunpack.c.h.b16 %v3614
    %v3765 = vunpack.c.l.b16 %v3615
    %v3766 = vunpack.c.h.b16 %v3615
    %v3767 = vunpack.c.l.b16 %v3616
    %v3768 = vunpack.c.h.b16 %v3616
    %v3769 = vunpack.c.l.b16 %v3617
    %v3770 = vunpack.c.h.b16 %v3617
    %v3771 = vunpack.c.l.b16 %v3618
    %v3772 = vunpack.c.h.b16 %v3618
    %v3773 = vunpack.c.l.b16 %v3619
    %v3774 = vunpack.c.h.b16 %v3619
    %v3775 = vunpack.c.l.b16 %v3620
    %v3776 = vunpack.c.h.b16 %v3620
    %v3777 = vunpack.c.l.b16 %v3621
    %v3778 = vunpack.c.h.b16 %v3621
    %v3779 = vunpack.c.l.b16 %v3622
    %v3780 = vunpack.c.h.b16 %v3622
    %v3781 = vunpack.c.l.b16 %v3623
    %v3782 = vunpack.c.h.b16 %v3623
    %v3783 = vunpack.c.l.b16 %v3624
    %v3784 = vunpack.c.h.b16 %v3624
    %v3785 = vunpack.c.l.b16 %v3625
    %v3786 = vunpack.c.h.b16 %v3625
    %v3787 = vunpack.c.l.b16 %v3626
    %v3788 = vunpack.c.h.b16 %v3626
    %v3789 = vunpack.c.l.b16 %v3627
    %v3790 = vunpack.c.h.b16 %v3627
    %v3791 = vunpack.c.l.b16 %v3628
    %v3792 = vunpack.c.h.b16 %v3628
    %v3793 = vunpack.c.l.b16 %v3629
    %v3794 = vunpack.c.h.b16 %v3629
    %v3795 = vunpack.c.l.b16 %v3630
    %v3796 = vunpack.c.h.b16 %v3630
    %v3797 = vunpack.c.l.b16 %v3631
    %v3798 = vunpack.c.h.b16 %v3631
    %v3799 = vunpack.c.l.b16 %v3632
    %v3800 = vunpack.c.h.b16 %v3632
    %v3801 = vunpack.c.l.b16 %v3633
    %v3802 = vunpack.c.h.b16 %v3633
    %v3803 = vunpack.c.l.b16 %v3634
    %v3804 = vunpack.c.h.b16 %v3634
    %v3805 = vunpack.c.l.b16 %v3635
    %v3806 = vunpack.c.h.b16 %v3635
    %v3807 = vunpack.c.l.b16 %v3636
    %v3808 = vunpack.c.h.b16 %v3636
    %v3809 = vunpack.c.l.b16 %v3637
    %v3810 = vunpack.c.h.b16 %v3637
    %v3811 = vunpack.c.l.b16 %v3638
    %v3812 = vunpack.c.h.b16 %v3638
    %v3813 = vunpack.c.l.b16 %v3639
    %v3814 = vunpack.c.h.b16 %v3639
    %v3815 = vunpack.c.l.b16 %v3640
    %v3816 = vunpack.c.h.b16 %v3640
    %v3817 = vunpack.c.l.b16 %v3641
    %v3818 = vunpack.c.h.b16 %v3641
    %v3819 = vunpack.c.l.b16 %v3642
    %v3820 = vunpack.c.h.b16 %v3642
    %v3821 = vunpack.c.l.b16 %v3643
    %v3822 = vunpack.c.h.b16 %v3643
    %v3823 = vunpack.c.l.b16 %v3644
    %v3824 = vunpack.c.h.b16 %v3644
    %v3825 = vunpack.c.l.b16 %v3645
    %v3826 = vunpack.c.h.b16 %v3645
    %v3827 = vunpack.c.l.b16 %v3646
    %v3828 = vunpack.c.h.b16 %v3646
    %v3829 = vunpack.c.l.b16 %v3647
    %v3830 = vunpack.c.h.b16 %v3647
    %v3831 = vunpack.c.l.b16 %v3648
    %v3832 = vunpack.c.h.b16 %v3648
    %v3833 = vunpack.c.l.b16 %v3649
    %v3834 = vunpack.c.h.b16 %v3649
    %v3835 = vunpack.c.l.b16 %v3650
    %v3836 = vunpack.c.h.b16 %v3650
    %v3837 = vunpack.c.l.b16 %v3651
    %v3838 = vunpack.c.h.b16 %v3651
    %v3839 = vunpack.c.l.b16 %v3652
    %v3840 = vunpack.c.h.b16 %v3652
    %v3841 = vunpack.c.l.b16 %v3653
    %v3842 = vunpack.c.h.b16 %v3653
    %v3843 = vunpack.c.l.b16 %v3654
    %v3844 = vunpack.c.h.b16 %v3654
    %v3845 = vunpack.c.l.b16 %v3655
    %v3846 = vunpack.c.h.b16 %v3655
    %v3847 = vunpack.c.l.b16 %v3656
    %v3848 = vunpack.c.h.b16 %v3656
    %v3849 = vunpack.c.l.b16 %v3657
    %v3850 = vunpack.c.h.b16 %v3657
    %v3851 = vunpack.c.l.b16 %v3658
    %v3852 = vunpack.c.h.b16 %v3658
    %v3853 = vunpack.c.l.b16 %v3659
    %v3854 = vunpack.c.h.b16 %v3659
    %v3855 = vunpack.c.l.b16 %v3660
    %v3856 = vunpack.c.h.b16 %v3660
    %v3857 = vunpack.c.l.b16 %v3661
    %v3858 = vunpack.c.h.b16 %v3661
    %v3859 = vunpack.c.l.b16 %v3662
    %v3860 = vunpack.c.h.b16 %v3662
    %v3861 = vunpack.c.l.b16 %v3663
    %v3862 = vunpack.c.h.b16 %v3663
    %v3863 = vunpack.c.l.b16 %v3664
    %v3864 = vunpack.c.h.b16 %v3664
    %v3865 = vunpack.c.l.b16 %v3665
    %v3866 = vunpack.c.h.b16 %v3665
    %v3867 = vunpack.c.l.b16 %v3666
    %v3868 = vunpack.c.h.b16 %v3666
    %v3869 = vunpack.c.l.b16 %v3667
    %v3870 = vunpack.c.h.b16 %v3667
    %v3871 = vunpack.c.l.b16 %v3668
    %v3872 = vunpack.c.h.b16 %v3668
    %v3873 = vpack.c.b16 %v3747, %v3745
    %v3874 = vpack.c.b16 %v3748, %v3746
    %v3875 = vpack.c.b16 %v3751, %v3749
    %v3876 = vpack.c.b16 %v3752, %v3750
    %v3877 = vpack.c.b16 %v3755, %v3753
    %v3878 = vpack.c.b16 %v3756, %v3754
    %v3879 = vpack.c.b16 %v3759, %v3757
    %v3880 = vpack.c.b16 %v3760, %v3758
    %v3881 = vpack.c.b16 %v3763, %v3761
    %v3882 = vpack.c.b16 %v3764, %v3762
    %v3883 = vpack.c.b16 %v3767, %v3765
    %v3884 = vpack.c.b16 %v3768, %v3766
    %v3885 = vpack.c.b16 %v3771, %v3769
    %v3886 = vpack.c.b16 %v3772, %v3770
    %v3887 = vpack.c.b16 %v3775, %v3773
    %v3888 = vpack.c.b16 %v3776, %v3774
    %v3889 = vpack.c.b16 %v3779, %v3777
    %v3890 = vpack.c.b16 %v3780, %v3778
    %v3891 = vpack.c.b16 %v3783, %v3781
    %v3892 = vpack.c.b16 %v3784, %v3782
    %v3893 = vpack.c.b16 %v3787, %v3785
    %v3894 = vpack.c.b16 %v3788, %v3786
    %v3895 = vpack.c.b16 %v3791, %v3789
    %v3896 = vpack.c.b16 %v3792, %v3790
    %v3897 = vpack.c.b16 %v3795, %v3793
    %v3898 = vpack.c.b16 %v3796, %v3794
    %v3899 = vpack.c.b16 %v3799, %v3797
    %v3900 = vpack.c.b16 %v3800, %v3798
    %v3901 = vpack.c.b16 %v3803, %v3801
    %v3902 = vpack.c.b16 %v3804, %v3802
    %v3903 = vpack.c.b16 %v3807, %v3805
    %v3904 = vpack.c.b16 %v3808, %v3806
    %v3905 = vpack.c.b16 %v3811, %v3809
    %v3906 = vpack.c.b16 %v3812, %v3810
    %v3907 = vpack.c.b16 %v3815, %v3813
    %v3908 = vpack.c.b16 %v3816, %v3814
    %v3909 = vpack.c.b16 %v3819, %v3817
    %v3910 = vpack.c.b16 %v3820, %v3818
    %v3911 = vpack.c.b16 %v3823, %v3821
    %v3912 = vpack.c.b16 %v3824, %v3822
    %v3913 = vpack.c.b16 %v3827, %v3825
    %v3914 = vpack.c.b16 %v3828, %v3826
    %v3915 = vpack.c.b16 %v3831, %v3829
    %v3916 = vpack.c.b16 %v3832, %v3830
    %v3917 = vpack.c.b16 %v3835, %v3833
    %v3918 = vpack.c.b16 %v3836, %v3834
    %v3919 = vpack.c.b16 %v3839, %v3837
    %v3920 = vpack.c.b16 %v3840, %v3838
    %v3921 = vpack.c.b16 %v3843, %v3841
    %v3922 = vpack.c.b16 %v3844, %v3842
    %v3923 = vpack.c.b16 %v3847, %v3845
    %v3924 = vpack.c.b16 %v3848, %v3846
    %v3925 = vpack.c.b16 %v3851, %v3849
    %v3926 = vpack.c.b16 %v3852, %v3850
    %v3927 = vpack.c.b16 %v3855, %v3853
    %v3928 = vpack.c.b16 %v3856, %v3854
    %v3929 = vpack.c.b16 %v3859, %v3857
    %v3930 = vpack.c.b16 %v3860, %v3858
    %v3931 = vpack.c.b16 %v3863, %v3861
    %v3932 = vpack.c.b16 %v3864, %v3862
    %v3933 = vpack.c.b16 %v3867, %v3865
    %v3934 = vpack.c.b16 %v3868, %v3866
    %v3935 = vpack.c.b16 %v3871, %v3869
    %v3936 = vpack.c.b16 %v3872, %v3870
    %4001 = vmatprep.subr.bf16.mxu0 %v3874
    %4002 = vmatpush1.bf16.msra.mxu0 %v3873
    %4003 = vmatprep.subr.bf16.mxu0 %v3876
    %4004 = vmatpush1.bf16.msra.mxu0 %v3875
    %4005 = vmatprep.subr.bf16.mxu0 %v3878
    %4006 = vmatpush1.bf16.msra.mxu0 %v3877
    %4007 = vmatprep.subr.bf16.mxu0 %v3880
    %4008 = vmatpush1.bf16.msra.mxu0 %v3879
    %4009 = vmatprep.subr.bf16.mxu0 %v3882
    %4010 = vmatpush1.bf16.msra.mxu0 %v3881
    %4011 = vmatprep.subr.bf16.mxu0 %v3884
    %4012 = vmatpush1.bf16.msra.mxu0 %v3883
    %4013 = vmatprep.subr.bf16.mxu0 %v3886
    %4014 = vmatpush1.bf16.msra.mxu0 %v3885
    %4015 = vmatprep.subr.bf16.mxu0 %v3888
    %4016 = vmatpush1.bf16.msra.mxu0 %v3887
    %4017 = vmatprep.subr.bf16.mxu0 %v3890
    %4018 = vmatpush1.bf16.msra.mxu0 %v3889
    %4019 = vmatprep.subr.bf16.mxu0 %v3892
    %4020 = vmatpush1.bf16.msra.mxu0 %v3891
    %4021 = vmatprep.subr.bf16.mxu0 %v3894
    %4022 = vmatpush1.bf16.msra.mxu0 %v3893
    %4023 = vmatprep.subr.bf16.mxu0 %v3896
    %4024 = vmatpush1.bf16.msra.mxu0 %v3895
    %4025 = vmatprep.subr.bf16.mxu0 %v3898
    %4026 = vmatpush1.bf16.msra.mxu0 %v3897
    %4027 = vmatprep.subr.bf16.mxu0 %v3900
    %4028 = vmatpush1.bf16.msra.mxu0 %v3899
    %4029 = vmatprep.subr.bf16.mxu0 %v3902
    %4030 = vmatpush1.bf16.msra.mxu0 %v3901
    %4031 = vmatprep.subr.bf16.mxu0 %v3904
    %4032 = vmatpush1.bf16.msra.mxu0 %v3903
    %4033 = vmatprep.mubr.bf16.mxu0 %v3602
    %4034 = vmatmul.mubr.bf16.gmra.mrb[0].mxu0 %v3601
    %v4035 = vpop.f32.mrb[0].mxu0
    %v4036 = vadd.f32 %v3674, %v4035
    %v4037 = vpop.f32.mrb[0].mxu0
    %v4038 = vadd.f32 %v3678, %v4037
    %v4039 = vpop.f32.mrb[0].mxu0
    %v4040 = vadd.f32 %v3674, %v4039
    %v4041 = vpop.f32.mrb[0].mxu0
    %v4042 = vadd.f32 %v3678, %v4041
    %4043 = vdwg.mxu0
    %4044 = vmatprep.subr.bf16.mxu0 %v3906
    %4045 = vmatpush1.bf16.msra.mxu0 %v3905
    %4046 = vmatprep.subr.bf16.mxu0 %v3908
    %4047 = vmatpush1.bf16.msra.mxu0 %v3907
    %4048 = vmatprep.subr.bf16.mxu0 %v3910
    %4049 = vmatpush1.bf16.msra.mxu0 %v3909
    %4050 = vmatprep.subr.bf16.mxu0 %v3912
    %4051 = vmatpush1.bf16.msra.mxu0 %v3911
    %4052 = vmatprep.subr.bf16.mxu0 %v3914
    %4053 = vmatpush1.bf16.msra.mxu0 %v3913
    %4054 = vmatprep.subr.bf16.mxu0 %v3916
    %4055 = vmatpush1.bf16.msra.mxu0 %v3915
    %4056 = vmatprep.subr.bf16.mxu0 %v3918
    %4057 = vmatpush1.bf16.msra.mxu0 %v3917
    %4058 = vmatprep.subr.bf16.mxu0 %v3920
    %4059 = vmatpush1.bf16.msra.mxu0 %v3919
    %4060 = vmatprep.subr.bf16.mxu0 %v3922
    %4061 = vmatpush1.bf16.msra.mxu0 %v3921
    %4062 = vmatprep.subr.bf16.mxu0 %v3924
    %4063 = vmatpush1.bf16.msra.mxu0 %v3923
    %4064 = vmatprep.subr.bf16.mxu0 %v3926
    %4065 = vmatpush1.bf16.msra.mxu0 %v3925
    %4066 = vmatprep.subr.bf16.mxu0 %v3928
    %4067 = vmatpush1.bf16.msra.mxu0 %v3927
    %4068 = vmatprep.subr.bf16.mxu0 %v3930
    %4069 = vmatpush1.bf16.msra.mxu0 %v3929
    %4070 = vmatprep.subr.bf16.mxu0 %v3932
    %4071 = vmatpush1.bf16.msra.mxu0 %v3931
    %4072 = vmatprep.subr.bf16.mxu0 %v3934
    %4073 = vmatpush1.bf16.msra.mxu0 %v3933
    %4074 = vmatprep.subr.bf16.mxu0 %v3936
    %4075 = vmatpush1.bf16.msra.mxu0 %v3935
    %4076 = vmatprep.mubr.bf16.mxu0 %v3604
    %4077 = vmatmul.mubr.bf16.gmra.mrb[0].mxu0 %v3603
    %v4078 = vpop.f32.mrb[0].mxu0
    %v4079 = vadd.f32 %v4036, %v4078
    %v4080 = vpop.f32.mrb[0].mxu0
    %v4081 = vadd.f32 %v4038, %v4080
    %v4082 = vpop.f32.mrb[0].mxu0
    %v4083 = vadd.f32 %v4040, %v4082
    %v4084 = vpop.f32.mrb[0].mxu0
    %v4085 = vadd.f32 %v4042, %v4084
    %4086 = vdwg.mxu0
    %v4087 = vmax.f32 %v4079, 0.0
    %v4088 = vmax.f32 %v4081, 0.0
    %v4089 = vmax.f32 %v4083, 0.0
    %v4090 = vmax.f32 %v4085, 0.0
    %v4091 = vpack.c.bf16 %v4089, %v4087
    %v4092 = vpack.c.bf16 %v4090, %v4088
    %v4093 = vld [vmem:[#allocation10] sm:$0xf]
    %v4094 = vld [vmem:[#allocation10 + $0x4] sm:$0xf]
    %v4095 = vld [vmem:[#allocation10 + $0x8] sm:$0xf]
    %v4096 = vld [vmem:[#allocation10 + $0xc] sm:$0xf]
    %v4097 = vld [vmem:[#allocation10 + $0x10] sm:$0xf]
    %v4098 = vld [vmem:[#allocation10 + $0x14] sm:$0xf]
    %v4099 = vld [vmem:[#allocation10 + $0x18] sm:$0xf]
    %v4100 = vld [vmem:[#allocation10 + $0x1c] sm:$0xf]
    %v4101 = vld [vmem:[#allocation10 + $0x20] sm:$0xf]
    %v4102 = vld [vmem:[#allocation10 + $0x24] sm:$0xf]
    %v4103 = vld [vmem:[#allocation10 + $0x28] sm:$0xf]
    %v4104 = vld [vmem:[#allocation10 + $0x2c] sm:$0xf]
    %v4105 = vld [vmem:[#allocation10 + $0x30] sm:$0xf]
    %v4106 = vld [vmem:[#allocation10 + $0x34] sm:$0xf]
    %v4107 = vld [vmem:[#allocation10 + $0x38] sm:$0xf]
    %v4108 = vld [vmem:[#allocation10 + $0x3c] sm:$0xf]
    %v4109 = vld [vmem:[#allocation10 + $0x40] sm:$0xf]
    %v4110 = vld [vmem:[#allocation10 + $0x44] sm:$0xf]
    %v4111 = vld [vmem:[#allocation10 + $0x48] sm:$0xf]
    %v4112 = vld [vmem:[#allocation10 + $0x4c] sm:$0xf]
    %v4113 = vld [vmem:[#allocation10 + $0x50] sm:$0xf]
    %v4114 = vld [vmem:[#allocation10 + $0x54] sm:$0xf]
    %v4115 = vld [vmem:[#allocation10 + $0x58] sm:$0xf]
    %v4116 = vld [vmem:[#allocation10 + $0x5c] sm:$0xf]
    %v4117 = vld [vmem:[#allocation10 + $0x60] sm:$0xf]
    %v4118 = vld [vmem:[#allocation10 + $0x64] sm:$0xf]
    %v4119 = vld [vmem:[#allocation10 + $0x68] sm:$0xf]
    %v4120 = vld [vmem:[#allocation10 + $0x6c] sm:$0xf]
    %v4121 = vld [vmem:[#allocation10 + $0x70] sm:$0xf]
    %v4122 = vld [vmem:[#allocation10 + $0x74] sm:$0xf]
    %v4123 = vld [vmem:[#allocation10 + $0x78] sm:$0xf]
    %v4124 = vld [vmem:[#allocation10 + $0x7c] sm:$0xf]
    %v4125 = vld [vmem:[%s8] sm:$0x1]
    %v4127 = vlaneseq
    %v4128 = vshrl.u32 %v4127, 7
    %v4129 = vsub.s32 0, %v4128
    %v4130 = vrot.slane %v4125, %v4129
    %v4164 = vunpack.c.l.b16 %v4093
    %v4165 = vunpack.c.l.b16 %v4094
    %v4166 = vunpack.c.l.b16 %v4095
    %v4167 = vunpack.c.l.b16 %v4096
    %v4168 = vunpack.c.l.b16 %v4097
    %v4169 = vunpack.c.l.b16 %v4098
    %v4170 = vunpack.c.l.b16 %v4099
    %v4171 = vunpack.c.l.b16 %v4100
    %v4172 = vunpack.c.l.b16 %v4101
    %v4173 = vunpack.c.l.b16 %v4102
    %v4174 = vunpack.c.l.b16 %v4103
    %v4175 = vunpack.c.l.b16 %v4104
    %v4176 = vunpack.c.l.b16 %v4105
    %v4177 = vunpack.c.l.b16 %v4106
    %v4178 = vunpack.c.l.b16 %v4107
    %v4179 = vunpack.c.l.b16 %v4108
    %v4180 = vunpack.c.l.b16 %v4109
    %v4181 = vunpack.c.l.b16 %v4110
    %v4182 = vunpack.c.l.b16 %v4111
    %v4183 = vunpack.c.l.b16 %v4112
    %v4184 = vunpack.c.l.b16 %v4113
    %v4185 = vunpack.c.l.b16 %v4114
    %v4186 = vunpack.c.l.b16 %v4115
    %v4187 = vunpack.c.l.b16 %v4116
    %v4188 = vunpack.c.l.b16 %v4117
    %v4189 = vunpack.c.l.b16 %v4118
    %v4190 = vunpack.c.l.b16 %v4119
    %v4191 = vunpack.c.l.b16 %v4120
    %v4192 = vunpack.c.l.b16 %v4121
    %v4193 = vunpack.c.l.b16 %v4122
    %v4194 = vunpack.c.l.b16 %v4123
    %v4195 = vunpack.c.l.b16 %v4124
    %v4196 = vpack.c.b16 %v4165, %v4164
    %v4197 = vpack.c.b16 %v4167, %v4166
    %v4198 = vpack.c.b16 %v4169, %v4168
    %v4199 = vpack.c.b16 %v4171, %v4170
    %v4200 = vpack.c.b16 %v4173, %v4172
    %v4201 = vpack.c.b16 %v4175, %v4174
    %v4202 = vpack.c.b16 %v4177, %v4176
    %v4203 = vpack.c.b16 %v4179, %v4178
    %v4204 = vpack.c.b16 %v4181, %v4180
    %v4205 = vpack.c.b16 %v4183, %v4182
    %v4206 = vpack.c.b16 %v4185, %v4184
    %v4207 = vpack.c.b16 %v4187, %v4186
    %v4208 = vpack.c.b16 %v4189, %v4188
    %v4209 = vpack.c.b16 %v4191, %v4190
    %v4210 = vpack.c.b16 %v4193, %v4192
    %v4211 = vpack.c.b16 %v4195, %v4194
    %4228 = vmatprep.subr.bf16.mxu0 0
    %4229 = vmatpush1.bf16.msra.mxu0 %v4196
    %4230 = vmatprep.subr.bf16.mxu0 0
    %4231 = vmatpush1.bf16.msra.mxu0 %v4197
    %4232 = vmatprep.subr.bf16.mxu0 0
    %4233 = vmatpush1.bf16.msra.mxu0 %v4198
    %4234 = vmatprep.subr.bf16.mxu0 0
    %4235 = vmatpush1.bf16.msra.mxu0 %v4199
    %4236 = vmatprep.subr.bf16.mxu0 0
    %4237 = vmatpush1.bf16.msra.mxu0 %v4200
    %4238 = vmatprep.subr.bf16.mxu0 0
    %4239 = vmatpush1.bf16.msra.mxu0 %v4201
    %4240 = vmatprep.subr.bf16.mxu0 0
    %4241 = vmatpush1.bf16.msra.mxu0 %v4202
    %4242 = vmatprep.subr.bf16.mxu0 0
    %4243 = vmatpush1.bf16.msra.mxu0 %v4203
    %4244 = vmatprep.subr.bf16.mxu0 0
    %4245 = vmatpush1.bf16.msra.mxu0 %v4204
    %4246 = vmatprep.subr.bf16.mxu0 0
    %4247 = vmatpush1.bf16.msra.mxu0 %v4205
    %4248 = vmatprep.subr.bf16.mxu0 0
    %4249 = vmatpush1.bf16.msra.mxu0 %v4206
    %4250 = vmatprep.subr.bf16.mxu0 0
    %4251 = vmatpush1.bf16.msra.mxu0 %v4207
    %4252 = vmatprep.subr.bf16.mxu0 0
    %4253 = vmatpush1.bf16.msra.mxu0 %v4208
    %4254 = vmatprep.subr.bf16.mxu0 0
    %4255 = vmatpush1.bf16.msra.mxu0 %v4209
    %4256 = vmatprep.subr.bf16.mxu0 0
    %4257 = vmatpush1.bf16.msra.mxu0 %v4210
    %4258 = vmatprep.subr.bf16.mxu0 0
    %4259 = vmatpush1.bf16.msra.mxu0 %v4211
    %4260 = vmatprep.mubr.bf16.mxu0 %v4092
    %4261 = vmatmul.mubr.bf16.gmra.mrb[0].mxu0 %v4091
    %v4262 = vpop.f32.mrb[0].mxu0
    %v4263 = vadd.f32 %v4130, %v4262
    %v4264 = vpop.f32.mrb[0].mxu0
    %v4265 = vpop.f32.mrb[0].mxu0
    %v4266 = vadd.f32 %v4130, %v4265
    %v4267 = vpop.f32.mrb[0].mxu0
    %4268 = vdwg.mxu0
    %v4269 = vmax.f32 %v4263, 0.0
    %v4270 = vmax.f32 %v4266, 0.0
    %v4271 = vld [vmem:[%s9] sm:$0x1]
    %v4273 = vlaneseq
    %v4274 = vshrl.u32 %v4273, 7
    %v4275 = vsub.s32 0, %v4274
    %v4276 = vrot.slane %v4271, %v4275
    %v4278 = vmul.f32 %v4269, %v4276
    %v4279 = vmul.f32 %v4270, %v4276
    %4280 = vadd.xlane.f32.xlu0 %v4278
    %v4281 = vpop.xlane.xlu0 %4280
    %4282 = vadd.xlane.f32.xlu0 %v4279
    %v4283 = vpop.xlane.xlu0 %4282
    %v4284 = vld [vmem:[#allocation2] sm:$0x1]
    %v4286 = vlaneseq
    %v4287 = vshrl.u32 %v4286, 7
    %v4288 = vsub.s32 0, %v4287
    %v4289 = vrot.slane %v4284, %v4288
    %v4291 = vadd.f32 %v4281, %v4289
    %v4292 = vadd.f32 %v4283, %v4289
    %v4293 = vxor.u32 %v4291, 2147483648
    %v4294 = vxor.u32 %v4292, 2147483648
    %v4295 = vmul.f32 %v4293, 1.442695
    %v4296 = vpow.pop %v4295
    %v4297 = vmul.f32 %v4294, 1.442695
    %v4298 = vpow.pop %v4297
    %v4299 = vadd.f32 %v4296, 1.0
    %v4300 = vadd.f32 %v4298, 1.0
    %v4301 = vrcp.pop %v4299
    %v4302 = vmul.f32 1.0, %v4301
    %v4303 = vrcp.pop %v4300
    %v4304 = vmul.f32 1.0, %v4303
    %vm4305 = vcmask 7168
    %4306 = vst.msk [vmem:[%s11] sm:$0xff] %vm4305, %v4302
    %4307 = vst.msk [vmem:[%s11 + $0x8] sm:$0xff] %vm4305, %v4304
    // Predicated region
    $region66: #{tpu_custom_call.1} parent=1 // pred_check
      _
    $region67: #{tpu_custom_call.1} parent=1 // pred_check_branch
      %4309 = sbr.rel (0) target = $region69
    $region68: #{tpu_custom_call.1} parent=1 // pred_region
      _
    $region69: #{tpu_custom_call.1} parent=1 // pred_fallthru
      _
    // Predicated region
    $region70: #{tpu_custom_call.1} parent=1 // pred_check
      _
    $region71: #{tpu_custom_call.1} parent=1 // pred_check_branch
      %4311 = sbr.rel (0) target = $region73
    $region72: #{tpu_custom_call.1} parent=1 // pred_region
      _
    $region73: #{tpu_custom_call.1} parent=1 // pred_fallthru
      _
    %4312 = vsyncpa [#allocation4], 1
    %4313 = vsyncpa [#allocation6], 1
    %4314 = vsyncpa [#allocation9], 1

</llo_original>
